<compile_context>
chip_gen: v7x
topology: tpu7x:2x2x1
jax: 0.10.0
libtpu: 0.0.40
codegen_flags: <defaults>
</compile_context>

<pallas_src>
import functools

import jax
import jax.numpy as jnp
from jax import lax
from jax.experimental import pallas as pl
from jax.experimental.pallas import tpu as pltpu


# --------------------- hoisted input projection (one big matmul) ---------------------
def input_proj_kernel(x_ref, w_ref, b_ref, o_ref):
    # (tm, E) @ (E, 4H) + (1, 4H) -> (tm, 4H), f32 accumulation on the MXU.
    o_ref[...] = (jnp.dot(x_ref[...], w_ref[...],
                          preferred_element_type=jnp.float32)
                  + b_ref[...]).astype(o_ref.dtype)


def _pick_row_tile(M, cap=512):
    for tm in (512, 256, 128, 64, 32, 16, 8):
        if tm <= cap and M % tm == 0:
            return tm
    return M


def input_projection(x_2d, w_t, bias):
    """x_2d: (M, E) bf16, w_t: (E, 4H) bf16, bias: (1, 4H) f32 -> (M, 4H) f32."""
    M, E = x_2d.shape
    G = w_t.shape[1]
    tm = _pick_row_tile(M)
    return pl.pallas_call(
        input_proj_kernel,
        out_shape=jax.ShapeDtypeStruct((M, G), jnp.float32),
        grid_spec=pltpu.PrefetchScalarGridSpec(
            num_scalar_prefetch=0,
            grid=(M // tm,),
            in_specs=[
                pl.BlockSpec((tm, E), lambda i: (i, 0)),
                pl.BlockSpec((E, G), lambda i: (0, 0)),
                pl.BlockSpec((1, G), lambda i: (0, 0)),
            ],
            out_specs=pl.BlockSpec((tm, G), lambda i: (i, 0)),
        ),
        compiler_params=pltpu.CompilerParams(
            dimension_semantics=("parallel",)),
    )(x_2d, w_t, bias)


# --------------- fused 2-layer LSTM recurrence + fc + sigmoid epilogue ---------------
def fused_lstm2_fc_kernel(g0_ref, h00_ref, c00_ref, h10_ref, c10_ref,
                          whh0_ref, w1_ref, b1_ref, wfc_ref, bfc_ref,
                          h0T_ref, c0T_ref, h1T_ref, c1T_ref, sig_ref,
                          h0_sc, c0_sc, h1_sc, c1_sc):
    """grid = (T // Tb,), sequential. Per grid step: Tb timesteps of both LSTM layers.

    Layer 0 gates were precomputed (g0_ref = x_t @ Wih0^T + b0); only the recurrent
    matmul h0_{t-1} @ Whh0^T is on the serial path. Layer 1 does one concatenated
    matmul [h0_t, h1_{t-1}] @ [Wih1^T; Whh1^T] + b1. Gate order is [i, f, o, g].
    """
    tb = pl.program_id(0)
    Tb = g0_ref.shape[0]
    H = h0_sc.shape[-1]

    @pl.when(tb == 0)
    def _():
        h0_sc[...] = h00_ref[...]
        c0_sc[...] = c00_ref[...]
        h1_sc[...] = h10_ref[...]
        c1_sc[...] = c10_ref[...]

    # Hoist weight/bias loads out of the time loop.
    whh0 = whh0_ref[...]          # (H, 4H) bf16
    w1 = w1_ref[...]              # (2H, 4H) bf16
    b1 = b1_ref[...]              # (1, 4H) f32

    def cell(gates, c_prev):
        # gates: (B, 4H) f32 in [i, f, o, g] order -> grouped sigmoid + single tanh.
        sig = jax.nn.sigmoid(gates[:, :3 * H])
        g_g = jnp.tanh(gates[:, 3 * H:])
        i_g = sig[:, 0 * H:1 * H]
        f_g = sig[:, 1 * H:2 * H]
        o_g = sig[:, 2 * H:3 * H]
        c_new = f_g * c_prev + i_g * g_g
        h_new = o_g * jnp.tanh(c_new)
        return h_new, c_new

    def step(t, carry):
        h0, c0, h1, c1 = carry
        # Layer 0: only the recurrent matmul remains on the serial path.
        g0 = g0_ref[t] + jnp.dot(h0.astype(whh0.dtype), whh0,
                                 preferred_element_type=jnp.float32)
        h0, c0 = cell(g0, c0)
        # Layer 1: single concatenated MXU call (input + recurrent weights fused).
        xh = jnp.concatenate([h0, h1], axis=-1).astype(w1.dtype)   # (B, 2H)
        g1 = jnp.dot(xh, w1, preferred_element_type=jnp.float32) + b1
        h1, c1 = cell(g1, c1)
        return h0, c0, h1, c1

    h0, c0, h1, c1 = lax.fori_loop(
        0, Tb, step,
        (h0_sc[...], c0_sc[...], h1_sc[...], c1_sc[...]),
        unroll=True)

    # Persist carry for the next grid step and write outputs every step (robust;
    # constant-index output blocks are written back to HBM at grid end).
    h0_sc[...] = h0
    c0_sc[...] = c0
    h1_sc[...] = h1
    c1_sc[...] = c1
    h0T_ref[...] = h0
    c0T_ref[...] = c0
    h1T_ref[...] = h1
    c1T_ref[...] = c1

    # fc + sigmoid epilogue fused into the last grid step (lane-padded output).
    @pl.when(tb == pl.num_programs(0) - 1)
    def _():
        logits = jnp.dot(h1.astype(wfc_ref.dtype), wfc_ref[...],
                         preferred_element_type=jnp.float32) + bfc_ref[...]
        sig_ref[...] = jax.nn.sigmoid(logits).astype(sig_ref.dtype)


def _pick_time_block(T, cap=32):
    for tb in range(min(T, cap), 0, -1):
        if T % tb == 0:
            return tb
    return T


def fused_lstm2_fc(gates0, h00, c00, h10, c10,
                   whh0_t, w1cat_t, b1, wfc_p, bfc_p):
    """gates0: (T, B, 4H) f32 precomputed layer-0 input gates.
    Returns (h0_T, c0_T, h1_T, c1_T, sigmoid(fc(h1_T)) padded)."""
    T, B, G = gates0.shape
    H = G // 4
    OP = wfc_p.shape[1]
    Tb = _pick_time_block(T)

    out_shapes = (
        jax.ShapeDtypeStruct((B, H), jnp.float32),
        jax.ShapeDtypeStruct((B, H), jnp.float32),
        jax.ShapeDtypeStruct((B, H), jnp.float32),
        jax.ShapeDtypeStruct((B, H), jnp.float32),
        jax.ShapeDtypeStruct((B, OP), jnp.float32),
    )
    return pl.pallas_call(
        fused_lstm2_fc_kernel,
        out_shape=out_shapes,
        grid_spec=pltpu.PrefetchScalarGridSpec(
            num_scalar_prefetch=0,
            grid=(T // Tb,),
            in_specs=[
                pl.BlockSpec((Tb, B, G), lambda i: (i, 0, 0)),  # gates0 time-block
                pl.BlockSpec((B, H), lambda i: (0, 0)),         # h0 init (layer 0)
                pl.BlockSpec((B, H), lambda i: (0, 0)),         # c0 init (layer 0)
                pl.BlockSpec((B, H), lambda i: (0, 0)),         # h0 init (layer 1)
                pl.BlockSpec((B, H), lambda i: (0, 0)),         # c0 init (layer 1)
                pl.BlockSpec((H, G), lambda i: (0, 0)),         # Whh0^T (bf16)
                pl.BlockSpec((2 * H, G), lambda i: (0, 0)),     # [Wih1^T; Whh1^T] (bf16)
                pl.BlockSpec((1, G), lambda i: (0, 0)),         # bias1
                pl.BlockSpec((H, OP), lambda i: (0, 0)),        # W_fc^T padded (bf16)
                pl.BlockSpec((1, OP), lambda i: (0, 0)),        # b_fc padded
            ],
            out_specs=[
                pl.BlockSpec((B, H), lambda i: (0, 0)),
                pl.BlockSpec((B, H), lambda i: (0, 0)),
                pl.BlockSpec((B, H), lambda i: (0, 0)),
                pl.BlockSpec((B, H), lambda i: (0, 0)),
                pl.BlockSpec((B, OP), lambda i: (0, 0)),
            ],
            scratch_shapes=[pltpu.VMEM((B, H), jnp.float32)] * 4,
        ),
        compiler_params=pltpu.CompilerParams(
            dimension_semantics=("arbitrary",)),
    )(gates0, h00, c00, h10, c10, whh0_t, w1cat_t, b1, wfc_p, bfc_p)


# ------------------------------ Full forward pass ------------------------------
def sentiment_rnn_forward(params, x_tokens, hidden):
    """x_tokens: (B, T) int32; hidden: (h0, c0) each (n_layers=2, B, H)."""
    h0_all, c0_all = hidden
    B, T = x_tokens.shape

    # Embedding lookup (glue).
    embeds = jnp.take(params["embedding"], x_tokens, axis=0)   # (B, T, E) f32
    x_tbe = jnp.transpose(embeds, (1, 0, 2))                   # time-major (T, B, E)
    E = x_tbe.shape[-1]
    H = h0_all.shape[-1]
    G = 4 * H

    # Hoisted layer-0 input projection: one big (T*B, E) @ (E, 4H) matmul.
    x_2d = x_tbe.reshape(T * B, E).astype(jnp.bfloat16)
    gates0 = input_projection(x_2d, params["wih0_t"], params["b0"])   # (T*B, 4H) f32
    gates0 = gates0.reshape(T, B, G)

    # Fused 2-layer recurrence + fc + sigmoid (dropout is identity at inference).
    h0T, c0T, h1T, c1T, sig_p = fused_lstm2_fc(
        gates0, h0_all[0], c0_all[0], h0_all[1], c0_all[1],
        params["whh0_t"], params["w1cat_t"], params["b1"],
        params["wfc_p"], params["bfc_p"])

    # sig_out.view(B, -1)[:, -1] with output_size=1 == sigmoid(fc(lstm_out[:, -1, :]))
    sig_out = sig_p[:, 0]                                      # (B,)
    hidden_out = (jnp.stack([h0T, h1T], axis=0),
                  jnp.stack([c0T, c1T], axis=0))
    return sig_out, hidden_out


# ------------------------------ Parameter init / prep ------------------------------
def init_params(key, vocab_size, embedding_dim, hidden_dim, n_layers, output_size):
    """Raw PyTorch-layout parameters (rows of W in i,f,g,o gate order)."""
    params = {}
    k = key
    k, sub = jax.random.split(k)
    params["embedding"] = jax.random.normal(sub, (vocab_size, embedding_dim),
                                            jnp.float32) * 0.1
    bound = 1.0 / jnp.sqrt(hidden_dim)
    for l in range(n_layers):
        in_dim = embedding_dim if l == 0 else hidden_dim
        k, k1, k2, k3, k4 = jax.random.split(k, 5)
        params[f"w_ih_l{l}"] = jax.random.uniform(
            k1, (4 * hidden_dim, in_dim), jnp.float32, -bound, bound)
        params[f"w_hh_l{l}"] = jax.random.uniform(
            k2, (4 * hidden_dim, hidden_dim), jnp.float32, -bound, bound)
        params[f"b_ih_l{l}"] = jax.random.uniform(
            k3, (4 * hidden_dim,), jnp.float32, -bound, bound)
        params[f"b_hh_l{l}"] = jax.random.uniform(
            k4, (4 * hidden_dim,), jnp.float32, -bound, bound)
    k, k1, k2 = jax.random.split(k, 3)
    fc_bound = 1.0 / jnp.sqrt(hidden_dim)
    params["w_fc"] = jax.random.uniform(
        k1, (output_size, hidden_dim), jnp.float32, -fc_bound, fc_bound)
    params["b_fc"] = jax.random.uniform(
        k2, (output_size,), jnp.float32, -fc_bound, fc_bound)
    return params


def prepare_inference_params(raw, fc_lane_pad=128):
    """One-time offline prep: gate reorder (i,f,g,o -> i,f,o,g), transpose,
    layer-1 weight concat, bf16 weight cast, lane-padded fc."""
    def reorder(w):  # axis-0 gate blocks i,f,g,o -> i,f,o,g
        i, f, g, o = jnp.split(w, 4, axis=0)
        return jnp.concatenate([i, f, o, g], axis=0)

    p = {"embedding": raw["embedding"]}
    # Layer 0 (input projection hoisted; recurrent Whh stays in the kernel).
    p["wih0_t"] = jnp.transpose(reorder(raw["w_ih_l0"])).astype(jnp.bfloat16)  # (E, 4H)
    p["whh0_t"] = jnp.transpose(reorder(raw["w_hh_l0"])).astype(jnp.bfloat16)  # (H, 4H)
    p["b0"] = reorder(raw["b_ih_l0"] + raw["b_hh_l0"]).reshape(1, -1)          # (1, 4H) f32
    # Layer 1: concatenated [Wih1^T; Whh1^T] so the per-step gates are one matmul.
    wih1_t = jnp.transpose(reorder(raw["w_ih_l1"]))                            # (H, 4H)
    whh1_t = jnp.transpose(reorder(raw["w_hh_l1"]))                            # (H, 4H)
    p["w1cat_t"] = jnp.concatenate([wih1_t, whh1_t], axis=0).astype(jnp.bfloat16)  # (2H, 4H)
    p["b1"] = reorder(raw["b_ih_l1"] + raw["b_hh_l1"]).reshape(1, -1)          # (1, 4H) f32
    # fc padded to a lane-dense (H, 128) so the epilogue store is unmasked.
    O = raw["w_fc"].shape[0]
    wfc_t = jnp.transpose(raw["w_fc"])                                         # (H, O)
    p["wfc_p"] = jnp.pad(wfc_t, ((0, 0), (0, fc_lane_pad - O))).astype(jnp.bfloat16)
    p["bfc_p"] = jnp.pad(raw["b_fc"], (0, fc_lane_pad - O)).reshape(1, fc_lane_pad)
    return p


if __name__ == "__main__":
    # Small, TPU-tile-friendly shapes consistent with the module.
    B, T = 8, 8
    VOCAB = 64
    EMBED = 128
    HIDDEN = 128
    N_LAYERS = 2
    OUTPUT_SIZE = 1

    key = jax.random.PRNGKey(0)
    key, pkey, xkey = jax.random.split(key, 3)

    raw_params = init_params(pkey, VOCAB, EMBED, HIDDEN, N_LAYERS, OUTPUT_SIZE)
    params = prepare_inference_params(raw_params)
    x_tokens = jax.random.randint(xkey, (B, T), 0, VOCAB, dtype=jnp.int32)

    # init_hidden: zeros of shape (n_layers, B, hidden_dim)
    hidden0 = (jnp.zeros((N_LAYERS, B, HIDDEN), jnp.float32),
               jnp.zeros((N_LAYERS, B, HIDDEN), jnp.float32))

    fwd = jax.jit(functools.partial(sentiment_rnn_forward, params))
    sig_out, hidden = fwd(x_tokens, hidden0)
    jax.block_until_ready((sig_out, hidden))

    assert sig_out.shape == (B,)
    assert hidden[0].shape == (N_LAYERS, B, HIDDEN)
    assert hidden[1].shape == (N_LAYERS, B, HIDDEN)
    assert bool(jnp.all(jnp.isfinite(sig_out)))
    print("KERNEL_OK")
</pallas_src>

<mosaic_0001>
module attributes {stable_mosaic.version = 11 : i64} {
  func.func @input_proj_kernel(%arg0: i32, %arg1: memref<64x128xbf16, #tpu.memory_space<vmem>>, %arg2: memref<128x512xbf16, #tpu.memory_space<vmem>>, %arg3: memref<1x512xf32, #tpu.memory_space<vmem>>, %arg4: memref<64x512xf32, #tpu.memory_space<vmem>>) attributes {dimension_semantics = [#tpu.dimension_semantics<parallel>], iteration_bounds = array<i64: 1>, scalar_prefetch = 0 : i64, scratch_operands = 0 : i64, tpu.core_type = #tpu.core_type<tc>, window_params = [{transform_indices = @transform_0, window_bounds = array<i64: 64, 128>}, {pipeline_mode = #tpu.pipeline_mode<synchronous>, transform_indices = @transform_1, window_bounds = array<i64: 128, 512>}, {pipeline_mode = #tpu.pipeline_mode<synchronous>, transform_indices = @transform_2, window_bounds = array<i64: 1, 512>}, {transform_indices = @transform_3, window_bounds = array<i64: 64, 512>}]} {
    %c0 = arith.constant 0 : index
    %c0_0 = arith.constant 0 : index
    %0 = vector.load %arg1[%c0, %c0_0] : memref<64x128xbf16, #tpu.memory_space<vmem>>, vector<64x128xbf16>
    %c0_1 = arith.constant 0 : index
    %c0_2 = arith.constant 0 : index
    %1 = vector.load %arg2[%c0_1, %c0_2] : memref<128x512xbf16, #tpu.memory_space<vmem>>, vector<128x512xbf16>
    %cst = arith.constant dense<0.000000e+00> : vector<64x512xf32>
    %2 = tpu.matmul %0, %1, %cst {dimension_numbers = #tpu.dot_dimension_numbers<[1], [0], [0], [1], [0, 0, 1, 1], [], []>} : vector<64x128xbf16>, vector<128x512xbf16>, vector<64x512xf32> -> vector<64x512xf32>
    %c0_3 = arith.constant 0 : index
    %c0_4 = arith.constant 0 : index
    %3 = vector.load %arg3[%c0_3, %c0_4] : memref<1x512xf32, #tpu.memory_space<vmem>>, vector<1x512xf32>
    %4 = vector.broadcast %3 : vector<1x512xf32> to vector<64x512xf32>
    %5 = arith.addf %2, %4 : vector<64x512xf32>
    %c0_5 = arith.constant 0 : index
    %c0_6 = arith.constant 0 : index
    %6 = vector.load %arg4[%c0_5, %c0_6] : memref<64x512xf32, #tpu.memory_space<vmem>>, vector<64x512xf32>
    tpu.vector_store %arg4[%c0_5, %c0_6], %5 {strides = array<i32>} : memref<64x512xf32, #tpu.memory_space<vmem>>, vector<64x512xf32>,
    return
  }
  func.func @transform_0(%arg0: i32) -> (i32, i32) {
    %c0_i32 = arith.constant 0 : i32
    %c0_i32_0 = arith.constant 0 : i32
    return %arg0, %c0_i32 : i32, i32
  }
  func.func @transform_1(%arg0: i32) -> (i32, i32) {
    %c0_i32 = arith.constant 0 : i32
    %c0_i32_0 = arith.constant 0 : i32
    %c0_i32_1 = arith.constant 0 : i32
    return %c0_i32, %c0_i32_0 : i32, i32
  }
  func.func @transform_2(%arg0: i32) -> (i32, i32) {
    %c0_i32 = arith.constant 0 : i32
    %c0_i32_0 = arith.constant 0 : i32
    %c0_i32_1 = arith.constant 0 : i32
    return %c0_i32, %c0_i32_0 : i32, i32
  }
  func.func @transform_3(%arg0: i32) -> (i32, i32) {
    %c0_i32 = arith.constant 0 : i32
    %c0_i32_0 = arith.constant 0 : i32
    return %arg0, %c0_i32 : i32, i32
  }
}

module attributes {stable_mosaic.version = 11 : i64} {
  func.func @fused_lstm2_fc_kernel(%arg0: i32, %arg1: memref<8x8x512xf32, #tpu.memory_space<vmem>>, %arg2: memref<8x128xf32, #tpu.memory_space<vmem>>, %arg3: memref<8x128xf32, #tpu.memory_space<vmem>>, %arg4: memref<8x128xf32, #tpu.memory_space<vmem>>, %arg5: memref<8x128xf32, #tpu.memory_space<vmem>>, %arg6: memref<128x512xbf16, #tpu.memory_space<vmem>>, %arg7: memref<256x512xbf16, #tpu.memory_space<vmem>>, %arg8: memref<1x512xf32, #tpu.memory_space<vmem>>, %arg9: memref<128x128xbf16, #tpu.memory_space<vmem>>, %arg10: memref<1x128xf32, #tpu.memory_space<vmem>>, %arg11: memref<8x128xf32, #tpu.memory_space<vmem>>, %arg12: memref<8x128xf32, #tpu.memory_space<vmem>>, %arg13: memref<8x128xf32, #tpu.memory_space<vmem>>, %arg14: memref<8x128xf32, #tpu.memory_space<vmem>>, %arg15: memref<8x128xf32, #tpu.memory_space<vmem>>, %arg16: memref<8x128xf32, #tpu.memory_space<vmem>>, %arg17: memref<8x128xf32, #tpu.memory_space<vmem>>, %arg18: memref<8x128xf32, #tpu.memory_space<vmem>>, %arg19: memref<8x128xf32, #tpu.memory_space<vmem>>) attributes {dimension_semantics = [#tpu.dimension_semantics<arbitrary>], iteration_bounds = array<i64: 1>, scalar_prefetch = 0 : i64, scratch_operands = 4 : i64, tpu.core_type = #tpu.core_type<tc>, window_params = [{transform_indices = @transform_0, window_bounds = array<i64: 8, 8, 512>}, {pipeline_mode = #tpu.pipeline_mode<synchronous>, transform_indices = @transform_1, window_bounds = array<i64: 8, 128>}, {pipeline_mode = #tpu.pipeline_mode<synchronous>, transform_indices = @transform_2, window_bounds = array<i64: 8, 128>}, {pipeline_mode = #tpu.pipeline_mode<synchronous>, transform_indices = @transform_3, window_bounds = array<i64: 8, 128>}, {pipeline_mode = #tpu.pipeline_mode<synchronous>, transform_indices = @transform_4, window_bounds = array<i64: 8, 128>}, {pipeline_mode = #tpu.pipeline_mode<synchronous>, transform_indices = @transform_5, window_bounds = array<i64: 128, 512>}, {pipeline_mode = #tpu.pipeline_mode<synchronous>, transform_indices = @transform_6, window_bounds = array<i64: 256, 512>}, {pipeline_mode = #tpu.pipeline_mode<synchronous>, transform_indices = @transform_7, window_bounds = array<i64: 1, 512>}, {pipeline_mode = #tpu.pipeline_mode<synchronous>, transform_indices = @transform_8, window_bounds = array<i64: 128, 128>}, {pipeline_mode = #tpu.pipeline_mode<synchronous>, transform_indices = @transform_9, window_bounds = array<i64: 1, 128>}, {pipeline_mode = #tpu.pipeline_mode<synchronous>, transform_indices = @transform_10, window_bounds = array<i64: 8, 128>}, {pipeline_mode = #tpu.pipeline_mode<synchronous>, transform_indices = @transform_11, window_bounds = array<i64: 8, 128>}, {pipeline_mode = #tpu.pipeline_mode<synchronous>, transform_indices = @transform_12, window_bounds = array<i64: 8, 128>}, {pipeline_mode = #tpu.pipeline_mode<synchronous>, transform_indices = @transform_13, window_bounds = array<i64: 8, 128>}, {pipeline_mode = #tpu.pipeline_mode<synchronous>, transform_indices = @transform_14, window_bounds = array<i64: 8, 128>}]} {
    %c0_i32 = arith.constant 0 : i32
    %0 = arith.cmpi eq, %arg0, %c0_i32 : i32
    %1 = arith.extui %0 : i1 to i32
    %c0_i32_0 = arith.constant 0 : i32
    %2 = arith.cmpi ne, %1, %c0_i32_0 : i32
    scf.if %2 {
      %c0_80 = arith.constant 0 : index
      %c0_81 = arith.constant 0 : index
      %365 = vector.load %arg2[%c0_80, %c0_81] : memref<8x128xf32, #tpu.memory_space<vmem>>, vector<8x128xf32>
      %c0_82 = arith.constant 0 : index
      %c0_83 = arith.constant 0 : index
      %366 = vector.load %arg16[%c0_82, %c0_83] : memref<8x128xf32, #tpu.memory_space<vmem>>, vector<8x128xf32>
      tpu.vector_store %arg16[%c0_82, %c0_83], %365 {strides = array<i32>} : memref<8x128xf32, #tpu.memory_space<vmem>>, vector<8x128xf32>,
      %c0_84 = arith.constant 0 : index
      %c0_85 = arith.constant 0 : index
      %367 = vector.load %arg3[%c0_84, %c0_85] : memref<8x128xf32, #tpu.memory_space<vmem>>, vector<8x128xf32>
      %c0_86 = arith.constant 0 : index
      %c0_87 = arith.constant 0 : index
      %368 = vector.load %arg17[%c0_86, %c0_87] : memref<8x128xf32, #tpu.memory_space<vmem>>, vector<8x128xf32>
      tpu.vector_store %arg17[%c0_86, %c0_87], %367 {strides = array<i32>} : memref<8x128xf32, #tpu.memory_space<vmem>>, vector<8x128xf32>,
      %c0_88 = arith.constant 0 : index
      %c0_89 = arith.constant 0 : index
      %369 = vector.load %arg4[%c0_88, %c0_89] : memref<8x128xf32, #tpu.memory_space<vmem>>, vector<8x128xf32>
      %c0_90 = arith.constant 0 : index
      %c0_91 = arith.constant 0 : index
      %370 = vector.load %arg18[%c0_90, %c0_91] : memref<8x128xf32, #tpu.memory_space<vmem>>, vector<8x128xf32>
      tpu.vector_store %arg18[%c0_90, %c0_91], %369 {strides = array<i32>} : memref<8x128xf32, #tpu.memory_space<vmem>>, vector<8x128xf32>,
      %c0_92 = arith.constant 0 : index
      %c0_93 = arith.constant 0 : index
      %371 = vector.load %arg5[%c0_92, %c0_93] : memref<8x128xf32, #tpu.memory_space<vmem>>, vector<8x128xf32>
      %c0_94 = arith.constant 0 : index
      %c0_95 = arith.constant 0 : index
      %372 = vector.load %arg19[%c0_94, %c0_95] : memref<8x128xf32, #tpu.memory_space<vmem>>, vector<8x128xf32>
      tpu.vector_store %arg19[%c0_94, %c0_95], %371 {strides = array<i32>} : memref<8x128xf32, #tpu.memory_space<vmem>>, vector<8x128xf32>,
    } else {
    }
    %c0 = arith.constant 0 : index
    %c0_1 = arith.constant 0 : index
    %3 = vector.load %arg6[%c0, %c0_1] : memref<128x512xbf16, #tpu.memory_space<vmem>>, vector<128x512xbf16>
    %c0_2 = arith.constant 0 : index
    %c0_3 = arith.constant 0 : index
    %4 = vector.load %arg7[%c0_2, %c0_3] : memref<256x512xbf16, #tpu.memory_space<vmem>>, vector<256x512xbf16>
    %c0_4 = arith.constant 0 : index
    %c0_5 = arith.constant 0 : index
    %5 = vector.load %arg8[%c0_4, %c0_5] : memref<1x512xf32, #tpu.memory_space<vmem>>, vector<1x512xf32>
    %c0_6 = arith.constant 0 : index
    %c0_7 = arith.constant 0 : index
    %6 = vector.load %arg16[%c0_6, %c0_7] : memref<8x128xf32, #tpu.memory_space<vmem>>, vector<8x128xf32>
    %c0_8 = arith.constant 0 : index
    %c0_9 = arith.constant 0 : index
    %7 = vector.load %arg17[%c0_8, %c0_9] : memref<8x128xf32, #tpu.memory_space<vmem>>, vector<8x128xf32>
    %c0_10 = arith.constant 0 : index
    %c0_11 = arith.constant 0 : index
    %8 = vector.load %arg18[%c0_10, %c0_11] : memref<8x128xf32, #tpu.memory_space<vmem>>, vector<8x128xf32>
    %c0_12 = arith.constant 0 : index
    %c0_13 = arith.constant 0 : index
    %9 = vector.load %arg19[%c0_12, %c0_13] : memref<8x128xf32, #tpu.memory_space<vmem>>, vector<8x128xf32>
    %c0_i32_14 = arith.constant 0 : i32
    %10 = arith.index_cast %c0_i32_14 : i32 to index
    %c0_15 = arith.constant 0 : index
    %c0_16 = arith.constant 0 : index
    %11 = vector.load %arg1[%10, %c0_15, %c0_16] : memref<8x8x512xf32, #tpu.memory_space<vmem>>, vector<1x8x512xf32>
    %12 = vector.shape_cast %11 : vector<1x8x512xf32> to vector<8x512xf32>
    %13 = arith.truncf %6 : vector<8x128xf32> to vector<8x128xbf16>
    %cst = arith.constant dense<0.000000e+00> : vector<8x512xf32>
    %14 = tpu.matmul %13, %3, %cst {dimension_numbers = #tpu.dot_dimension_numbers<[1], [0], [0], [1], [0, 0, 1, 1], [], []>} : vector<8x128xbf16>, vector<128x512xbf16>, vector<8x512xf32> -> vector<8x512xf32>
    %15 = arith.addf %12, %14 : vector<8x512xf32>
    %16 = vector.extract_strided_slice %15 {offsets = [0, 0], sizes = [8, 384], strides = [1, 1]} : vector<8x512xf32> to vector<8x384xf32>
    %17 = arith.negf %16 : vector<8x384xf32>
    %18 = math.exp %17 : vector<8x384xf32>
    %cst_17 = arith.constant 1.000000e+00 : f32
    %19 = vector.broadcast %cst_17 : f32 to vector<8x384xf32>
    %20 = arith.addf %19, %18 : vector<8x384xf32>
    %21 = arith.divf %19, %20 : vector<8x384xf32>
    %22 = vector.extract_strided_slice %15 {offsets = [0, 384], sizes = [8, 128], strides = [1, 1]} : vector<8x512xf32> to vector<8x128xf32>
    %23 = math.tanh %22 : vector<8x128xf32>
    %24 = vector.extract_strided_slice %21 {offsets = [0, 0], sizes = [8, 128], strides = [1, 1]} : vector<8x384xf32> to vector<8x128xf32>
    %25 = vector.extract_strided_slice %21 {offsets = [0, 128], sizes = [8, 128], strides = [1, 1]} : vector<8x384xf32> to vector<8x128xf32>
    %26 = vector.extract_strided_slice %21 {offsets = [0, 256], sizes = [8, 128], strides = [1, 1]} : vector<8x384xf32> to vector<8x128xf32>
    %27 = arith.mulf %25, %7 : vector<8x128xf32>
    %28 = arith.mulf %24, %23 : vector<8x128xf32>
    %29 = arith.addf %27, %28 : vector<8x128xf32>
    %30 = math.tanh %29 : vector<8x128xf32>
    %31 = arith.mulf %26, %30 : vector<8x128xf32>
    %32 = tpu.concatenate %31, %8 in 1 : vector<8x128xf32>, vector<8x128xf32> -> vector<8x256xf32>
    %33 = arith.truncf %32 : vector<8x256xf32> to vector<8x256xbf16>
    %cst_18 = arith.constant dense<0.000000e+00> : vector<8x512xf32>
    %34 = tpu.matmul %33, %4, %cst_18 {dimension_numbers = #tpu.dot_dimension_numbers<[1], [0], [0], [1], [0, 0, 1, 1], [], []>} : vector<8x256xbf16>, vector<256x512xbf16>, vector<8x512xf32> -> vector<8x512xf32>
    %35 = vector.broadcast %5 : vector<1x512xf32> to vector<8x512xf32>
    %36 = arith.addf %34, %35 : vector<8x512xf32>
    %37 = vector.extract_strided_slice %36 {offsets = [0, 0], sizes = [8, 384], strides = [1, 1]} : vector<8x512xf32> to vector<8x384xf32>
    %38 = arith.negf %37 : vector<8x384xf32>
    %39 = math.exp %38 : vector<8x384xf32>
    %cst_19 = arith.constant 1.000000e+00 : f32
    %40 = vector.broadcast %cst_19 : f32 to vector<8x384xf32>
    %41 = arith.addf %40, %39 : vector<8x384xf32>
    %42 = arith.divf %40, %41 : vector<8x384xf32>
    %43 = vector.extract_strided_slice %36 {offsets = [0, 384], sizes = [8, 128], strides = [1, 1]} : vector<8x512xf32> to vector<8x128xf32>
    %44 = math.tanh %43 : vector<8x128xf32>
    %45 = vector.extract_strided_slice %42 {offsets = [0, 0], sizes = [8, 128], strides = [1, 1]} : vector<8x384xf32> to vector<8x128xf32>
    %46 = vector.extract_strided_slice %42 {offsets = [0, 128], sizes = [8, 128], strides = [1, 1]} : vector<8x384xf32> to vector<8x128xf32>
    %47 = vector.extract_strided_slice %42 {offsets = [0, 256], sizes = [8, 128], strides = [1, 1]} : vector<8x384xf32> to vector<8x128xf32>
    %48 = arith.mulf %46, %9 : vector<8x128xf32>
    %49 = arith.mulf %45, %44 : vector<8x128xf32>
    %50 = arith.addf %48, %49 : vector<8x128xf32>
    %51 = math.tanh %50 : vector<8x128xf32>
    %52 = arith.mulf %47, %51 : vector<8x128xf32>
    %c1_i32 = arith.constant 1 : i32
    %53 = arith.index_cast %c1_i32 : i32 to index
    %c0_20 = arith.constant 0 : index
    %c0_21 = arith.constant 0 : index
    %54 = vector.load %arg1[%53, %c0_20, %c0_21] : memref<8x8x512xf32, #tpu.memory_space<vmem>>, vector<1x8x512xf32>
    %55 = vector.shape_cast %54 : vector<1x8x512xf32> to vector<8x512xf32>
    %56 = arith.truncf %31 : vector<8x128xf32> to vector<8x128xbf16>
    %cst_22 = arith.constant dense<0.000000e+00> : vector<8x512xf32>
    %57 = tpu.matmul %56, %3, %cst_22 {dimension_numbers = #tpu.dot_dimension_numbers<[1], [0], [0], [1], [0, 0, 1, 1], [], []>} : vector<8x128xbf16>, vector<128x512xbf16>, vector<8x512xf32> -> vector<8x512xf32>
    %58 = arith.addf %55, %57 : vector<8x512xf32>
    %59 = vector.extract_strided_slice %58 {offsets = [0, 0], sizes = [8, 384], strides = [1, 1]} : vector<8x512xf32> to vector<8x384xf32>
    %60 = arith.negf %59 : vector<8x384xf32>
    %61 = math.exp %60 : vector<8x384xf32>
    %cst_23 = arith.constant 1.000000e+00 : f32
    %62 = vector.broadcast %cst_23 : f32 to vector<8x384xf32>
    %63 = arith.addf %62, %61 : vector<8x384xf32>
    %64 = arith.divf %62, %63 : vector<8x384xf32>
    %65 = vector.extract_strided_slice %58 {offsets = [0, 384], sizes = [8, 128], strides = [1, 1]} : vector<8x512xf32> to vector<8x128xf32>
    %66 = math.tanh %65 : vector<8x128xf32>
    %67 = vector.extract_strided_slice %64 {offsets = [0, 0], sizes = [8, 128], strides = [1, 1]} : vector<8x384xf32> to vector<8x128xf32>
    %68 = vector.extract_strided_slice %64 {offsets = [0, 128], sizes = [8, 128], strides = [1, 1]} : vector<8x384xf32> to vector<8x128xf32>
    %69 = vector.extract_strided_slice %64 {offsets = [0, 256], sizes = [8, 128], strides = [1, 1]} : vector<8x384xf32> to vector<8x128xf32>
    %70 = arith.mulf %68, %29 : vector<8x128xf32>
    %71 = arith.mulf %67, %66 : vector<8x128xf32>
    %72 = arith.addf %70, %71 : vector<8x128xf32>
    %73 = math.tanh %72 : vector<8x128xf32>
    %74 = arith.mulf %69, %73 : vector<8x128xf32>
    %75 = tpu.concatenate %74, %52 in 1 : vector<8x128xf32>, vector<8x128xf32> -> vector<8x256xf32>
    %76 = arith.truncf %75 : vector<8x256xf32> to vector<8x256xbf16>
    %cst_24 = arith.constant dense<0.000000e+00> : vector<8x512xf32>
    %77 = tpu.matmul %76, %4, %cst_24 {dimension_numbers = #tpu.dot_dimension_numbers<[1], [0], [0], [1], [0, 0, 1, 1], [], []>} : vector<8x256xbf16>, vector<256x512xbf16>, vector<8x512xf32> -> vector<8x512xf32>
    %78 = vector.broadcast %5 : vector<1x512xf32> to vector<8x512xf32>
    %79 = arith.addf %77, %78 : vector<8x512xf32>
    %80 = vector.extract_strided_slice %79 {offsets = [0, 0], sizes = [8, 384], strides = [1, 1]} : vector<8x512xf32> to vector<8x384xf32>
    %81 = arith.negf %80 : vector<8x384xf32>
    %82 = math.exp %81 : vector<8x384xf32>
    %cst_25 = arith.constant 1.000000e+00 : f32
    %83 = vector.broadcast %cst_25 : f32 to vector<8x384xf32>
    %84 = arith.addf %83, %82 : vector<8x384xf32>
    %85 = arith.divf %83, %84 : vector<8x384xf32>
    %86 = vector.extract_strided_slice %79 {offsets = [0, 384], sizes = [8, 128], strides = [1, 1]} : vector<8x512xf32> to vector<8x128xf32>
    %87 = math.tanh %86 : vector<8x128xf32>
    %88 = vector.extract_strided_slice %85 {offsets = [0, 0], sizes = [8, 128], strides = [1, 1]} : vector<8x384xf32> to vector<8x128xf32>
    %89 = vector.extract_strided_slice %85 {offsets = [0, 128], sizes = [8, 128], strides = [1, 1]} : vector<8x384xf32> to vector<8x128xf32>
    %90 = vector.extract_strided_slice %85 {offsets = [0, 256], sizes = [8, 128], strides = [1, 1]} : vector<8x384xf32> to vector<8x128xf32>
    %91 = arith.mulf %89, %50 : vector<8x128xf32>
    %92 = arith.mulf %88, %87 : vector<8x128xf32>
    %93 = arith.addf %91, %92 : vector<8x128xf32>
    %94 = math.tanh %93 : vector<8x128xf32>
    %95 = arith.mulf %90, %94 : vector<8x128xf32>
    %c2_i32 = arith.constant 2 : i32
    %96 = arith.index_cast %c2_i32 : i32 to index
    %c0_26 = arith.constant 0 : index
    %c0_27 = arith.constant 0 : index
    %97 = vector.load %arg1[%96, %c0_26, %c0_27] : memref<8x8x512xf32, #tpu.memory_space<vmem>>, vector<1x8x512xf32>
    %98 = vector.shape_cast %97 : vector<1x8x512xf32> to vector<8x512xf32>
    %99 = arith.truncf %74 : vector<8x128xf32> to vector<8x128xbf16>
    %cst_28 = arith.constant dense<0.000000e+00> : vector<8x512xf32>
    %100 = tpu.matmul %99, %3, %cst_28 {dimension_numbers = #tpu.dot_dimension_numbers<[1], [0], [0], [1], [0, 0, 1, 1], [], []>} : vector<8x128xbf16>, vector<128x512xbf16>, vector<8x512xf32> -> vector<8x512xf32>
    %101 = arith.addf %98, %100 : vector<8x512xf32>
    %102 = vector.extract_strided_slice %101 {offsets = [0, 0], sizes = [8, 384], strides = [1, 1]} : vector<8x512xf32> to vector<8x384xf32>
    %103 = arith.negf %102 : vector<8x384xf32>
    %104 = math.exp %103 : vector<8x384xf32>
    %cst_29 = arith.constant 1.000000e+00 : f32
    %105 = vector.broadcast %cst_29 : f32 to vector<8x384xf32>
    %106 = arith.addf %105, %104 : vector<8x384xf32>
    %107 = arith.divf %105, %106 : vector<8x384xf32>
    %108 = vector.extract_strided_slice %101 {offsets = [0, 384], sizes = [8, 128], strides = [1, 1]} : vector<8x512xf32> to vector<8x128xf32>
    %109 = math.tanh %108 : vector<8x128xf32>
    %110 = vector.extract_strided_slice %107 {offsets = [0, 0], sizes = [8, 128], strides = [1, 1]} : vector<8x384xf32> to vector<8x128xf32>
    %111 = vector.extract_strided_slice %107 {offsets = [0, 128], sizes = [8, 128], strides = [1, 1]} : vector<8x384xf32> to vector<8x128xf32>
    %112 = vector.extract_strided_slice %107 {offsets = [0, 256], sizes = [8, 128], strides = [1, 1]} : vector<8x384xf32> to vector<8x128xf32>
    %113 = arith.mulf %111, %72 : vector<8x128xf32>
    %114 = arith.mulf %110, %109 : vector<8x128xf32>
    %115 = arith.addf %113, %114 : vector<8x128xf32>
    %116 = math.tanh %115 : vector<8x128xf32>
    %117 = arith.mulf %112, %116 : vector<8x128xf32>
    %118 = tpu.concatenate %117, %95 in 1 : vector<8x128xf32>, vector<8x128xf32> -> vector<8x256xf32>
    %119 = arith.truncf %118 : vector<8x256xf32> to vector<8x256xbf16>
    %cst_30 = arith.constant dense<0.000000e+00> : vector<8x512xf32>
    %120 = tpu.matmul %119, %4, %cst_30 {dimension_numbers = #tpu.dot_dimension_numbers<[1], [0], [0], [1], [0, 0, 1, 1], [], []>} : vector<8x256xbf16>, vector<256x512xbf16>, vector<8x512xf32> -> vector<8x512xf32>
    %121 = vector.broadcast %5 : vector<1x512xf32> to vector<8x512xf32>
    %122 = arith.addf %120, %121 : vector<8x512xf32>
    %123 = vector.extract_strided_slice %122 {offsets = [0, 0], sizes = [8, 384], strides = [1, 1]} : vector<8x512xf32> to vector<8x384xf32>
    %124 = arith.negf %123 : vector<8x384xf32>
    %125 = math.exp %124 : vector<8x384xf32>
    %cst_31 = arith.constant 1.000000e+00 : f32
    %126 = vector.broadcast %cst_31 : f32 to vector<8x384xf32>
    %127 = arith.addf %126, %125 : vector<8x384xf32>
    %128 = arith.divf %126, %127 : vector<8x384xf32>
    %129 = vector.extract_strided_slice %122 {offsets = [0, 384], sizes = [8, 128], strides = [1, 1]} : vector<8x512xf32> to vector<8x128xf32>
    %130 = math.tanh %129 : vector<8x128xf32>
    %131 = vector.extract_strided_slice %128 {offsets = [0, 0], sizes = [8, 128], strides = [1, 1]} : vector<8x384xf32> to vector<8x128xf32>
    %132 = vector.extract_strided_slice %128 {offsets = [0, 128], sizes = [8, 128], strides = [1, 1]} : vector<8x384xf32> to vector<8x128xf32>
    %133 = vector.extract_strided_slice %128 {offsets = [0, 256], sizes = [8, 128], strides = [1, 1]} : vector<8x384xf32> to vector<8x128xf32>
    %134 = arith.mulf %132, %93 : vector<8x128xf32>
    %135 = arith.mulf %131, %130 : vector<8x128xf32>
    %136 = arith.addf %134, %135 : vector<8x128xf32>
    %137 = math.tanh %136 : vector<8x128xf32>
    %138 = arith.mulf %133, %137 : vector<8x128xf32>
    %c3_i32 = arith.constant 3 : i32
    %139 = arith.index_cast %c3_i32 : i32 to index
    %c0_32 = arith.constant 0 : index
    %c0_33 = arith.constant 0 : index
    %140 = vector.load %arg1[%139, %c0_32, %c0_33] : memref<8x8x512xf32, #tpu.memory_space<vmem>>, vector<1x8x512xf32>
    %141 = vector.shape_cast %140 : vector<1x8x512xf32> to vector<8x512xf32>
    %142 = arith.truncf %117 : vector<8x128xf32> to vector<8x128xbf16>
    %cst_34 = arith.constant dense<0.000000e+00> : vector<8x512xf32>
    %143 = tpu.matmul %142, %3, %cst_34 {dimension_numbers = #tpu.dot_dimension_numbers<[1], [0], [0], [1], [0, 0, 1, 1], [], []>} : vector<8x128xbf16>, vector<128x512xbf16>, vector<8x512xf32> -> vector<8x512xf32>
    %144 = arith.addf %141, %143 : vector<8x512xf32>
    %145 = vector.extract_strided_slice %144 {offsets = [0, 0], sizes = [8, 384], strides = [1, 1]} : vector<8x512xf32> to vector<8x384xf32>
    %146 = arith.negf %145 : vector<8x384xf32>
    %147 = math.exp %146 : vector<8x384xf32>
    %cst_35 = arith.constant 1.000000e+00 : f32
    %148 = vector.broadcast %cst_35 : f32 to vector<8x384xf32>
    %149 = arith.addf %148, %147 : vector<8x384xf32>
    %150 = arith.divf %148, %149 : vector<8x384xf32>
    %151 = vector.extract_strided_slice %144 {offsets = [0, 384], sizes = [8, 128], strides = [1, 1]} : vector<8x512xf32> to vector<8x128xf32>
    %152 = math.tanh %151 : vector<8x128xf32>
    %153 = vector.extract_strided_slice %150 {offsets = [0, 0], sizes = [8, 128], strides = [1, 1]} : vector<8x384xf32> to vector<8x128xf32>
    %154 = vector.extract_strided_slice %150 {offsets = [0, 128], sizes = [8, 128], strides = [1, 1]} : vector<8x384xf32> to vector<8x128xf32>
    %155 = vector.extract_strided_slice %150 {offsets = [0, 256], sizes = [8, 128], strides = [1, 1]} : vector<8x384xf32> to vector<8x128xf32>
    %156 = arith.mulf %154, %115 : vector<8x128xf32>
    %157 = arith.mulf %153, %152 : vector<8x128xf32>
    %158 = arith.addf %156, %157 : vector<8x128xf32>
    %159 = math.tanh %158 : vector<8x128xf32>
    %160 = arith.mulf %155, %159 : vector<8x128xf32>
    %161 = tpu.concatenate %160, %138 in 1 : vector<8x128xf32>, vector<8x128xf32> -> vector<8x256xf32>
    %162 = arith.truncf %161 : vector<8x256xf32> to vector<8x256xbf16>
    %cst_36 = arith.constant dense<0.000000e+00> : vector<8x512xf32>
    %163 = tpu.matmul %162, %4, %cst_36 {dimension_numbers = #tpu.dot_dimension_numbers<[1], [0], [0], [1], [0, 0, 1, 1], [], []>} : vector<8x256xbf16>, vector<256x512xbf16>, vector<8x512xf32> -> vector<8x512xf32>
    %164 = vector.broadcast %5 : vector<1x512xf32> to vector<8x512xf32>
    %165 = arith.addf %163, %164 : vector<8x512xf32>
    %166 = vector.extract_strided_slice %165 {offsets = [0, 0], sizes = [8, 384], strides = [1, 1]} : vector<8x512xf32> to vector<8x384xf32>
    %167 = arith.negf %166 : vector<8x384xf32>
    %168 = math.exp %167 : vector<8x384xf32>
    %cst_37 = arith.constant 1.000000e+00 : f32
    %169 = vector.broadcast %cst_37 : f32 to vector<8x384xf32>
    %170 = arith.addf %169, %168 : vector<8x384xf32>
    %171 = arith.divf %169, %170 : vector<8x384xf32>
    %172 = vector.extract_strided_slice %165 {offsets = [0, 384], sizes = [8, 128], strides = [1, 1]} : vector<8x512xf32> to vector<8x128xf32>
    %173 = math.tanh %172 : vector<8x128xf32>
    %174 = vector.extract_strided_slice %171 {offsets = [0, 0], sizes = [8, 128], strides = [1, 1]} : vector<8x384xf32> to vector<8x128xf32>
    %175 = vector.extract_strided_slice %171 {offsets = [0, 128], sizes = [8, 128], strides = [1, 1]} : vector<8x384xf32> to vector<8x128xf32>
    %176 = vector.extract_strided_slice %171 {offsets = [0, 256], sizes = [8, 128], strides = [1, 1]} : vector<8x384xf32> to vector<8x128xf32>
    %177 = arith.mulf %175, %136 : vector<8x128xf32>
    %178 = arith.mulf %174, %173 : vector<8x128xf32>
    %179 = arith.addf %177, %178 : vector<8x128xf32>
    %180 = math.tanh %179 : vector<8x128xf32>
    %181 = arith.mulf %176, %180 : vector<8x128xf32>
    %c4_i32 = arith.constant 4 : i32
    %182 = arith.index_cast %c4_i32 : i32 to index
    %c0_38 = arith.constant 0 : index
    %c0_39 = arith.constant 0 : index
    %183 = vector.load %arg1[%182, %c0_38, %c0_39] : memref<8x8x512xf32, #tpu.memory_space<vmem>>, vector<1x8x512xf32>
    %184 = vector.shape_cast %183 : vector<1x8x512xf32> to vector<8x512xf32>
    %185 = arith.truncf %160 : vector<8x128xf32> to vector<8x128xbf16>
    %cst_40 = arith.constant dense<0.000000e+00> : vector<8x512xf32>
    %186 = tpu.matmul %185, %3, %cst_40 {dimension_numbers = #tpu.dot_dimension_numbers<[1], [0], [0], [1], [0, 0, 1, 1], [], []>} : vector<8x128xbf16>, vector<128x512xbf16>, vector<8x512xf32> -> vector<8x512xf32>
    %187 = arith.addf %184, %186 : vector<8x512xf32>
    %188 = vector.extract_strided_slice %187 {offsets = [0, 0], sizes = [8, 384], strides = [1, 1]} : vector<8x512xf32> to vector<8x384xf32>
    %189 = arith.negf %188 : vector<8x384xf32>
    %190 = math.exp %189 : vector<8x384xf32>
    %cst_41 = arith.constant 1.000000e+00 : f32
    %191 = vector.broadcast %cst_41 : f32 to vector<8x384xf32>
    %192 = arith.addf %191, %190 : vector<8x384xf32>
    %193 = arith.divf %191, %192 : vector<8x384xf32>
    %194 = vector.extract_strided_slice %187 {offsets = [0, 384], sizes = [8, 128], strides = [1, 1]} : vector<8x512xf32> to vector<8x128xf32>
    %195 = math.tanh %194 : vector<8x128xf32>
    %196 = vector.extract_strided_slice %193 {offsets = [0, 0], sizes = [8, 128], strides = [1, 1]} : vector<8x384xf32> to vector<8x128xf32>
    %197 = vector.extract_strided_slice %193 {offsets = [0, 128], sizes = [8, 128], strides = [1, 1]} : vector<8x384xf32> to vector<8x128xf32>
    %198 = vector.extract_strided_slice %193 {offsets = [0, 256], sizes = [8, 128], strides = [1, 1]} : vector<8x384xf32> to vector<8x128xf32>
    %199 = arith.mulf %197, %158 : vector<8x128xf32>
    %200 = arith.mulf %196, %195 : vector<8x128xf32>
    %201 = arith.addf %199, %200 : vector<8x128xf32>
    %202 = math.tanh %201 : vector<8x128xf32>
    %203 = arith.mulf %198, %202 : vector<8x128xf32>
    %204 = tpu.concatenate %203, %181 in 1 : vector<8x128xf32>, vector<8x128xf32> -> vector<8x256xf32>
    %205 = arith.truncf %204 : vector<8x256xf32> to vector<8x256xbf16>
    %cst_42 = arith.constant dense<0.000000e+00> : vector<8x512xf32>
    %206 = tpu.matmul %205, %4, %cst_42 {dimension_numbers = #tpu.dot_dimension_numbers<[1], [0], [0], [1], [0, 0, 1, 1], [], []>} : vector<8x256xbf16>, vector<256x512xbf16>, vector<8x512xf32> -> vector<8x512xf32>
    %207 = vector.broadcast %5 : vector<1x512xf32> to vector<8x512xf32>
    %208 = arith.addf %206, %207 : vector<8x512xf32>
    %209 = vector.extract_strided_slice %208 {offsets = [0, 0], sizes = [8, 384], strides = [1, 1]} : vector<8x512xf32> to vector<8x384xf32>
    %210 = arith.negf %209 : vector<8x384xf32>
    %211 = math.exp %210 : vector<8x384xf32>
    %cst_43 = arith.constant 1.000000e+00 : f32
    %212 = vector.broadcast %cst_43 : f32 to vector<8x384xf32>
    %213 = arith.addf %212, %211 : vector<8x384xf32>
    %214 = arith.divf %212, %213 : vector<8x384xf32>
    %215 = vector.extract_strided_slice %208 {offsets = [0, 384], sizes = [8, 128], strides = [1, 1]} : vector<8x512xf32> to vector<8x128xf32>
    %216 = math.tanh %215 : vector<8x128xf32>
    %217 = vector.extract_strided_slice %214 {offsets = [0, 0], sizes = [8, 128], strides = [1, 1]} : vector<8x384xf32> to vector<8x128xf32>
    %218 = vector.extract_strided_slice %214 {offsets = [0, 128], sizes = [8, 128], strides = [1, 1]} : vector<8x384xf32> to vector<8x128xf32>
    %219 = vector.extract_strided_slice %214 {offsets = [0, 256], sizes = [8, 128], strides = [1, 1]} : vector<8x384xf32> to vector<8x128xf32>
    %220 = arith.mulf %218, %179 : vector<8x128xf32>
    %221 = arith.mulf %217, %216 : vector<8x128xf32>
    %222 = arith.addf %220, %221 : vector<8x128xf32>
    %223 = math.tanh %222 : vector<8x128xf32>
    %224 = arith.mulf %219, %223 : vector<8x128xf32>
    %c5_i32 = arith.constant 5 : i32
    %225 = arith.index_cast %c5_i32 : i32 to index
    %c0_44 = arith.constant 0 : index
    %c0_45 = arith.constant 0 : index
    %226 = vector.load %arg1[%225, %c0_44, %c0_45] : memref<8x8x512xf32, #tpu.memory_space<vmem>>, vector<1x8x512xf32>
    %227 = vector.shape_cast %226 : vector<1x8x512xf32> to vector<8x512xf32>
    %228 = arith.truncf %203 : vector<8x128xf32> to vector<8x128xbf16>
    %cst_46 = arith.constant dense<0.000000e+00> : vector<8x512xf32>
    %229 = tpu.matmul %228, %3, %cst_46 {dimension_numbers = #tpu.dot_dimension_numbers<[1], [0], [0], [1], [0, 0, 1, 1], [], []>} : vector<8x128xbf16>, vector<128x512xbf16>, vector<8x512xf32> -> vector<8x512xf32>
    %230 = arith.addf %227, %229 : vector<8x512xf32>
    %231 = vector.extract_strided_slice %230 {offsets = [0, 0], sizes = [8, 384], strides = [1, 1]} : vector<8x512xf32> to vector<8x384xf32>
    %232 = arith.negf %231 : vector<8x384xf32>
    %233 = math.exp %232 : vector<8x384xf32>
    %cst_47 = arith.constant 1.000000e+00 : f32
    %234 = vector.broadcast %cst_47 : f32 to vector<8x384xf32>
    %235 = arith.addf %234, %233 : vector<8x384xf32>
    %236 = arith.divf %234, %235 : vector<8x384xf32>
    %237 = vector.extract_strided_slice %230 {offsets = [0, 384], sizes = [8, 128], strides = [1, 1]} : vector<8x512xf32> to vector<8x128xf32>
    %238 = math.tanh %237 : vector<8x128xf32>
    %239 = vector.extract_strided_slice %236 {offsets = [0, 0], sizes = [8, 128], strides = [1, 1]} : vector<8x384xf32> to vector<8x128xf32>
    %240 = vector.extract_strided_slice %236 {offsets = [0, 128], sizes = [8, 128], strides = [1, 1]} : vector<8x384xf32> to vector<8x128xf32>
    %241 = vector.extract_strided_slice %236 {offsets = [0, 256], sizes = [8, 128], strides = [1, 1]} : vector<8x384xf32> to vector<8x128xf32>
    %242 = arith.mulf %240, %201 : vector<8x128xf32>
    %243 = arith.mulf %239, %238 : vector<8x128xf32>
    %244 = arith.addf %242, %243 : vector<8x128xf32>
    %245 = math.tanh %244 : vector<8x128xf32>
    %246 = arith.mulf %241, %245 : vector<8x128xf32>
    %247 = tpu.concatenate %246, %224 in 1 : vector<8x128xf32>, vector<8x128xf32> -> vector<8x256xf32>
    %248 = arith.truncf %247 : vector<8x256xf32> to vector<8x256xbf16>
    %cst_48 = arith.constant dense<0.000000e+00> : vector<8x512xf32>
    %249 = tpu.matmul %248, %4, %cst_48 {dimension_numbers = #tpu.dot_dimension_numbers<[1], [0], [0], [1], [0, 0, 1, 1], [], []>} : vector<8x256xbf16>, vector<256x512xbf16>, vector<8x512xf32> -> vector<8x512xf32>
    %250 = vector.broadcast %5 : vector<1x512xf32> to vector<8x512xf32>
    %251 = arith.addf %249, %250 : vector<8x512xf32>
    %252 = vector.extract_strided_slice %251 {offsets = [0, 0], sizes = [8, 384], strides = [1, 1]} : vector<8x512xf32> to vector<8x384xf32>
    %253 = arith.negf %252 : vector<8x384xf32>
    %254 = math.exp %253 : vector<8x384xf32>
    %cst_49 = arith.constant 1.000000e+00 : f32
    %255 = vector.broadcast %cst_49 : f32 to vector<8x384xf32>
    %256 = arith.addf %255, %254 : vector<8x384xf32>
    %257 = arith.divf %255, %256 : vector<8x384xf32>
    %258 = vector.extract_strided_slice %251 {offsets = [0, 384], sizes = [8, 128], strides = [1, 1]} : vector<8x512xf32> to vector<8x128xf32>
    %259 = math.tanh %258 : vector<8x128xf32>
    %260 = vector.extract_strided_slice %257 {offsets = [0, 0], sizes = [8, 128], strides = [1, 1]} : vector<8x384xf32> to vector<8x128xf32>
    %261 = vector.extract_strided_slice %257 {offsets = [0, 128], sizes = [8, 128], strides = [1, 1]} : vector<8x384xf32> to vector<8x128xf32>
    %262 = vector.extract_strided_slice %257 {offsets = [0, 256], sizes = [8, 128], strides = [1, 1]} : vector<8x384xf32> to vector<8x128xf32>
    %263 = arith.mulf %261, %222 : vector<8x128xf32>
    %264 = arith.mulf %260, %259 : vector<8x128xf32>
    %265 = arith.addf %263, %264 : vector<8x128xf32>
    %266 = math.tanh %265 : vector<8x128xf32>
    %267 = arith.mulf %262, %266 : vector<8x128xf32>
    %c6_i32 = arith.constant 6 : i32
    %268 = arith.index_cast %c6_i32 : i32 to index
    %c0_50 = arith.constant 0 : index
    %c0_51 = arith.constant 0 : index
    %269 = vector.load %arg1[%268, %c0_50, %c0_51] : memref<8x8x512xf32, #tpu.memory_space<vmem>>, vector<1x8x512xf32>
    %270 = vector.shape_cast %269 : vector<1x8x512xf32> to vector<8x512xf32>
    %271 = arith.truncf %246 : vector<8x128xf32> to vector<8x128xbf16>
    %cst_52 = arith.constant dense<0.000000e+00> : vector<8x512xf32>
    %272 = tpu.matmul %271, %3, %cst_52 {dimension_numbers = #tpu.dot_dimension_numbers<[1], [0], [0], [1], [0, 0, 1, 1], [], []>} : vector<8x128xbf16>, vector<128x512xbf16>, vector<8x512xf32> -> vector<8x512xf32>
    %273 = arith.addf %270, %272 : vector<8x512xf32>
    %274 = vector.extract_strided_slice %273 {offsets = [0, 0], sizes = [8, 384], strides = [1, 1]} : vector<8x512xf32> to vector<8x384xf32>
    %275 = arith.negf %274 : vector<8x384xf32>
    %276 = math.exp %275 : vector<8x384xf32>
    %cst_53 = arith.constant 1.000000e+00 : f32
    %277 = vector.broadcast %cst_53 : f32 to vector<8x384xf32>
    %278 = arith.addf %277, %276 : vector<8x384xf32>
    %279 = arith.divf %277, %278 : vector<8x384xf32>
    %280 = vector.extract_strided_slice %273 {offsets = [0, 384], sizes = [8, 128], strides = [1, 1]} : vector<8x512xf32> to vector<8x128xf32>
    %281 = math.tanh %280 : vector<8x128xf32>
    %282 = vector.extract_strided_slice %279 {offsets = [0, 0], sizes = [8, 128], strides = [1, 1]} : vector<8x384xf32> to vector<8x128xf32>
    %283 = vector.extract_strided_slice %279 {offsets = [0, 128], sizes = [8, 128], strides = [1, 1]} : vector<8x384xf32> to vector<8x128xf32>
    %284 = vector.extract_strided_slice %279 {offsets = [0, 256], sizes = [8, 128], strides = [1, 1]} : vector<8x384xf32> to vector<8x128xf32>
    %285 = arith.mulf %283, %244 : vector<8x128xf32>
    %286 = arith.mulf %282, %281 : vector<8x128xf32>
    %287 = arith.addf %285, %286 : vector<8x128xf32>
    %288 = math.tanh %287 : vector<8x128xf32>
    %289 = arith.mulf %284, %288 : vector<8x128xf32>
    %290 = tpu.concatenate %289, %267 in 1 : vector<8x128xf32>, vector<8x128xf32> -> vector<8x256xf32>
    %291 = arith.truncf %290 : vector<8x256xf32> to vector<8x256xbf16>
    %cst_54 = arith.constant dense<0.000000e+00> : vector<8x512xf32>
    %292 = tpu.matmul %291, %4, %cst_54 {dimension_numbers = #tpu.dot_dimension_numbers<[1], [0], [0], [1], [0, 0, 1, 1], [], []>} : vector<8x256xbf16>, vector<256x512xbf16>, vector<8x512xf32> -> vector<8x512xf32>
    %293 = vector.broadcast %5 : vector<1x512xf32> to vector<8x512xf32>
    %294 = arith.addf %292, %293 : vector<8x512xf32>
    %295 = vector.extract_strided_slice %294 {offsets = [0, 0], sizes = [8, 384], strides = [1, 1]} : vector<8x512xf32> to vector<8x384xf32>
    %296 = arith.negf %295 : vector<8x384xf32>
    %297 = math.exp %296 : vector<8x384xf32>
    %cst_55 = arith.constant 1.000000e+00 : f32
    %298 = vector.broadcast %cst_55 : f32 to vector<8x384xf32>
    %299 = arith.addf %298, %297 : vector<8x384xf32>
    %300 = arith.divf %298, %299 : vector<8x384xf32>
    %301 = vector.extract_strided_slice %294 {offsets = [0, 384], sizes = [8, 128], strides = [1, 1]} : vector<8x512xf32> to vector<8x128xf32>
    %302 = math.tanh %301 : vector<8x128xf32>
    %303 = vector.extract_strided_slice %300 {offsets = [0, 0], sizes = [8, 128], strides = [1, 1]} : vector<8x384xf32> to vector<8x128xf32>
    %304 = vector.extract_strided_slice %300 {offsets = [0, 128], sizes = [8, 128], strides = [1, 1]} : vector<8x384xf32> to vector<8x128xf32>
    %305 = vector.extract_strided_slice %300 {offsets = [0, 256], sizes = [8, 128], strides = [1, 1]} : vector<8x384xf32> to vector<8x128xf32>
    %306 = arith.mulf %304, %265 : vector<8x128xf32>
    %307 = arith.mulf %303, %302 : vector<8x128xf32>
    %308 = arith.addf %306, %307 : vector<8x128xf32>
    %309 = math.tanh %308 : vector<8x128xf32>
    %310 = arith.mulf %305, %309 : vector<8x128xf32>
    %c7_i32 = arith.constant 7 : i32
    %311 = arith.index_cast %c7_i32 : i32 to index
    %c0_56 = arith.constant 0 : index
    %c0_57 = arith.constant 0 : index
    %312 = vector.load %arg1[%311, %c0_56, %c0_57] : memref<8x8x512xf32, #tpu.memory_space<vmem>>, vector<1x8x512xf32>
    %313 = vector.shape_cast %312 : vector<1x8x512xf32> to vector<8x512xf32>
    %314 = arith.truncf %289 : vector<8x128xf32> to vector<8x128xbf16>
    %cst_58 = arith.constant dense<0.000000e+00> : vector<8x512xf32>
    %315 = tpu.matmul %314, %3, %cst_58 {dimension_numbers = #tpu.dot_dimension_numbers<[1], [0], [0], [1], [0, 0, 1, 1], [], []>} : vector<8x128xbf16>, vector<128x512xbf16>, vector<8x512xf32> -> vector<8x512xf32>
    %316 = arith.addf %313, %315 : vector<8x512xf32>
    %317 = vector.extract_strided_slice %316 {offsets = [0, 0], sizes = [8, 384], strides = [1, 1]} : vector<8x512xf32> to vector<8x384xf32>
    %318 = arith.negf %317 : vector<8x384xf32>
    %319 = math.exp %318 : vector<8x384xf32>
    %cst_59 = arith.constant 1.000000e+00 : f32
    %320 = vector.broadcast %cst_59 : f32 to vector<8x384xf32>
    %321 = arith.addf %320, %319 : vector<8x384xf32>
    %322 = arith.divf %320, %321 : vector<8x384xf32>
    %323 = vector.extract_strided_slice %316 {offsets = [0, 384], sizes = [8, 128], strides = [1, 1]} : vector<8x512xf32> to vector<8x128xf32>
    %324 = math.tanh %323 : vector<8x128xf32>
    %325 = vector.extract_strided_slice %322 {offsets = [0, 0], sizes = [8, 128], strides = [1, 1]} : vector<8x384xf32> to vector<8x128xf32>
    %326 = vector.extract_strided_slice %322 {offsets = [0, 128], sizes = [8, 128], strides = [1, 1]} : vector<8x384xf32> to vector<8x128xf32>
    %327 = vector.extract_strided_slice %322 {offsets = [0, 256], sizes = [8, 128], strides = [1, 1]} : vector<8x384xf32> to vector<8x128xf32>
    %328 = arith.mulf %326, %287 : vector<8x128xf32>
    %329 = arith.mulf %325, %324 : vector<8x128xf32>
    %330 = arith.addf %328, %329 : vector<8x128xf32>
    %331 = math.tanh %330 : vector<8x128xf32>
    %332 = arith.mulf %327, %331 : vector<8x128xf32>
    %333 = tpu.concatenate %332, %310 in 1 : vector<8x128xf32>, vector<8x128xf32> -> vector<8x256xf32>
    %334 = arith.truncf %333 : vector<8x256xf32> to vector<8x256xbf16>
    %cst_60 = arith.constant dense<0.000000e+00> : vector<8x512xf32>
    %335 = tpu.matmul %334, %4, %cst_60 {dimension_numbers = #tpu.dot_dimension_numbers<[1], [0], [0], [1], [0, 0, 1, 1], [], []>} : vector<8x256xbf16>, vector<256x512xbf16>, vector<8x512xf32> -> vector<8x512xf32>
    %336 = vector.broadcast %5 : vector<1x512xf32> to vector<8x512xf32>
    %337 = arith.addf %335, %336 : vector<8x512xf32>
    %338 = vector.extract_strided_slice %337 {offsets = [0, 0], sizes = [8, 384], strides = [1, 1]} : vector<8x512xf32> to vector<8x384xf32>
    %339 = arith.negf %338 : vector<8x384xf32>
    %340 = math.exp %339 : vector<8x384xf32>
    %cst_61 = arith.constant 1.000000e+00 : f32
    %341 = vector.broadcast %cst_61 : f32 to vector<8x384xf32>
    %342 = arith.addf %341, %340 : vector<8x384xf32>
    %343 = arith.divf %341, %342 : vector<8x384xf32>
    %344 = vector.extract_strided_slice %337 {offsets = [0, 384], sizes = [8, 128], strides = [1, 1]} : vector<8x512xf32> to vector<8x128xf32>
    %345 = math.tanh %344 : vector<8x128xf32>
    %346 = vector.extract_strided_slice %343 {offsets = [0, 0], sizes = [8, 128], strides = [1, 1]} : vector<8x384xf32> to vector<8x128xf32>
    %347 = vector.extract_strided_slice %343 {offsets = [0, 128], sizes = [8, 128], strides = [1, 1]} : vector<8x384xf32> to vector<8x128xf32>
    %348 = vector.extract_strided_slice %343 {offsets = [0, 256], sizes = [8, 128], strides = [1, 1]} : vector<8x384xf32> to vector<8x128xf32>
    %349 = arith.mulf %347, %308 : vector<8x128xf32>
    %350 = arith.mulf %346, %345 : vector<8x128xf32>
    %351 = arith.addf %349, %350 : vector<8x128xf32>
    %352 = math.tanh %351 : vector<8x128xf32>
    %353 = arith.mulf %348, %352 : vector<8x128xf32>
    %c8_i32 = arith.constant 8 : i32
    %c0_62 = arith.constant 0 : index
    %c0_63 = arith.constant 0 : index
    %354 = vector.load %arg16[%c0_62, %c0_63] : memref<8x128xf32, #tpu.memory_space<vmem>>, vector<8x128xf32>
    tpu.vector_store %arg16[%c0_62, %c0_63], %332 {strides = array<i32>} : memref<8x128xf32, #tpu.memory_space<vmem>>, vector<8x128xf32>,
    %c0_64 = arith.constant 0 : index
    %c0_65 = arith.constant 0 : index
    %355 = vector.load %arg17[%c0_64, %c0_65] : memref<8x128xf32, #tpu.memory_space<vmem>>, vector<8x128xf32>
    tpu.vector_store %arg17[%c0_64, %c0_65], %330 {strides = array<i32>} : memref<8x128xf32, #tpu.memory_space<vmem>>, vector<8x128xf32>,
    %c0_66 = arith.constant 0 : index
    %c0_67 = arith.constant 0 : index
    %356 = vector.load %arg18[%c0_66, %c0_67] : memref<8x128xf32, #tpu.memory_space<vmem>>, vector<8x128xf32>
    tpu.vector_store %arg18[%c0_66, %c0_67], %353 {strides = array<i32>} : memref<8x128xf32, #tpu.memory_space<vmem>>, vector<8x128xf32>,
    %c0_68 = arith.constant 0 : index
    %c0_69 = arith.constant 0 : index
    %357 = vector.load %arg19[%c0_68, %c0_69] : memref<8x128xf32, #tpu.memory_space<vmem>>, vector<8x128xf32>
    tpu.vector_store %arg19[%c0_68, %c0_69], %351 {strides = array<i32>} : memref<8x128xf32, #tpu.memory_space<vmem>>, vector<8x128xf32>,
    %c0_70 = arith.constant 0 : index
    %c0_71 = arith.constant 0 : index
    %358 = vector.load %arg11[%c0_70, %c0_71] : memref<8x128xf32, #tpu.memory_space<vmem>>, vector<8x128xf32>
    tpu.vector_store %arg11[%c0_70, %c0_71], %332 {strides = array<i32>} : memref<8x128xf32, #tpu.memory_space<vmem>>, vector<8x128xf32>,
    %c0_72 = arith.constant 0 : index
    %c0_73 = arith.constant 0 : index
    %359 = vector.load %arg12[%c0_72, %c0_73] : memref<8x128xf32, #tpu.memory_space<vmem>>, vector<8x128xf32>
    tpu.vector_store %arg12[%c0_72, %c0_73], %330 {strides = array<i32>} : memref<8x128xf32, #tpu.memory_space<vmem>>, vector<8x128xf32>,
    %c0_74 = arith.constant 0 : index
    %c0_75 = arith.constant 0 : index
    %360 = vector.load %arg13[%c0_74, %c0_75] : memref<8x128xf32, #tpu.memory_space<vmem>>, vector<8x128xf32>
    tpu.vector_store %arg13[%c0_74, %c0_75], %353 {strides = array<i32>} : memref<8x128xf32, #tpu.memory_space<vmem>>, vector<8x128xf32>,
    %c0_76 = arith.constant 0 : index
    %c0_77 = arith.constant 0 : index
    %361 = vector.load %arg14[%c0_76, %c0_77] : memref<8x128xf32, #tpu.memory_space<vmem>>, vector<8x128xf32>
    tpu.vector_store %arg14[%c0_76, %c0_77], %351 {strides = array<i32>} : memref<8x128xf32, #tpu.memory_space<vmem>>, vector<8x128xf32>,
    %c0_i32_78 = arith.constant 0 : i32
    %362 = arith.cmpi eq, %arg0, %c0_i32_78 : i32
    %363 = arith.extui %362 : i1 to i32
    %c0_i32_79 = arith.constant 0 : i32
    %364 = arith.cmpi ne, %363, %c0_i32_79 : i32
    scf.if %364 {
      %365 = arith.truncf %353 : vector<8x128xf32> to vector<8x128xbf16>
      %c0_80 = arith.constant 0 : index
      %c0_81 = arith.constant 0 : index
      %366 = vector.load %arg9[%c0_80, %c0_81] : memref<128x128xbf16, #tpu.memory_space<vmem>>, vector<128x128xbf16>
      %cst_82 = arith.constant dense<0.000000e+00> : vector<8x128xf32>
      %367 = tpu.matmul %365, %366, %cst_82 {dimension_numbers = #tpu.dot_dimension_numbers<[1], [0], [0], [1], [0, 0, 1, 1], [], []>} : vector<8x128xbf16>, vector<128x128xbf16>, vector<8x128xf32> -> vector<8x128xf32>
      %c0_83 = arith.constant 0 : index
      %c0_84 = arith.constant 0 : index
      %368 = vector.load %arg10[%c0_83, %c0_84] : memref<1x128xf32, #tpu.memory_space<vmem>>, vector<1x128xf32>
      %369 = vector.broadcast %368 : vector<1x128xf32> to vector<8x128xf32>
      %370 = arith.addf %367, %369 : vector<8x128xf32>
      %371 = arith.negf %370 : vector<8x128xf32>
      %372 = math.exp %371 : vector<8x128xf32>
      %cst_85 = arith.constant 1.000000e+00 : f32
      %373 = vector.broadcast %cst_85 : f32 to vector<8x128xf32>
      %374 = arith.addf %373, %372 : vector<8x128xf32>
      %375 = arith.divf %373, %374 : vector<8x128xf32>
      %c0_86 = arith.constant 0 : index
      %c0_87 = arith.constant 0 : index
      %376 = vector.load %arg15[%c0_86, %c0_87] : memref<8x128xf32, #tpu.memory_space<vmem>>, vector<8x128xf32>
      tpu.vector_store %arg15[%c0_86, %c0_87], %375 {strides = array<i32>} : memref<8x128xf32, #tpu.memory_space<vmem>>, vector<8x128xf32>,
    } else {
    }
    return
  }
  func.func @transform_0(%arg0: i32) -> (i32, i32, i32) {
    %c0_i32 = arith.constant 0 : i32
    %c0_i32_0 = arith.constant 0 : i32
    %c0_i32_1 = arith.constant 0 : i32
    return %arg0, %c0_i32, %c0_i32_0 : i32, i32, i32
  }
  func.func @transform_1(%arg0: i32) -> (i32, i32) {
    %c0_i32 = arith.constant 0 : i32
    %c0_i32_0 = arith.constant 0 : i32
    %c0_i32_1 = arith.constant 0 : i32
    return %c0_i32, %c0_i32_0 : i32, i32
  }
  func.func @transform_2(%arg0: i32) -> (i32, i32) {
    %c0_i32 = arith.constant 0 : i32
    %c0_i32_0 = arith.constant 0 : i32
    %c0_i32_1 = arith.constant 0 : i32
    return %c0_i32, %c0_i32_0 : i32, i32
  }
  func.func @transform_3(%arg0: i32) -> (i32, i32) {
    %c0_i32 = arith.constant 0 : i32
    %c0_i32_0 = arith.constant 0 : i32
    %c0_i32_1 = arith.constant 0 : i32
    return %c0_i32, %c0_i32_0 : i32, i32
  }
  func.func @transform_4(%arg0: i32) -> (i32, i32) {
    %c0_i32 = arith.constant 0 : i32
    %c0_i32_0 = arith.constant 0 : i32
    %c0_i32_1 = arith.constant 0 : i32
    return %c0_i32, %c0_i32_0 : i32, i32
  }
  func.func @transform_5(%arg0: i32) -> (i32, i32) {
    %c0_i32 = arith.constant 0 : i32
    %c0_i32_0 = arith.constant 0 : i32
    %c0_i32_1 = arith.constant 0 : i32
    return %c0_i32, %c0_i32_0 : i32, i32
  }
  func.func @transform_6(%arg0: i32) -> (i32, i32) {
    %c0_i32 = arith.constant 0 : i32
    %c0_i32_0 = arith.constant 0 : i32
    %c0_i32_1 = arith.constant 0 : i32
    return %c0_i32, %c0_i32_0 : i32, i32
  }
  func.func @transform_7(%arg0: i32) -> (i32, i32) {
    %c0_i32 = arith.constant 0 : i32
    %c0_i32_0 = arith.constant 0 : i32
    %c0_i32_1 = arith.constant 0 : i32
    return %c0_i32, %c0_i32_0 : i32, i32
  }
  func.func @transform_8(%arg0: i32) -> (i32, i32) {
    %c0_i32 = arith.constant 0 : i32
    %c0_i32_0 = arith.constant 0 : i32
    %c0_i32_1 = arith.constant 0 : i32
    return %c0_i32, %c0_i32_0 : i32, i32
  }
  func.func @transform_9(%arg0: i32) -> (i32, i32) {
    %c0_i32 = arith.constant 0 : i32
    %c0_i32_0 = arith.constant 0 : i32
    %c0_i32_1 = arith.constant 0 : i32
    return %c0_i32, %c0_i32_0 : i32, i32
  }
  func.func @transform_10(%arg0: i32) -> (i32, i32) {
    %c0_i32 = arith.constant 0 : i32
    %c0_i32_0 = arith.constant 0 : i32
    %c0_i32_1 = arith.constant 0 : i32
    return %c0_i32, %c0_i32_0 : i32, i32
  }
  func.func @transform_11(%arg0: i32) -> (i32, i32) {
    %c0_i32 = arith.constant 0 : i32
    %c0_i32_0 = arith.constant 0 : i32
    %c0_i32_1 = arith.constant 0 : i32
    return %c0_i32, %c0_i32_0 : i32, i32
  }
  func.func @transform_12(%arg0: i32) -> (i32, i32) {
    %c0_i32 = arith.constant 0 : i32
    %c0_i32_0 = arith.constant 0 : i32
    %c0_i32_1 = arith.constant 0 : i32
    return %c0_i32, %c0_i32_0 : i32, i32
  }
  func.func @transform_13(%arg0: i32) -> (i32, i32) {
    %c0_i32 = arith.constant 0 : i32
    %c0_i32_0 = arith.constant 0 : i32
    %c0_i32_1 = arith.constant 0 : i32
    return %c0_i32, %c0_i32_0 : i32, i32
  }
  func.func @transform_14(%arg0: i32) -> (i32, i32) {
    %c0_i32 = arith.constant 0 : i32
    %c0_i32_0 = arith.constant 0 : i32
    %c0_i32_1 = arith.constant 0 : i32
    return %c0_i32, %c0_i32_0 : i32, i32
  }
}

</mosaic_0001>

<llo_original>
// kernel: sentiment_rnn_forward.2
$region0: #{sentiment_rnn_forward.2}
  #allocation0 [shape = 'u32[]', space=smem, size = 0x4, offset = 0x4, fixed_abs, tag = 'smem constant byte address 0x4 - core index']
  #allocation1 [shape = 'u32[144,128]{1,0:T(1,128)}', space=vmem, size = 0x12000, scoped, tag = 'internal scratch']
  %s0 = inlined_call_operand.vmem [shape: bf16[64,128], index: 0, kind: input, shape index: {}]
  %s1 = inlined_call_operand.vmem [shape: bf16[128,512], index: 1, kind: input, shape index: {}]
  %s2 = inlined_call_operand.vmem [shape: f32[1,512], index: 2, kind: input, shape index: {}]
  %s3 = inlined_call_operand.vmem [shape: f32[64,512], index: 3, kind: output, shape index: {}]
  %s4 = sld [smem:[#allocation0]]
  $region22: #{sentiment_rnn_forward.2} parent=0
    _
  %s6 = ssub.s32 1, %s4
  %s7 = scalar_select 0, %s6, %s4
  // Predicated region
  $region2: #{sentiment_rnn_forward.2} parent=0 // pred_check
    _
  $region3: #{sentiment_rnn_forward.2} parent=0 // pred_check_branch
    %9 = sbr.rel (0) target = $region5
  $region4: #{sentiment_rnn_forward.2} parent=0 // pred_region
    _
  $region5: #{sentiment_rnn_forward.2} parent=0 // pred_fallthru
    _
  // Predicated region
  $region6: #{sentiment_rnn_forward.2} parent=0 // pred_check
    _
  $region7: #{sentiment_rnn_forward.2} parent=0 // pred_check_branch
    %11 = sbr.rel (0) target = $region9
  $region8: #{sentiment_rnn_forward.2} parent=0 // pred_region
    _
  $region9: #{sentiment_rnn_forward.2} parent=0 // pred_fallthru
    _
  // Predicated region
  $region10: #{sentiment_rnn_forward.2} parent=0 // pred_check
    _
  $region11: #{sentiment_rnn_forward.2} parent=0 // pred_check_branch
    %13 = sbr.rel (0) target = $region13
  $region12: #{sentiment_rnn_forward.2} parent=0 // pred_region
    _
  $region13: #{sentiment_rnn_forward.2} parent=0 // pred_fallthru
    _
  %v15 = vld [vmem:[%s0] sm:$0xf]
  %v16 = vld [vmem:[%s0 + $0x4] sm:$0xf]
  %v17 = vld [vmem:[%s0 + $0x8] sm:$0xf]
  %v18 = vld [vmem:[%s0 + $0xc] sm:$0xf]
  %v19 = vld [vmem:[%s0 + $0x10] sm:$0xf]
  %v20 = vld [vmem:[%s0 + $0x14] sm:$0xf]
  %v21 = vld [vmem:[%s0 + $0x18] sm:$0xf]
  %v22 = vld [vmem:[%s0 + $0x1c] sm:$0xf]
  %v23 = vld [vmem:[%s1] sm:$0xff]
  %v24 = vld [vmem:[%s1 + $0x8] sm:$0xff]
  %v25 = vld [vmem:[%s1 + $0x10] sm:$0xff]
  %v26 = vld [vmem:[%s1 + $0x18] sm:$0xff]
  %v27 = vld [vmem:[%s1 + $0x20] sm:$0xff]
  %v28 = vld [vmem:[%s1 + $0x28] sm:$0xff]
  %v29 = vld [vmem:[%s1 + $0x30] sm:$0xff]
  %v30 = vld [vmem:[%s1 + $0x38] sm:$0xff]
  %v31 = vld [vmem:[%s1 + $0x40] sm:$0xff]
  %v32 = vld [vmem:[%s1 + $0x48] sm:$0xff]
  %v33 = vld [vmem:[%s1 + $0x50] sm:$0xff]
  %v34 = vld [vmem:[%s1 + $0x58] sm:$0xff]
  %v35 = vld [vmem:[%s1 + $0x60] sm:$0xff]
  %v36 = vld [vmem:[%s1 + $0x68] sm:$0xff]
  %v37 = vld [vmem:[%s1 + $0x70] sm:$0xff]
  %v38 = vld [vmem:[%s1 + $0x78] sm:$0xff]
  %v39 = vld [vmem:[%s1 + $0x80] sm:$0xff]
  %v40 = vld [vmem:[%s1 + $0x88] sm:$0xff]
  %v41 = vld [vmem:[%s1 + $0x90] sm:$0xff]
  %v42 = vld [vmem:[%s1 + $0x98] sm:$0xff]
  %v43 = vld [vmem:[%s1 + $0xa0] sm:$0xff]
  %v44 = vld [vmem:[%s1 + $0xa8] sm:$0xff]
  %v45 = vld [vmem:[%s1 + $0xb0] sm:$0xff]
  %v46 = vld [vmem:[%s1 + $0xb8] sm:$0xff]
  %v47 = vld [vmem:[%s1 + $0xc0] sm:$0xff]
  %v48 = vld [vmem:[%s1 + $0xc8] sm:$0xff]
  %v49 = vld [vmem:[%s1 + $0xd0] sm:$0xff]
  %v50 = vld [vmem:[%s1 + $0xd8] sm:$0xff]
  %v51 = vld [vmem:[%s1 + $0xe0] sm:$0xff]
  %v52 = vld [vmem:[%s1 + $0xe8] sm:$0xff]
  %v53 = vld [vmem:[%s1 + $0xf0] sm:$0xff]
  %v54 = vld [vmem:[%s1 + $0xf8] sm:$0xff]
  %v55 = vld [vmem:[%s2] sm:$0xf]
  %v57 = vlaneseq
  %v58 = vshrl.u32 %v57, 7
  %v59 = vsub.s32 0, %v58
  %v60 = vrot.slane %v55, %v59
  %v61 = vlaneseq
  %v62 = vshrl.u32 %v61, 7
  %v63 = vsub.s32 1, %v62
  %v64 = vrot.slane %v55, %v63
  %v65 = vlaneseq
  %v66 = vshrl.u32 %v65, 7
  %v67 = vsub.s32 2, %v66
  %v68 = vrot.slane %v55, %v67
  %v69 = vlaneseq
  %v70 = vshrl.u32 %v69, 7
  %v71 = vsub.s32 3, %v70
  %v72 = vrot.slane %v55, %v71
  %v85 = vunpack.c.l.b16 %v15
  %v86 = vunpack.c.l.b16 %v16
  %v87 = vunpack.c.l.b16 %v17
  %v88 = vunpack.c.l.b16 %v18
  %v89 = vunpack.c.l.b16 %v19
  %v90 = vunpack.c.l.b16 %v20
  %v91 = vunpack.c.l.b16 %v21
  %v92 = vunpack.c.l.b16 %v22
  %v93 = vpack.c.b16 %v86, %v85
  %v94 = vpack.c.b16 %v88, %v87
  %v95 = vpack.c.b16 %v90, %v89
  %v96 = vpack.c.b16 %v92, %v91
  %v133 = vunpack.c.l.b16 %v23
  %v134 = vunpack.c.h.b16 %v23
  %v135 = vunpack.c.l.b16 %v24
  %v136 = vunpack.c.h.b16 %v24
  %v137 = vunpack.c.l.b16 %v25
  %v138 = vunpack.c.h.b16 %v25
  %v139 = vunpack.c.l.b16 %v26
  %v140 = vunpack.c.h.b16 %v26
  %v141 = vunpack.c.l.b16 %v27
  %v142 = vunpack.c.h.b16 %v27
  %v143 = vunpack.c.l.b16 %v28
  %v144 = vunpack.c.h.b16 %v28
  %v145 = vunpack.c.l.b16 %v29
  %v146 = vunpack.c.h.b16 %v29
  %v147 = vunpack.c.l.b16 %v30
  %v148 = vunpack.c.h.b16 %v30
  %v149 = vunpack.c.l.b16 %v31
  %v150 = vunpack.c.h.b16 %v31
  %v151 = vunpack.c.l.b16 %v32
  %v152 = vunpack.c.h.b16 %v32
  %v153 = vunpack.c.l.b16 %v33
  %v154 = vunpack.c.h.b16 %v33
  %v155 = vunpack.c.l.b16 %v34
  %v156 = vunpack.c.h.b16 %v34
  %v157 = vunpack.c.l.b16 %v35
  %v158 = vunpack.c.h.b16 %v35
  %v159 = vunpack.c.l.b16 %v36
  %v160 = vunpack.c.h.b16 %v36
  %v161 = vunpack.c.l.b16 %v37
  %v162 = vunpack.c.h.b16 %v37
  %v163 = vunpack.c.l.b16 %v38
  %v164 = vunpack.c.h.b16 %v38
  %v165 = vunpack.c.l.b16 %v39
  %v166 = vunpack.c.h.b16 %v39
  %v167 = vunpack.c.l.b16 %v40
  %v168 = vunpack.c.h.b16 %v40
  %v169 = vunpack.c.l.b16 %v41
  %v170 = vunpack.c.h.b16 %v41
  %v171 = vunpack.c.l.b16 %v42
  %v172 = vunpack.c.h.b16 %v42
  %v173 = vunpack.c.l.b16 %v43
  %v174 = vunpack.c.h.b16 %v43
  %v175 = vunpack.c.l.b16 %v44
  %v176 = vunpack.c.h.b16 %v44
  %v177 = vunpack.c.l.b16 %v45
  %v178 = vunpack.c.h.b16 %v45
  %v179 = vunpack.c.l.b16 %v46
  %v180 = vunpack.c.h.b16 %v46
  %v181 = vunpack.c.l.b16 %v47
  %v182 = vunpack.c.h.b16 %v47
  %v183 = vunpack.c.l.b16 %v48
  %v184 = vunpack.c.h.b16 %v48
  %v185 = vunpack.c.l.b16 %v49
  %v186 = vunpack.c.h.b16 %v49
  %v187 = vunpack.c.l.b16 %v50
  %v188 = vunpack.c.h.b16 %v50
  %v189 = vunpack.c.l.b16 %v51
  %v190 = vunpack.c.h.b16 %v51
  %v191 = vunpack.c.l.b16 %v52
  %v192 = vunpack.c.h.b16 %v52
  %v193 = vunpack.c.l.b16 %v53
  %v194 = vunpack.c.h.b16 %v53
  %v195 = vunpack.c.l.b16 %v54
  %v196 = vunpack.c.h.b16 %v54
  %v197 = vpack.c.b16 %v137, %v133
  %v198 = vpack.c.b16 %v138, %v134
  %v199 = vpack.c.b16 %v139, %v135
  %v200 = vpack.c.b16 %v140, %v136
  %v201 = vpack.c.b16 %v145, %v141
  %v202 = vpack.c.b16 %v146, %v142
  %v203 = vpack.c.b16 %v147, %v143
  %v204 = vpack.c.b16 %v148, %v144
  %v205 = vpack.c.b16 %v153, %v149
  %v206 = vpack.c.b16 %v154, %v150
  %v207 = vpack.c.b16 %v155, %v151
  %v208 = vpack.c.b16 %v156, %v152
  %v209 = vpack.c.b16 %v161, %v157
  %v210 = vpack.c.b16 %v162, %v158
  %v211 = vpack.c.b16 %v163, %v159
  %v212 = vpack.c.b16 %v164, %v160
  %v213 = vpack.c.b16 %v169, %v165
  %v214 = vpack.c.b16 %v170, %v166
  %v215 = vpack.c.b16 %v171, %v167
  %v216 = vpack.c.b16 %v172, %v168
  %v217 = vpack.c.b16 %v177, %v173
  %v218 = vpack.c.b16 %v178, %v174
  %v219 = vpack.c.b16 %v179, %v175
  %v220 = vpack.c.b16 %v180, %v176
  %v221 = vpack.c.b16 %v185, %v181
  %v222 = vpack.c.b16 %v186, %v182
  %v223 = vpack.c.b16 %v187, %v183
  %v224 = vpack.c.b16 %v188, %v184
  %v225 = vpack.c.b16 %v193, %v189
  %v226 = vpack.c.b16 %v194, %v190
  %v227 = vpack.c.b16 %v195, %v191
  %v228 = vpack.c.b16 %v196, %v192
  %261 = vmatprep.subr.bf16.mxu0 %v198
  %262 = vmatpush1.bf16.msra.mxu0 %v197
  %263 = vmatprep.subr.bf16.mxu0 %v202
  %264 = vmatpush1.bf16.msra.mxu0 %v201
  %265 = vmatprep.subr.bf16.mxu0 %v206
  %266 = vmatpush1.bf16.msra.mxu0 %v205
  %267 = vmatprep.subr.bf16.mxu0 %v210
  %268 = vmatpush1.bf16.msra.mxu0 %v209
  %269 = vmatprep.subr.bf16.mxu0 %v214
  %270 = vmatpush1.bf16.msra.mxu0 %v213
  %271 = vmatprep.subr.bf16.mxu0 %v218
  %272 = vmatpush1.bf16.msra.mxu0 %v217
  %273 = vmatprep.subr.bf16.mxu0 %v222
  %274 = vmatpush1.bf16.msra.mxu0 %v221
  %275 = vmatprep.subr.bf16.mxu0 %v226
  %276 = vmatpush1.bf16.msra.mxu0 %v225
  %277 = vmatprep.subr.bf16.mxu0 0
  %278 = vmatpush1.bf16.msra.mxu0 0
  %279 = vmatprep.subr.bf16.mxu0 0
  %280 = vmatpush1.bf16.msra.mxu0 0
  %281 = vmatprep.subr.bf16.mxu0 0
  %282 = vmatpush1.bf16.msra.mxu0 0
  %283 = vmatprep.subr.bf16.mxu0 0
  %284 = vmatpush1.bf16.msra.mxu0 0
  %285 = vmatprep.subr.bf16.mxu0 0
  %286 = vmatpush1.bf16.msra.mxu0 0
  %287 = vmatprep.subr.bf16.mxu0 0
  %288 = vmatpush1.bf16.msra.mxu0 0
  %289 = vmatprep.subr.bf16.mxu0 0
  %290 = vmatpush1.bf16.msra.mxu0 0
  %291 = vmatprep.subr.bf16.mxu0 0
  %292 = vmatpush1.bf16.msra.mxu0 0
  %293 = vmatprep.mubr.bf16.mxu0 0
  %294 = vmatmul.mubr.bf16.gmra.mrb[0].mxu0 %v93
  %v295 = vpop.f32.mrb[0].mxu0
  %v296 = vadd.f32 %v60, %v295
  %v297 = vpop.f32.mrb[0].mxu0
  %v298 = vadd.f32 %v64, %v297
  %v299 = vpop.f32.mrb[0].mxu0
  %v300 = vadd.f32 %v60, %v299
  %v301 = vpop.f32.mrb[0].mxu0
  %v302 = vadd.f32 %v64, %v301
  %303 = vmatprep.mubr.bf16.mxu0 0
  %304 = vmatmul.mubr.bf16.gmra.mrb[0].mxu0 %v94
  %v305 = vpop.f32.mrb[0].mxu0
  %v306 = vadd.f32 %v60, %v305
  %v307 = vpop.f32.mrb[0].mxu0
  %v308 = vadd.f32 %v64, %v307
  %v309 = vpop.f32.mrb[0].mxu0
  %v310 = vadd.f32 %v60, %v309
  %v311 = vpop.f32.mrb[0].mxu0
  %v312 = vadd.f32 %v64, %v311
  %313 = vmatprep.mubr.bf16.mxu0 0
  %314 = vmatmul.mubr.bf16.gmra.mrb[0].mxu0 %v95
  %v315 = vpop.f32.mrb[0].mxu0
  %v316 = vadd.f32 %v60, %v315
  %v317 = vpop.f32.mrb[0].mxu0
  %v318 = vadd.f32 %v64, %v317
  %v319 = vpop.f32.mrb[0].mxu0
  %v320 = vadd.f32 %v60, %v319
  %v321 = vpop.f32.mrb[0].mxu0
  %v322 = vadd.f32 %v64, %v321
  %323 = vmatprep.mubr.bf16.mxu0 0
  %324 = vmatmul.mubr.bf16.gmra.mrb[0].mxu0 %v96
  %v325 = vpop.f32.mrb[0].mxu0
  %v326 = vadd.f32 %v60, %v325
  %v327 = vpop.f32.mrb[0].mxu0
  %v328 = vadd.f32 %v64, %v327
  %v329 = vpop.f32.mrb[0].mxu0
  %v330 = vadd.f32 %v60, %v329
  %v331 = vpop.f32.mrb[0].mxu0
  %v332 = vadd.f32 %v64, %v331
  %333 = vdwg.mxu0
  %334 = vmatprep.subr.bf16.mxu0 %v200
  %335 = vmatpush1.bf16.msra.mxu0 %v199
  %336 = vmatprep.subr.bf16.mxu0 %v204
  %337 = vmatpush1.bf16.msra.mxu0 %v203
  %338 = vmatprep.subr.bf16.mxu0 %v208
  %339 = vmatpush1.bf16.msra.mxu0 %v207
  %340 = vmatprep.subr.bf16.mxu0 %v212
  %341 = vmatpush1.bf16.msra.mxu0 %v211
  %342 = vmatprep.subr.bf16.mxu0 %v216
  %343 = vmatpush1.bf16.msra.mxu0 %v215
  %344 = vmatprep.subr.bf16.mxu0 %v220
  %345 = vmatpush1.bf16.msra.mxu0 %v219
  %346 = vmatprep.subr.bf16.mxu0 %v224
  %347 = vmatpush1.bf16.msra.mxu0 %v223
  %348 = vmatprep.subr.bf16.mxu0 %v228
  %349 = vmatpush1.bf16.msra.mxu0 %v227
  %350 = vmatprep.subr.bf16.mxu0 0
  %351 = vmatpush1.bf16.msra.mxu0 0
  %352 = vmatprep.subr.bf16.mxu0 0
  %353 = vmatpush1.bf16.msra.mxu0 0
  %354 = vmatprep.subr.bf16.mxu0 0
  %355 = vmatpush1.bf16.msra.mxu0 0
  %356 = vmatprep.subr.bf16.mxu0 0
  %357 = vmatpush1.bf16.msra.mxu0 0
  %358 = vmatprep.subr.bf16.mxu0 0
  %359 = vmatpush1.bf16.msra.mxu0 0
  %360 = vmatprep.subr.bf16.mxu0 0
  %361 = vmatpush1.bf16.msra.mxu0 0
  %362 = vmatprep.subr.bf16.mxu0 0
  %363 = vmatpush1.bf16.msra.mxu0 0
  %364 = vmatprep.subr.bf16.mxu0 0
  %365 = vmatpush1.bf16.msra.mxu0 0
  %366 = vmatprep.mubr.bf16.mxu0 0
  %367 = vmatmul.mubr.bf16.gmra.mrb[0].mxu0 %v93
  %v368 = vpop.f32.mrb[0].mxu0
  %v369 = vadd.f32 %v68, %v368
  %v370 = vpop.f32.mrb[0].mxu0
  %v371 = vadd.f32 %v72, %v370
  %v372 = vpop.f32.mrb[0].mxu0
  %v373 = vadd.f32 %v68, %v372
  %v374 = vpop.f32.mrb[0].mxu0
  %v375 = vadd.f32 %v72, %v374
  %376 = vmatprep.mubr.bf16.mxu0 0
  %377 = vmatmul.mubr.bf16.gmra.mrb[0].mxu0 %v94
  %v378 = vpop.f32.mrb[0].mxu0
  %v379 = vadd.f32 %v68, %v378
  %v380 = vpop.f32.mrb[0].mxu0
  %v381 = vadd.f32 %v72, %v380
  %v382 = vpop.f32.mrb[0].mxu0
  %v383 = vadd.f32 %v68, %v382
  %v384 = vpop.f32.mrb[0].mxu0
  %v385 = vadd.f32 %v72, %v384
  %386 = vmatprep.mubr.bf16.mxu0 0
  %387 = vmatmul.mubr.bf16.gmra.mrb[0].mxu0 %v95
  %v388 = vpop.f32.mrb[0].mxu0
  %v389 = vadd.f32 %v68, %v388
  %v390 = vpop.f32.mrb[0].mxu0
  %v391 = vadd.f32 %v72, %v390
  %v392 = vpop.f32.mrb[0].mxu0
  %v393 = vadd.f32 %v68, %v392
  %v394 = vpop.f32.mrb[0].mxu0
  %v395 = vadd.f32 %v72, %v394
  %396 = vmatprep.mubr.bf16.mxu0 0
  %397 = vmatmul.mubr.bf16.gmra.mrb[0].mxu0 %v96
  %v398 = vpop.f32.mrb[0].mxu0
  %v399 = vadd.f32 %v68, %v398
  %v400 = vpop.f32.mrb[0].mxu0
  %v401 = vadd.f32 %v72, %v400
  %v402 = vpop.f32.mrb[0].mxu0
  %v403 = vadd.f32 %v68, %v402
  %v404 = vpop.f32.mrb[0].mxu0
  %v405 = vadd.f32 %v72, %v404
  %406 = vdwg.mxu0
  %407 = vst [vmem:[%s3] sm:$0xff] %v296
  %408 = vst [vmem:[%s3 + $0x8] sm:$0xff] %v298
  %409 = vst [vmem:[%s3 + $0x10] sm:$0xff] %v369
  %410 = vst [vmem:[%s3 + $0x18] sm:$0xff] %v371
  %411 = vst [vmem:[%s3 + $0x20] sm:$0xff] %v300
  %412 = vst [vmem:[%s3 + $0x28] sm:$0xff] %v302
  %413 = vst [vmem:[%s3 + $0x30] sm:$0xff] %v373
  %414 = vst [vmem:[%s3 + $0x38] sm:$0xff] %v375
  %415 = vst [vmem:[%s3 + $0x40] sm:$0xff] %v306
  %416 = vst [vmem:[%s3 + $0x48] sm:$0xff] %v308
  %417 = vst [vmem:[%s3 + $0x50] sm:$0xff] %v379
  %418 = vst [vmem:[%s3 + $0x58] sm:$0xff] %v381
  %419 = vst [vmem:[%s3 + $0x60] sm:$0xff] %v310
  %420 = vst [vmem:[%s3 + $0x68] sm:$0xff] %v312
  %421 = vst [vmem:[%s3 + $0x70] sm:$0xff] %v383
  %422 = vst [vmem:[%s3 + $0x78] sm:$0xff] %v385
  %423 = vst [vmem:[%s3 + $0x80] sm:$0xff] %v316
  %424 = vst [vmem:[%s3 + $0x88] sm:$0xff] %v318
  %425 = vst [vmem:[%s3 + $0x90] sm:$0xff] %v389
  %426 = vst [vmem:[%s3 + $0x98] sm:$0xff] %v391
  %427 = vst [vmem:[%s3 + $0xa0] sm:$0xff] %v320
  %428 = vst [vmem:[%s3 + $0xa8] sm:$0xff] %v322
  %429 = vst [vmem:[%s3 + $0xb0] sm:$0xff] %v393
  %430 = vst [vmem:[%s3 + $0xb8] sm:$0xff] %v395
  %431 = vst [vmem:[%s3 + $0xc0] sm:$0xff] %v326
  %432 = vst [vmem:[%s3 + $0xc8] sm:$0xff] %v328
  %433 = vst [vmem:[%s3 + $0xd0] sm:$0xff] %v399
  %434 = vst [vmem:[%s3 + $0xd8] sm:$0xff] %v401
  %435 = vst [vmem:[%s3 + $0xe0] sm:$0xff] %v330
  %436 = vst [vmem:[%s3 + $0xe8] sm:$0xff] %v332
  %437 = vst [vmem:[%s3 + $0xf0] sm:$0xff] %v403
  %438 = vst [vmem:[%s3 + $0xf8] sm:$0xff] %v405
  // Predicated region
  $region14: #{sentiment_rnn_forward.2} parent=0 // pred_check
    _
  $region15: #{sentiment_rnn_forward.2} parent=0 // pred_check_branch
    %440 = sbr.rel (0) target = $region17
  $region16: #{sentiment_rnn_forward.2} parent=0 // pred_region
    _
  $region17: #{sentiment_rnn_forward.2} parent=0 // pred_fallthru
    _
  // Predicated region
  $region18: #{sentiment_rnn_forward.2} parent=0 // pred_check
    _
  $region19: #{sentiment_rnn_forward.2} parent=0 // pred_check_branch
    %442 = sbr.rel (0) target = $region21
  $region20: #{sentiment_rnn_forward.2} parent=0 // pred_region
    _
  $region21: #{sentiment_rnn_forward.2} parent=0 // pred_fallthru
    _

// kernel: sentiment_rnn_forward.3
$region0: #{sentiment_rnn_forward.3}
  #allocation0 [shape = 'u32[]', space=smem, size = 0x4, offset = 0x4, fixed_abs, tag = 'smem constant byte address 0x4 - core index']
  #allocation1 [shape = 'u32[144,128]{1,0:T(1,128)}', space=vmem, size = 0x12000, scoped, tag = 'internal scratch']
  #allocation2 [shape = 'f32[8,128]{1,0:T(8,128)}', space=vmem, size = 0x1000, scoped, tag = 'scratch operand']
  #allocation3 [shape = 'f32[8,128]{1,0:T(8,128)}', space=vmem, size = 0x1000, scoped, tag = 'scratch operand']
  #allocation4 [shape = 'f32[8,128]{1,0:T(8,128)}', space=vmem, size = 0x1000, scoped, tag = 'scratch operand']
  #allocation5 [shape = 'f32[8,128]{1,0:T(8,128)}', space=vmem, size = 0x1000, scoped, tag = 'scratch operand']
  %s0 = inlined_call_operand.vmem [shape: f32[8,8,512], index: 0, kind: input, shape index: {}]
  %s1 = inlined_call_operand.vmem [shape: f32[8,128], index: 1, kind: input, shape index: {}]
  %s2 = inlined_call_operand.vmem [shape: f32[8,128], index: 2, kind: input, shape index: {}]
  %s3 = inlined_call_operand.vmem [shape: f32[8,128], index: 3, kind: input, shape index: {}]
  %s4 = inlined_call_operand.vmem [shape: f32[8,128], index: 4, kind: input, shape index: {}]
  %s5 = inlined_call_operand.vmem [shape: bf16[128,512], index: 5, kind: input, shape index: {}]
  %s6 = inlined_call_operand.vmem [shape: bf16[256,512], index: 6, kind: input, shape index: {}]
  %s7 = inlined_call_operand.vmem [shape: f32[1,512], index: 7, kind: input, shape index: {}]
  %s8 = inlined_call_operand.vmem [shape: bf16[128,128], index: 8, kind: input, shape index: {}]
  %s9 = inlined_call_operand.vmem [shape: f32[1,128], index: 9, kind: input, shape index: {}]
  %s10 = inlined_call_operand.vmem [shape: f32[8,128], index: 10, kind: output, shape index: {0}]
  %s11 = inlined_call_operand.vmem [shape: f32[8,128], index: 11, kind: output, shape index: {1}]
  %s12 = inlined_call_operand.vmem [shape: f32[8,128], index: 12, kind: output, shape index: {2}]
  %s13 = inlined_call_operand.vmem [shape: f32[8,128], index: 13, kind: output, shape index: {3}]
  %s14 = inlined_call_operand.vmem [shape: f32[8,128], index: 14, kind: output, shape index: {4}]
  %15 = xla_tuple %s10, %s11, %s12, %s13, %s14
  %s16 = sld [smem:[#allocation0]]
  $region90: #{sentiment_rnn_forward.3} parent=0
    _
  %s18 = ssub.s32 1, %s16
  %s19 = scalar_select 0, %s18, %s16
  // Predicated region
  $region2: #{sentiment_rnn_forward.3} parent=0 // pred_check
    _
  $region3: #{sentiment_rnn_forward.3} parent=0 // pred_check_branch
    %21 = sbr.rel (0) target = $region5
  $region4: #{sentiment_rnn_forward.3} parent=0 // pred_region
    _
  $region5: #{sentiment_rnn_forward.3} parent=0 // pred_fallthru
    _
  // Predicated region
  $region6: #{sentiment_rnn_forward.3} parent=0 // pred_check
    _
  $region7: #{sentiment_rnn_forward.3} parent=0 // pred_check_branch
    %23 = sbr.rel (0) target = $region9
  $region8: #{sentiment_rnn_forward.3} parent=0 // pred_region
    _
  $region9: #{sentiment_rnn_forward.3} parent=0 // pred_fallthru
    _
  // Predicated region
  $region10: #{sentiment_rnn_forward.3} parent=0 // pred_check
    _
  $region11: #{sentiment_rnn_forward.3} parent=0 // pred_check_branch
    %25 = sbr.rel (0) target = $region13
  $region12: #{sentiment_rnn_forward.3} parent=0 // pred_region
    _
  $region13: #{sentiment_rnn_forward.3} parent=0 // pred_fallthru
    _
  // Predicated region
  $region14: #{sentiment_rnn_forward.3} parent=0 // pred_check
    _
  $region15: #{sentiment_rnn_forward.3} parent=0 // pred_check_branch
    %27 = sbr.rel (0) target = $region17
  $region16: #{sentiment_rnn_forward.3} parent=0 // pred_region
    _
  $region17: #{sentiment_rnn_forward.3} parent=0 // pred_fallthru
    _
  // Predicated region
  $region18: #{sentiment_rnn_forward.3} parent=0 // pred_check
    _
  $region19: #{sentiment_rnn_forward.3} parent=0 // pred_check_branch
    %29 = sbr.rel (0) target = $region21
  $region20: #{sentiment_rnn_forward.3} parent=0 // pred_region
    _
  $region21: #{sentiment_rnn_forward.3} parent=0 // pred_fallthru
    _
  // Predicated region
  $region22: #{sentiment_rnn_forward.3} parent=0 // pred_check
    _
  $region23: #{sentiment_rnn_forward.3} parent=0 // pred_check_branch
    %31 = sbr.rel (0) target = $region25
  $region24: #{sentiment_rnn_forward.3} parent=0 // pred_region
    _
  $region25: #{sentiment_rnn_forward.3} parent=0 // pred_fallthru
    _
  // Predicated region
  $region26: #{sentiment_rnn_forward.3} parent=0 // pred_check
    _
  $region27: #{sentiment_rnn_forward.3} parent=0 // pred_check_branch
    %33 = sbr.rel (0) target = $region29
  $region28: #{sentiment_rnn_forward.3} parent=0 // pred_region
    _
  $region29: #{sentiment_rnn_forward.3} parent=0 // pred_fallthru
    _
  // Predicated region
  $region30: #{sentiment_rnn_forward.3} parent=0 // pred_check
    _
  $region31: #{sentiment_rnn_forward.3} parent=0 // pred_check_branch
    %35 = sbr.rel (0) target = $region33
  $region32: #{sentiment_rnn_forward.3} parent=0 // pred_region
    _
  $region33: #{sentiment_rnn_forward.3} parent=0 // pred_fallthru
    _
  // Predicated region
  $region34: #{sentiment_rnn_forward.3} parent=0 // pred_check
    _
  $region35: #{sentiment_rnn_forward.3} parent=0 // pred_check_branch
    %37 = sbr.rel (0) target = $region37
  $region36: #{sentiment_rnn_forward.3} parent=0 // pred_region
    _
  $region37: #{sentiment_rnn_forward.3} parent=0 // pred_fallthru
    _
  // Predicated region
  $region38: #{sentiment_rnn_forward.3} parent=0 // pred_check
    _
  $region39: #{sentiment_rnn_forward.3} parent=0 // pred_check_branch
    %39 = sbr.rel (0) target = $region41
  $region40: #{sentiment_rnn_forward.3} parent=0 // pred_region
    _
  $region41: #{sentiment_rnn_forward.3} parent=0 // pred_fallthru
    _
  %p41 = scmp.eq.s32.totalorder 0, 0
  // Predicated region
  $region42: #{sentiment_rnn_forward.3} parent=0 // pred_check
    %p42 = pneg %p41
  $region43: #{sentiment_rnn_forward.3} parent=0 // pred_check_branch
    %44 = sbr.rel (%p42) target = $region45
  $region44: #{sentiment_rnn_forward.3} parent=0 // pred_region
    %v45 = vld [vmem:[%s1] sm:$0xff]
    %46 = vst [vmem:[#allocation2] sm:$0xff] %v45
    %v47 = vld [vmem:[%s2] sm:$0xff]
    %48 = vst [vmem:[#allocation3] sm:$0xff] %v47
    %v49 = vld [vmem:[%s3] sm:$0xff]
    %50 = vst [vmem:[#allocation4] sm:$0xff] %v49
    %v51 = vld [vmem:[%s4] sm:$0xff]
    %52 = vst [vmem:[#allocation5] sm:$0xff] %v51
  $region45: #{sentiment_rnn_forward.3} parent=0 // pred_fallthru
    _
  %v53 = vld [vmem:[%s5] sm:$0xff]
  %v54 = vld [vmem:[%s5 + $0x8] sm:$0xff]
  %v55 = vld [vmem:[%s5 + $0x10] sm:$0xff]
  %v56 = vld [vmem:[%s5 + $0x18] sm:$0xff]
  %v57 = vld [vmem:[%s5 + $0x20] sm:$0xff]
  %v58 = vld [vmem:[%s5 + $0x28] sm:$0xff]
  %v59 = vld [vmem:[%s5 + $0x30] sm:$0xff]
  %v60 = vld [vmem:[%s5 + $0x38] sm:$0xff]
  %v61 = vld [vmem:[%s5 + $0x40] sm:$0xff]
  %v62 = vld [vmem:[%s5 + $0x48] sm:$0xff]
  %v63 = vld [vmem:[%s5 + $0x50] sm:$0xff]
  %v64 = vld [vmem:[%s5 + $0x58] sm:$0xff]
  %v65 = vld [vmem:[%s5 + $0x60] sm:$0xff]
  %v66 = vld [vmem:[%s5 + $0x68] sm:$0xff]
  %v67 = vld [vmem:[%s5 + $0x70] sm:$0xff]
  %v68 = vld [vmem:[%s5 + $0x78] sm:$0xff]
  %v69 = vld [vmem:[%s5 + $0x80] sm:$0xff]
  %v70 = vld [vmem:[%s5 + $0x88] sm:$0xff]
  %v71 = vld [vmem:[%s5 + $0x90] sm:$0xff]
  %v72 = vld [vmem:[%s5 + $0x98] sm:$0xff]
  %v73 = vld [vmem:[%s5 + $0xa0] sm:$0xff]
  %v74 = vld [vmem:[%s5 + $0xa8] sm:$0xff]
  %v75 = vld [vmem:[%s5 + $0xb0] sm:$0xff]
  %v76 = vld [vmem:[%s5 + $0xb8] sm:$0xff]
  %v77 = vld [vmem:[%s5 + $0xc0] sm:$0xff]
  %v78 = vld [vmem:[%s5 + $0xc8] sm:$0xff]
  %v79 = vld [vmem:[%s5 + $0xd0] sm:$0xff]
  %v80 = vld [vmem:[%s5 + $0xd8] sm:$0xff]
  %v81 = vld [vmem:[%s5 + $0xe0] sm:$0xff]
  %v82 = vld [vmem:[%s5 + $0xe8] sm:$0xff]
  %v83 = vld [vmem:[%s5 + $0xf0] sm:$0xff]
  %v84 = vld [vmem:[%s5 + $0xf8] sm:$0xff]
  %v85 = vld [vmem:[%s6] sm:$0xff]
  %v86 = vld [vmem:[%s6 + $0x8] sm:$0xff]
  %v87 = vld [vmem:[%s6 + $0x10] sm:$0xff]
  %v88 = vld [vmem:[%s6 + $0x18] sm:$0xff]
  %v89 = vld [vmem:[%s6 + $0x20] sm:$0xff]
  %v90 = vld [vmem:[%s6 + $0x28] sm:$0xff]
  %v91 = vld [vmem:[%s6 + $0x30] sm:$0xff]
  %v92 = vld [vmem:[%s6 + $0x38] sm:$0xff]
  %v93 = vld [vmem:[%s6 + $0x40] sm:$0xff]
  %v94 = vld [vmem:[%s6 + $0x48] sm:$0xff]
  %v95 = vld [vmem:[%s6 + $0x50] sm:$0xff]
  %v96 = vld [vmem:[%s6 + $0x58] sm:$0xff]
  %v97 = vld [vmem:[%s6 + $0x60] sm:$0xff]
  %v98 = vld [vmem:[%s6 + $0x68] sm:$0xff]
  %v99 = vld [vmem:[%s6 + $0x70] sm:$0xff]
  %v100 = vld [vmem:[%s6 + $0x78] sm:$0xff]
  %v101 = vld [vmem:[%s6 + $0x80] sm:$0xff]
  %v102 = vld [vmem:[%s6 + $0x88] sm:$0xff]
  %v103 = vld [vmem:[%s6 + $0x90] sm:$0xff]
  %v104 = vld [vmem:[%s6 + $0x98] sm:$0xff]
  %v105 = vld [vmem:[%s6 + $0xa0] sm:$0xff]
  %v106 = vld [vmem:[%s6 + $0xa8] sm:$0xff]
  %v107 = vld [vmem:[%s6 + $0xb0] sm:$0xff]
  %v108 = vld [vmem:[%s6 + $0xb8] sm:$0xff]
  %v109 = vld [vmem:[%s6 + $0xc0] sm:$0xff]
  %v110 = vld [vmem:[%s6 + $0xc8] sm:$0xff]
  %v111 = vld [vmem:[%s6 + $0xd0] sm:$0xff]
  %v112 = vld [vmem:[%s6 + $0xd8] sm:$0xff]
  %v113 = vld [vmem:[%s6 + $0xe0] sm:$0xff]
  %v114 = vld [vmem:[%s6 + $0xe8] sm:$0xff]
  %v115 = vld [vmem:[%s6 + $0xf0] sm:$0xff]
  %v116 = vld [vmem:[%s6 + $0xf8] sm:$0xff]
  %v117 = vld [vmem:[%s6 + $0x100] sm:$0xff]
  %v118 = vld [vmem:[%s6 + $0x108] sm:$0xff]
  %v119 = vld [vmem:[%s6 + $0x110] sm:$0xff]
  %v120 = vld [vmem:[%s6 + $0x118] sm:$0xff]
  %v121 = vld [vmem:[%s6 + $0x120] sm:$0xff]
  %v122 = vld [vmem:[%s6 + $0x128] sm:$0xff]
  %v123 = vld [vmem:[%s6 + $0x130] sm:$0xff]
  %v124 = vld [vmem:[%s6 + $0x138] sm:$0xff]
  %v125 = vld [vmem:[%s6 + $0x140] sm:$0xff]
  %v126 = vld [vmem:[%s6 + $0x148] sm:$0xff]
  %v127 = vld [vmem:[%s6 + $0x150] sm:$0xff]
  %v128 = vld [vmem:[%s6 + $0x158] sm:$0xff]
  %v129 = vld [vmem:[%s6 + $0x160] sm:$0xff]
  %v130 = vld [vmem:[%s6 + $0x168] sm:$0xff]
  %v131 = vld [vmem:[%s6 + $0x170] sm:$0xff]
  %v132 = vld [vmem:[%s6 + $0x178] sm:$0xff]
  %v133 = vld [vmem:[%s6 + $0x180] sm:$0xff]
  %v134 = vld [vmem:[%s6 + $0x188] sm:$0xff]
  %v135 = vld [vmem:[%s6 + $0x190] sm:$0xff]
  %v136 = vld [vmem:[%s6 + $0x198] sm:$0xff]
  %v137 = vld [vmem:[%s6 + $0x1a0] sm:$0xff]
  %v138 = vld [vmem:[%s6 + $0x1a8] sm:$0xff]
  %v139 = vld [vmem:[%s6 + $0x1b0] sm:$0xff]
  %v140 = vld [vmem:[%s6 + $0x1b8] sm:$0xff]
  %v141 = vld [vmem:[%s6 + $0x1c0] sm:$0xff]
  %v142 = vld [vmem:[%s6 + $0x1c8] sm:$0xff]
  %v143 = vld [vmem:[%s6 + $0x1d0] sm:$0xff]
  %v144 = vld [vmem:[%s6 + $0x1d8] sm:$0xff]
  %v145 = vld [vmem:[%s6 + $0x1e0] sm:$0xff]
  %v146 = vld [vmem:[%s6 + $0x1e8] sm:$0xff]
  %v147 = vld [vmem:[%s6 + $0x1f0] sm:$0xff]
  %v148 = vld [vmem:[%s6 + $0x1f8] sm:$0xff]
  %v149 = vld [vmem:[%s7] sm:$0xf]
  %v150 = vld [vmem:[#allocation2] sm:$0xff]
  %v151 = vld [vmem:[#allocation3] sm:$0xff]
  %v152 = vld [vmem:[#allocation4] sm:$0xff]
  %v153 = vld [vmem:[#allocation5] sm:$0xff]
  %v154 = vld [vmem:[%s0] sm:$0xff]
  %v155 = vld [vmem:[%s0 + $0x8] sm:$0xff]
  %v156 = vld [vmem:[%s0 + $0x10] sm:$0xff]
  %v157 = vld [vmem:[%s0 + $0x18] sm:$0xff]
  %v158 = vpack.c.bf16 %v150, %v150
  %v191 = vunpack.c.l.b16 %v53
  %v192 = vunpack.c.h.b16 %v53
  %v193 = vunpack.c.l.b16 %v54
  %v194 = vunpack.c.h.b16 %v54
  %v195 = vunpack.c.l.b16 %v55
  %v196 = vunpack.c.h.b16 %v55
  %v197 = vunpack.c.l.b16 %v56
  %v198 = vunpack.c.h.b16 %v56
  %v199 = vunpack.c.l.b16 %v57
  %v200 = vunpack.c.h.b16 %v57
  %v201 = vunpack.c.l.b16 %v58
  %v202 = vunpack.c.h.b16 %v58
  %v203 = vunpack.c.l.b16 %v59
  %v204 = vunpack.c.h.b16 %v59
  %v205 = vunpack.c.l.b16 %v60
  %v206 = vunpack.c.h.b16 %v60
  %v207 = vunpack.c.l.b16 %v61
  %v208 = vunpack.c.h.b16 %v61
  %v209 = vunpack.c.l.b16 %v62
  %v210 = vunpack.c.h.b16 %v62
  %v211 = vunpack.c.l.b16 %v63
  %v212 = vunpack.c.h.b16 %v63
  %v213 = vunpack.c.l.b16 %v64
  %v214 = vunpack.c.h.b16 %v64
  %v215 = vunpack.c.l.b16 %v65
  %v216 = vunpack.c.h.b16 %v65
  %v217 = vunpack.c.l.b16 %v66
  %v218 = vunpack.c.h.b16 %v66
  %v219 = vunpack.c.l.b16 %v67
  %v220 = vunpack.c.h.b16 %v67
  %v221 = vunpack.c.l.b16 %v68
  %v222 = vunpack.c.h.b16 %v68
  %v223 = vunpack.c.l.b16 %v69
  %v224 = vunpack.c.h.b16 %v69
  %v225 = vunpack.c.l.b16 %v70
  %v226 = vunpack.c.h.b16 %v70
  %v227 = vunpack.c.l.b16 %v71
  %v228 = vunpack.c.h.b16 %v71
  %v229 = vunpack.c.l.b16 %v72
  %v230 = vunpack.c.h.b16 %v72
  %v231 = vunpack.c.l.b16 %v73
  %v232 = vunpack.c.h.b16 %v73
  %v233 = vunpack.c.l.b16 %v74
  %v234 = vunpack.c.h.b16 %v74
  %v235 = vunpack.c.l.b16 %v75
  %v236 = vunpack.c.h.b16 %v75
  %v237 = vunpack.c.l.b16 %v76
  %v238 = vunpack.c.h.b16 %v76
  %v239 = vunpack.c.l.b16 %v77
  %v240 = vunpack.c.h.b16 %v77
  %v241 = vunpack.c.l.b16 %v78
  %v242 = vunpack.c.h.b16 %v78
  %v243 = vunpack.c.l.b16 %v79
  %v244 = vunpack.c.h.b16 %v79
  %v245 = vunpack.c.l.b16 %v80
  %v246 = vunpack.c.h.b16 %v80
  %v247 = vunpack.c.l.b16 %v81
  %v248 = vunpack.c.h.b16 %v81
  %v249 = vunpack.c.l.b16 %v82
  %v250 = vunpack.c.h.b16 %v82
  %v251 = vunpack.c.l.b16 %v83
  %v252 = vunpack.c.h.b16 %v83
  %v253 = vunpack.c.l.b16 %v84
  %v254 = vunpack.c.h.b16 %v84
  %v255 = vpack.c.b16 %v195, %v191
  %v256 = vpack.c.b16 %v196, %v192
  %v257 = vpack.c.b16 %v197, %v193
  %v258 = vpack.c.b16 %v198, %v194
  %v259 = vpack.c.b16 %v203, %v199
  %v260 = vpack.c.b16 %v204, %v200
  %v261 = vpack.c.b16 %v205, %v201
  %v262 = vpack.c.b16 %v206, %v202
  %v263 = vpack.c.b16 %v211, %v207
  %v264 = vpack.c.b16 %v212, %v208
  %v265 = vpack.c.b16 %v213, %v209
  %v266 = vpack.c.b16 %v214, %v210
  %v267 = vpack.c.b16 %v219, %v215
  %v268 = vpack.c.b16 %v220, %v216
  %v269 = vpack.c.b16 %v221, %v217
  %v270 = vpack.c.b16 %v222, %v218
  %v271 = vpack.c.b16 %v227, %v223
  %v272 = vpack.c.b16 %v228, %v224
  %v273 = vpack.c.b16 %v229, %v225
  %v274 = vpack.c.b16 %v230, %v226
  %v275 = vpack.c.b16 %v235, %v231
  %v276 = vpack.c.b16 %v236, %v232
  %v277 = vpack.c.b16 %v237, %v233
  %v278 = vpack.c.b16 %v238, %v234
  %v279 = vpack.c.b16 %v243, %v239
  %v280 = vpack.c.b16 %v244, %v240
  %v281 = vpack.c.b16 %v245, %v241
  %v282 = vpack.c.b16 %v246, %v242
  %v283 = vpack.c.b16 %v251, %v247
  %v284 = vpack.c.b16 %v252, %v248
  %v285 = vpack.c.b16 %v253, %v249
  %v286 = vpack.c.b16 %v254, %v250
  %319 = vmatprep.subr.bf16.mxu0 %v256
  %320 = vmatpush1.bf16.msra.mxu0 %v255
  %321 = vmatprep.subr.bf16.mxu0 %v260
  %322 = vmatpush1.bf16.msra.mxu0 %v259
  %323 = vmatprep.subr.bf16.mxu0 %v264
  %324 = vmatpush1.bf16.msra.mxu0 %v263
  %325 = vmatprep.subr.bf16.mxu0 %v268
  %326 = vmatpush1.bf16.msra.mxu0 %v267
  %327 = vmatprep.subr.bf16.mxu0 %v272
  %328 = vmatpush1.bf16.msra.mxu0 %v271
  %329 = vmatprep.subr.bf16.mxu0 %v276
  %330 = vmatpush1.bf16.msra.mxu0 %v275
  %331 = vmatprep.subr.bf16.mxu0 %v280
  %332 = vmatpush1.bf16.msra.mxu0 %v279
  %333 = vmatprep.subr.bf16.mxu0 %v284
  %334 = vmatpush1.bf16.msra.mxu0 %v283
  %335 = vmatprep.subr.bf16.mxu0 0
  %336 = vmatpush1.bf16.msra.mxu0 0
  %337 = vmatprep.subr.bf16.mxu0 0
  %338 = vmatpush1.bf16.msra.mxu0 0
  %339 = vmatprep.subr.bf16.mxu0 0
  %340 = vmatpush1.bf16.msra.mxu0 0
  %341 = vmatprep.subr.bf16.mxu0 0
  %342 = vmatpush1.bf16.msra.mxu0 0
  %343 = vmatprep.subr.bf16.mxu0 0
  %344 = vmatpush1.bf16.msra.mxu0 0
  %345 = vmatprep.subr.bf16.mxu0 0
  %346 = vmatpush1.bf16.msra.mxu0 0
  %347 = vmatprep.subr.bf16.mxu0 0
  %348 = vmatpush1.bf16.msra.mxu0 0
  %349 = vmatprep.subr.bf16.mxu0 0
  %350 = vmatpush1.bf16.msra.mxu0 0
  %351 = vmatprep.mubr.bf16.mxu0 0
  %352 = vmatmul.mubr.bf16.gmra.mrb[0].mxu0 %v158
  %v353 = vpop.f32.mrb[0].mxu0
  %v354 = vadd.f32 0.0, %v353
  %v355 = vpop.f32.mrb[0].mxu0
  %v356 = vadd.f32 0.0, %v355
  %v357 = vpop.f32.mrb[0].mxu0
  %v358 = vpop.f32.mrb[0].mxu0
  %359 = vdwg.mxu0
  %360 = vmatprep.subr.bf16.mxu0 %v258
  %361 = vmatpush1.bf16.msra.mxu0 %v257
  %362 = vmatprep.subr.bf16.mxu0 %v262
  %363 = vmatpush1.bf16.msra.mxu0 %v261
  %364 = vmatprep.subr.bf16.mxu0 %v266
  %365 = vmatpush1.bf16.msra.mxu0 %v265
  %366 = vmatprep.subr.bf16.mxu0 %v270
  %367 = vmatpush1.bf16.msra.mxu0 %v269
  %368 = vmatprep.subr.bf16.mxu0 %v274
  %369 = vmatpush1.bf16.msra.mxu0 %v273
  %370 = vmatprep.subr.bf16.mxu0 %v278
  %371 = vmatpush1.bf16.msra.mxu0 %v277
  %372 = vmatprep.subr.bf16.mxu0 %v282
  %373 = vmatpush1.bf16.msra.mxu0 %v281
  %374 = vmatprep.subr.bf16.mxu0 %v286
  %375 = vmatpush1.bf16.msra.mxu0 %v285
  %376 = vmatprep.subr.bf16.mxu0 0
  %377 = vmatpush1.bf16.msra.mxu0 0
  %378 = vmatprep.subr.bf16.mxu0 0
  %379 = vmatpush1.bf16.msra.mxu0 0
  %380 = vmatprep.subr.bf16.mxu0 0
  %381 = vmatpush1.bf16.msra.mxu0 0
  %382 = vmatprep.subr.bf16.mxu0 0
  %383 = vmatpush1.bf16.msra.mxu0 0
  %384 = vmatprep.subr.bf16.mxu0 0
  %385 = vmatpush1.bf16.msra.mxu0 0
  %386 = vmatprep.subr.bf16.mxu0 0
  %387 = vmatpush1.bf16.msra.mxu0 0
  %388 = vmatprep.subr.bf16.mxu0 0
  %389 = vmatpush1.bf16.msra.mxu0 0
  %390 = vmatprep.subr.bf16.mxu0 0
  %391 = vmatpush1.bf16.msra.mxu0 0
  %392 = vmatprep.mubr.bf16.mxu0 0
  %393 = vmatmul.mubr.bf16.gmra.mrb[0].mxu0 %v158
  %v394 = vpop.f32.mrb[0].mxu0
  %v395 = vadd.f32 0.0, %v394
  %v396 = vpop.f32.mrb[0].mxu0
  %v397 = vadd.f32 0.0, %v396
  %v398 = vpop.f32.mrb[0].mxu0
  %v399 = vpop.f32.mrb[0].mxu0
  %400 = vdwg.mxu0
  %v401 = vadd.f32 %v154, %v354
  %v402 = vadd.f32 %v155, %v356
  %v403 = vadd.f32 %v156, %v395
  %v404 = vadd.f32 %v157, %v397
  %v405 = vxor.u32 %v401, 2147483648
  %v406 = vxor.u32 %v402, 2147483648
  %v407 = vxor.u32 %v403, 2147483648
  %v408 = vmul.f32 %v405, 1.442695
  %v409 = vpow.pop %v408
  %v410 = vmul.f32 %v406, 1.442695
  %v411 = vpow.pop %v410
  %v412 = vmul.f32 %v407, 1.442695
  %v413 = vpow.pop %v412
  %v414 = vadd.f32 %v409, 1.0
  %v415 = vadd.f32 %v411, 1.0
  %v416 = vadd.f32 %v413, 1.0
  %v417 = vrcp.pop %v414
  %v418 = vmul.f32 1.0, %v417
  %v419 = vrcp.pop %v415
  %v420 = vmul.f32 1.0, %v419
  %v421 = vrcp.pop %v416
  %v422 = vmul.f32 1.0, %v421
  %v423 = vtanh.pop %v404
  %v424 = vmul.f32 %v420, %v151
  %v425 = vmul.f32 %v418, %v423
  %v426 = vadd.f32 %v424, %v425
  %v427 = vtanh.pop %v426
  %v428 = vmul.f32 %v422, %v427
  %v429 = vpack.c.bf16 %v428, %v428
  %v430 = vpack.c.bf16 %v152, %v152
  %v432 = vlaneseq
  %v433 = vshrl.u32 %v432, 7
  %v434 = vsub.s32 0, %v433
  %v435 = vrot.slane %v149, %v434
  %v436 = vlaneseq
  %v437 = vshrl.u32 %v436, 7
  %v438 = vsub.s32 1, %v437
  %v439 = vrot.slane %v149, %v438
  %v440 = vlaneseq
  %v441 = vshrl.u32 %v440, 7
  %v442 = vsub.s32 2, %v441
  %v443 = vrot.slane %v149, %v442
  %v444 = vlaneseq
  %v445 = vshrl.u32 %v444, 7
  %v446 = vsub.s32 3, %v445
  %v447 = vrot.slane %v149, %v446
  %v516 = vunpack.c.l.b16 %v85
  %v517 = vunpack.c.h.b16 %v85
  %v518 = vunpack.c.l.b16 %v86
  %v519 = vunpack.c.h.b16 %v86
  %v520 = vunpack.c.l.b16 %v87
  %v521 = vunpack.c.h.b16 %v87
  %v522 = vunpack.c.l.b16 %v88
  %v523 = vunpack.c.h.b16 %v88
  %v524 = vunpack.c.l.b16 %v89
  %v525 = vunpack.c.h.b16 %v89
  %v526 = vunpack.c.l.b16 %v90
  %v527 = vunpack.c.h.b16 %v90
  %v528 = vunpack.c.l.b16 %v91
  %v529 = vunpack.c.h.b16 %v91
  %v530 = vunpack.c.l.b16 %v92
  %v531 = vunpack.c.h.b16 %v92
  %v532 = vunpack.c.l.b16 %v93
  %v533 = vunpack.c.h.b16 %v93
  %v534 = vunpack.c.l.b16 %v94
  %v535 = vunpack.c.h.b16 %v94
  %v536 = vunpack.c.l.b16 %v95
  %v537 = vunpack.c.h.b16 %v95
  %v538 = vunpack.c.l.b16 %v96
  %v539 = vunpack.c.h.b16 %v96
  %v540 = vunpack.c.l.b16 %v97
  %v541 = vunpack.c.h.b16 %v97
  %v542 = vunpack.c.l.b16 %v98
  %v543 = vunpack.c.h.b16 %v98
  %v544 = vunpack.c.l.b16 %v99
  %v545 = vunpack.c.h.b16 %v99
  %v546 = vunpack.c.l.b16 %v100
  %v547 = vunpack.c.h.b16 %v100
  %v548 = vunpack.c.l.b16 %v101
  %v549 = vunpack.c.h.b16 %v101
  %v550 = vunpack.c.l.b16 %v102
  %v551 = vunpack.c.h.b16 %v102
  %v552 = vunpack.c.l.b16 %v103
  %v553 = vunpack.c.h.b16 %v103
  %v554 = vunpack.c.l.b16 %v104
  %v555 = vunpack.c.h.b16 %v104
  %v556 = vunpack.c.l.b16 %v105
  %v557 = vunpack.c.h.b16 %v105
  %v558 = vunpack.c.l.b16 %v106
  %v559 = vunpack.c.h.b16 %v106
  %v560 = vunpack.c.l.b16 %v107
  %v561 = vunpack.c.h.b16 %v107
  %v562 = vunpack.c.l.b16 %v108
  %v563 = vunpack.c.h.b16 %v108
  %v564 = vunpack.c.l.b16 %v109
  %v565 = vunpack.c.h.b16 %v109
  %v566 = vunpack.c.l.b16 %v110
  %v567 = vunpack.c.h.b16 %v110
  %v568 = vunpack.c.l.b16 %v111
  %v569 = vunpack.c.h.b16 %v111
  %v570 = vunpack.c.l.b16 %v112
  %v571 = vunpack.c.h.b16 %v112
  %v572 = vunpack.c.l.b16 %v113
  %v573 = vunpack.c.h.b16 %v113
  %v574 = vunpack.c.l.b16 %v114
  %v575 = vunpack.c.h.b16 %v114
  %v576 = vunpack.c.l.b16 %v115
  %v577 = vunpack.c.h.b16 %v115
  %v578 = vunpack.c.l.b16 %v116
  %v579 = vunpack.c.h.b16 %v116
  %v580 = vunpack.c.l.b16 %v117
  %v581 = vunpack.c.h.b16 %v117
  %v582 = vunpack.c.l.b16 %v118
  %v583 = vunpack.c.h.b16 %v118
  %v584 = vunpack.c.l.b16 %v119
  %v585 = vunpack.c.h.b16 %v119
  %v586 = vunpack.c.l.b16 %v120
  %v587 = vunpack.c.h.b16 %v120
  %v588 = vunpack.c.l.b16 %v121
  %v589 = vunpack.c.h.b16 %v121
  %v590 = vunpack.c.l.b16 %v122
  %v591 = vunpack.c.h.b16 %v122
  %v592 = vunpack.c.l.b16 %v123
  %v593 = vunpack.c.h.b16 %v123
  %v594 = vunpack.c.l.b16 %v124
  %v595 = vunpack.c.h.b16 %v124
  %v596 = vunpack.c.l.b16 %v125
  %v597 = vunpack.c.h.b16 %v125
  %v598 = vunpack.c.l.b16 %v126
  %v599 = vunpack.c.h.b16 %v126
  %v600 = vunpack.c.l.b16 %v127
  %v601 = vunpack.c.h.b16 %v127
  %v602 = vunpack.c.l.b16 %v128
  %v603 = vunpack.c.h.b16 %v128
  %v604 = vunpack.c.l.b16 %v129
  %v605 = vunpack.c.h.b16 %v129
  %v606 = vunpack.c.l.b16 %v130
  %v607 = vunpack.c.h.b16 %v130
  %v608 = vunpack.c.l.b16 %v131
  %v609 = vunpack.c.h.b16 %v131
  %v610 = vunpack.c.l.b16 %v132
  %v611 = vunpack.c.h.b16 %v132
  %v612 = vunpack.c.l.b16 %v133
  %v613 = vunpack.c.h.b16 %v133
  %v614 = vunpack.c.l.b16 %v134
  %v615 = vunpack.c.h.b16 %v134
  %v616 = vunpack.c.l.b16 %v135
  %v617 = vunpack.c.h.b16 %v135
  %v618 = vunpack.c.l.b16 %v136
  %v619 = vunpack.c.h.b16 %v136
  %v620 = vunpack.c.l.b16 %v137
  %v621 = vunpack.c.h.b16 %v137
  %v622 = vunpack.c.l.b16 %v138
  %v623 = vunpack.c.h.b16 %v138
  %v624 = vunpack.c.l.b16 %v139
  %v625 = vunpack.c.h.b16 %v139
  %v626 = vunpack.c.l.b16 %v140
  %v627 = vunpack.c.h.b16 %v140
  %v628 = vunpack.c.l.b16 %v141
  %v629 = vunpack.c.h.b16 %v141
  %v630 = vunpack.c.l.b16 %v142
  %v631 = vunpack.c.h.b16 %v142
  %v632 = vunpack.c.l.b16 %v143
  %v633 = vunpack.c.h.b16 %v143
  %v634 = vunpack.c.l.b16 %v144
  %v635 = vunpack.c.h.b16 %v144
  %v636 = vunpack.c.l.b16 %v145
  %v637 = vunpack.c.h.b16 %v145
  %v638 = vunpack.c.l.b16 %v146
  %v639 = vunpack.c.h.b16 %v146
  %v640 = vunpack.c.l.b16 %v147
  %v641 = vunpack.c.h.b16 %v147
  %v642 = vunpack.c.l.b16 %v148
  %v643 = vunpack.c.h.b16 %v148
  %v644 = vpack.c.b16 %v520, %v516
  %v645 = vpack.c.b16 %v521, %v517
  %v646 = vpack.c.b16 %v522, %v518
  %v647 = vpack.c.b16 %v523, %v519
  %v648 = vpack.c.b16 %v528, %v524
  %v649 = vpack.c.b16 %v529, %v525
  %v650 = vpack.c.b16 %v530, %v526
  %v651 = vpack.c.b16 %v531, %v527
  %v652 = vpack.c.b16 %v536, %v532
  %v653 = vpack.c.b16 %v537, %v533
  %v654 = vpack.c.b16 %v538, %v534
  %v655 = vpack.c.b16 %v539, %v535
  %v656 = vpack.c.b16 %v544, %v540
  %v657 = vpack.c.b16 %v545, %v541
  %v658 = vpack.c.b16 %v546, %v542
  %v659 = vpack.c.b16 %v547, %v543
  %v660 = vpack.c.b16 %v552, %v548
  %v661 = vpack.c.b16 %v553, %v549
  %v662 = vpack.c.b16 %v554, %v550
  %v663 = vpack.c.b16 %v555, %v551
  %v664 = vpack.c.b16 %v560, %v556
  %v665 = vpack.c.b16 %v561, %v557
  %v666 = vpack.c.b16 %v562, %v558
  %v667 = vpack.c.b16 %v563, %v559
  %v668 = vpack.c.b16 %v568, %v564
  %v669 = vpack.c.b16 %v569, %v565
  %v670 = vpack.c.b16 %v570, %v566
  %v671 = vpack.c.b16 %v571, %v567
  %v672 = vpack.c.b16 %v576, %v572
  %v673 = vpack.c.b16 %v577, %v573
  %v674 = vpack.c.b16 %v578, %v574
  %v675 = vpack.c.b16 %v579, %v575
  %v676 = vpack.c.b16 %v584, %v580
  %v677 = vpack.c.b16 %v585, %v581
  %v678 = vpack.c.b16 %v586, %v582
  %v679 = vpack.c.b16 %v587, %v583
  %v680 = vpack.c.b16 %v592, %v588
  %v681 = vpack.c.b16 %v593, %v589
  %v682 = vpack.c.b16 %v594, %v590
  %v683 = vpack.c.b16 %v595, %v591
  %v684 = vpack.c.b16 %v600, %v596
  %v685 = vpack.c.b16 %v601, %v597
  %v686 = vpack.c.b16 %v602, %v598
  %v687 = vpack.c.b16 %v603, %v599
  %v688 = vpack.c.b16 %v608, %v604
  %v689 = vpack.c.b16 %v609, %v605
  %v690 = vpack.c.b16 %v610, %v606
  %v691 = vpack.c.b16 %v611, %v607
  %v692 = vpack.c.b16 %v616, %v612
  %v693 = vpack.c.b16 %v617, %v613
  %v694 = vpack.c.b16 %v618, %v614
  %v695 = vpack.c.b16 %v619, %v615
  %v696 = vpack.c.b16 %v624, %v620
  %v697 = vpack.c.b16 %v625, %v621
  %v698 = vpack.c.b16 %v626, %v622
  %v699 = vpack.c.b16 %v627, %v623
  %v700 = vpack.c.b16 %v632, %v628
  %v701 = vpack.c.b16 %v633, %v629
  %v702 = vpack.c.b16 %v634, %v630
  %v703 = vpack.c.b16 %v635, %v631
  %v704 = vpack.c.b16 %v640, %v636
  %v705 = vpack.c.b16 %v641, %v637
  %v706 = vpack.c.b16 %v642, %v638
  %v707 = vpack.c.b16 %v643, %v639
  %772 = vmatprep.subr.bf16.mxu0 %v645
  %773 = vmatpush1.bf16.msra.mxu0 %v644
  %774 = vmatprep.subr.bf16.mxu0 %v649
  %775 = vmatpush1.bf16.msra.mxu0 %v648
  %776 = vmatprep.subr.bf16.mxu0 %v653
  %777 = vmatpush1.bf16.msra.mxu0 %v652
  %778 = vmatprep.subr.bf16.mxu0 %v657
  %779 = vmatpush1.bf16.msra.mxu0 %v656
  %780 = vmatprep.subr.bf16.mxu0 %v661
  %781 = vmatpush1.bf16.msra.mxu0 %v660
  %782 = vmatprep.subr.bf16.mxu0 %v665
  %783 = vmatpush1.bf16.msra.mxu0 %v664
  %784 = vmatprep.subr.bf16.mxu0 %v669
  %785 = vmatpush1.bf16.msra.mxu0 %v668
  %786 = vmatprep.subr.bf16.mxu0 %v673
  %787 = vmatpush1.bf16.msra.mxu0 %v672
  %788 = vmatprep.subr.bf16.mxu0 %v677
  %789 = vmatpush1.bf16.msra.mxu0 %v676
  %790 = vmatprep.subr.bf16.mxu0 %v681
  %791 = vmatpush1.bf16.msra.mxu0 %v680
  %792 = vmatprep.subr.bf16.mxu0 %v685
  %793 = vmatpush1.bf16.msra.mxu0 %v684
  %794 = vmatprep.subr.bf16.mxu0 %v689
  %795 = vmatpush1.bf16.msra.mxu0 %v688
  %796 = vmatprep.subr.bf16.mxu0 %v693
  %797 = vmatpush1.bf16.msra.mxu0 %v692
  %798 = vmatprep.subr.bf16.mxu0 %v697
  %799 = vmatpush1.bf16.msra.mxu0 %v696
  %800 = vmatprep.subr.bf16.mxu0 %v701
  %801 = vmatpush1.bf16.msra.mxu0 %v700
  %802 = vmatprep.subr.bf16.mxu0 %v705
  %803 = vmatpush1.bf16.msra.mxu0 %v704
  %804 = vmatprep.mubr.bf16.mxu0 %v430
  %805 = vmatmul.mubr.bf16.gmra.mrb[0].mxu0 %v429
  %v806 = vpop.f32.mrb[0].mxu0
  %v807 = vadd.f32 %v435, %v806
  %v808 = vpop.f32.mrb[0].mxu0
  %v809 = vadd.f32 %v439, %v808
  %v810 = vpop.f32.mrb[0].mxu0
  %v811 = vpop.f32.mrb[0].mxu0
  %812 = vdwg.mxu0
  %813 = vmatprep.subr.bf16.mxu0 %v647
  %814 = vmatpush1.bf16.msra.mxu0 %v646
  %815 = vmatprep.subr.bf16.mxu0 %v651
  %816 = vmatpush1.bf16.msra.mxu0 %v650
  %817 = vmatprep.subr.bf16.mxu0 %v655
  %818 = vmatpush1.bf16.msra.mxu0 %v654
  %819 = vmatprep.subr.bf16.mxu0 %v659
  %820 = vmatpush1.bf16.msra.mxu0 %v658
  %821 = vmatprep.subr.bf16.mxu0 %v663
  %822 = vmatpush1.bf16.msra.mxu0 %v662
  %823 = vmatprep.subr.bf16.mxu0 %v667
  %824 = vmatpush1.bf16.msra.mxu0 %v666
  %825 = vmatprep.subr.bf16.mxu0 %v671
  %826 = vmatpush1.bf16.msra.mxu0 %v670
  %827 = vmatprep.subr.bf16.mxu0 %v675
  %828 = vmatpush1.bf16.msra.mxu0 %v674
  %829 = vmatprep.subr.bf16.mxu0 %v679
  %830 = vmatpush1.bf16.msra.mxu0 %v678
  %831 = vmatprep.subr.bf16.mxu0 %v683
  %832 = vmatpush1.bf16.msra.mxu0 %v682
  %833 = vmatprep.subr.bf16.mxu0 %v687
  %834 = vmatpush1.bf16.msra.mxu0 %v686
  %835 = vmatprep.subr.bf16.mxu0 %v691
  %836 = vmatpush1.bf16.msra.mxu0 %v690
  %837 = vmatprep.subr.bf16.mxu0 %v695
  %838 = vmatpush1.bf16.msra.mxu0 %v694
  %839 = vmatprep.subr.bf16.mxu0 %v699
  %840 = vmatpush1.bf16.msra.mxu0 %v698
  %841 = vmatprep.subr.bf16.mxu0 %v703
  %842 = vmatpush1.bf16.msra.mxu0 %v702
  %843 = vmatprep.subr.bf16.mxu0 %v707
  %844 = vmatpush1.bf16.msra.mxu0 %v706
  %845 = vmatprep.mubr.bf16.mxu0 %v430
  %846 = vmatmul.mubr.bf16.gmra.mrb[0].mxu0 %v429
  %v847 = vpop.f32.mrb[0].mxu0
  %v848 = vadd.f32 %v443, %v847
  %v849 = vpop.f32.mrb[0].mxu0
  %v850 = vadd.f32 %v447, %v849
  %v851 = vpop.f32.mrb[0].mxu0
  %v852 = vpop.f32.mrb[0].mxu0
  %853 = vdwg.mxu0
  %v854 = vxor.u32 %v807, 2147483648
  %v855 = vxor.u32 %v809, 2147483648
  %v856 = vxor.u32 %v848, 2147483648
  %v857 = vmul.f32 %v854, 1.442695
  %v858 = vpow.pop %v857
  %v859 = vmul.f32 %v855, 1.442695
  %v860 = vpow.pop %v859
  %v861 = vmul.f32 %v856, 1.442695
  %v862 = vpow.pop %v861
  %v863 = vadd.f32 %v858, 1.0
  %v864 = vadd.f32 %v860, 1.0
  %v865 = vadd.f32 %v862, 1.0
  %v866 = vrcp.pop %v863
  %v867 = vmul.f32 1.0, %v866
  %v868 = vrcp.pop %v864
  %v869 = vmul.f32 1.0, %v868
  %v870 = vrcp.pop %v865
  %v871 = vmul.f32 1.0, %v870
  %v872 = vtanh.pop %v850
  %v873 = vmul.f32 %v869, %v153
  %v874 = vmul.f32 %v867, %v872
  %v875 = vadd.f32 %v873, %v874
  %v876 = vtanh.pop %v875
  %v877 = vmul.f32 %v871, %v876
  %s878 = scalar_lea.vmem %s0, 32
  %v879 = vld [vmem:[%s878] sm:$0xff]
  %v880 = vld [vmem:[%s878 + $0x8] sm:$0xff]
  %v881 = vld [vmem:[%s878 + $0x10] sm:$0xff]
  %v882 = vld [vmem:[%s878 + $0x18] sm:$0xff]
  %883 = vmatprep.subr.bf16.mxu0 %v256
  %884 = vmatpush1.bf16.msra.mxu0 %v255
  %885 = vmatprep.subr.bf16.mxu0 %v260
  %886 = vmatpush1.bf16.msra.mxu0 %v259
  %887 = vmatprep.subr.bf16.mxu0 %v264
  %888 = vmatpush1.bf16.msra.mxu0 %v263
  %889 = vmatprep.subr.bf16.mxu0 %v268
  %890 = vmatpush1.bf16.msra.mxu0 %v267
  %891 = vmatprep.subr.bf16.mxu0 %v272
  %892 = vmatpush1.bf16.msra.mxu0 %v271
  %893 = vmatprep.subr.bf16.mxu0 %v276
  %894 = vmatpush1.bf16.msra.mxu0 %v275
  %895 = vmatprep.subr.bf16.mxu0 %v280
  %896 = vmatpush1.bf16.msra.mxu0 %v279
  %897 = vmatprep.subr.bf16.mxu0 %v284
  %898 = vmatpush1.bf16.msra.mxu0 %v283
  %899 = vmatprep.subr.bf16.mxu0 0
  %900 = vmatpush1.bf16.msra.mxu0 0
  %901 = vmatprep.subr.bf16.mxu0 0
  %902 = vmatpush1.bf16.msra.mxu0 0
  %903 = vmatprep.subr.bf16.mxu0 0
  %904 = vmatpush1.bf16.msra.mxu0 0
  %905 = vmatprep.subr.bf16.mxu0 0
  %906 = vmatpush1.bf16.msra.mxu0 0
  %907 = vmatprep.subr.bf16.mxu0 0
  %908 = vmatpush1.bf16.msra.mxu0 0
  %909 = vmatprep.subr.bf16.mxu0 0
  %910 = vmatpush1.bf16.msra.mxu0 0
  %911 = vmatprep.subr.bf16.mxu0 0
  %912 = vmatpush1.bf16.msra.mxu0 0
  %913 = vmatprep.subr.bf16.mxu0 0
  %914 = vmatpush1.bf16.msra.mxu0 0
  %915 = vmatprep.mubr.bf16.mxu0 0
  %916 = vmatmul.mubr.bf16.gmra.mrb[0].mxu0 %v429
  %v917 = vpop.f32.mrb[0].mxu0
  %v918 = vadd.f32 0.0, %v917
  %v919 = vpop.f32.mrb[0].mxu0
  %v920 = vadd.f32 0.0, %v919
  %v921 = vpop.f32.mrb[0].mxu0
  %v922 = vpop.f32.mrb[0].mxu0
  %923 = vdwg.mxu0
  %924 = vmatprep.subr.bf16.mxu0 %v258
  %925 = vmatpush1.bf16.msra.mxu0 %v257
  %926 = vmatprep.subr.bf16.mxu0 %v262
  %927 = vmatpush1.bf16.msra.mxu0 %v261
  %928 = vmatprep.subr.bf16.mxu0 %v266
  %929 = vmatpush1.bf16.msra.mxu0 %v265
  %930 = vmatprep.subr.bf16.mxu0 %v270
  %931 = vmatpush1.bf16.msra.mxu0 %v269
  %932 = vmatprep.subr.bf16.mxu0 %v274
  %933 = vmatpush1.bf16.msra.mxu0 %v273
  %934 = vmatprep.subr.bf16.mxu0 %v278
  %935 = vmatpush1.bf16.msra.mxu0 %v277
  %936 = vmatprep.subr.bf16.mxu0 %v282
  %937 = vmatpush1.bf16.msra.mxu0 %v281
  %938 = vmatprep.subr.bf16.mxu0 %v286
  %939 = vmatpush1.bf16.msra.mxu0 %v285
  %940 = vmatprep.subr.bf16.mxu0 0
  %941 = vmatpush1.bf16.msra.mxu0 0
  %942 = vmatprep.subr.bf16.mxu0 0
  %943 = vmatpush1.bf16.msra.mxu0 0
  %944 = vmatprep.subr.bf16.mxu0 0
  %945 = vmatpush1.bf16.msra.mxu0 0
  %946 = vmatprep.subr.bf16.mxu0 0
  %947 = vmatpush1.bf16.msra.mxu0 0
  %948 = vmatprep.subr.bf16.mxu0 0
  %949 = vmatpush1.bf16.msra.mxu0 0
  %950 = vmatprep.subr.bf16.mxu0 0
  %951 = vmatpush1.bf16.msra.mxu0 0
  %952 = vmatprep.subr.bf16.mxu0 0
  %953 = vmatpush1.bf16.msra.mxu0 0
  %954 = vmatprep.subr.bf16.mxu0 0
  %955 = vmatpush1.bf16.msra.mxu0 0
  %956 = vmatprep.mubr.bf16.mxu0 0
  %957 = vmatmul.mubr.bf16.gmra.mrb[0].mxu0 %v429
  %v958 = vpop.f32.mrb[0].mxu0
  %v959 = vadd.f32 0.0, %v958
  %v960 = vpop.f32.mrb[0].mxu0
  %v961 = vadd.f32 0.0, %v960
  %v962 = vpop.f32.mrb[0].mxu0
  %v963 = vpop.f32.mrb[0].mxu0
  %964 = vdwg.mxu0
  %v965 = vadd.f32 %v879, %v918
  %v966 = vadd.f32 %v880, %v920
  %v967 = vadd.f32 %v881, %v959
  %v968 = vadd.f32 %v882, %v961
  %v969 = vxor.u32 %v965, 2147483648
  %v970 = vxor.u32 %v966, 2147483648
  %v971 = vxor.u32 %v967, 2147483648
  %v972 = vmul.f32 %v969, 1.442695
  %v973 = vpow.pop %v972
  %v974 = vmul.f32 %v970, 1.442695
  %v975 = vpow.pop %v974
  %v976 = vmul.f32 %v971, 1.442695
  %v977 = vpow.pop %v976
  %v978 = vadd.f32 %v973, 1.0
  %v979 = vadd.f32 %v975, 1.0
  %v980 = vadd.f32 %v977, 1.0
  %v981 = vrcp.pop %v978
  %v982 = vmul.f32 1.0, %v981
  %v983 = vrcp.pop %v979
  %v984 = vmul.f32 1.0, %v983
  %v985 = vrcp.pop %v980
  %v986 = vmul.f32 1.0, %v985
  %v987 = vtanh.pop %v968
  %v988 = vmul.f32 %v984, %v426
  %v989 = vmul.f32 %v982, %v987
  %v990 = vadd.f32 %v988, %v989
  %v991 = vtanh.pop %v990
  %v992 = vmul.f32 %v986, %v991
  %v993 = vpack.c.bf16 %v992, %v992
  %v994 = vpack.c.bf16 %v877, %v877
  %995 = vmatprep.subr.bf16.mxu0 %v645
  %996 = vmatpush1.bf16.msra.mxu0 %v644
  %997 = vmatprep.subr.bf16.mxu0 %v649
  %998 = vmatpush1.bf16.msra.mxu0 %v648
  %999 = vmatprep.subr.bf16.mxu0 %v653
  %1000 = vmatpush1.bf16.msra.mxu0 %v652
  %1001 = vmatprep.subr.bf16.mxu0 %v657
  %1002 = vmatpush1.bf16.msra.mxu0 %v656
  %1003 = vmatprep.subr.bf16.mxu0 %v661
  %1004 = vmatpush1.bf16.msra.mxu0 %v660
  %1005 = vmatprep.subr.bf16.mxu0 %v665
  %1006 = vmatpush1.bf16.msra.mxu0 %v664
  %1007 = vmatprep.subr.bf16.mxu0 %v669
  %1008 = vmatpush1.bf16.msra.mxu0 %v668
  %1009 = vmatprep.subr.bf16.mxu0 %v673
  %1010 = vmatpush1.bf16.msra.mxu0 %v672
  %1011 = vmatprep.subr.bf16.mxu0 %v677
  %1012 = vmatpush1.bf16.msra.mxu0 %v676
  %1013 = vmatprep.subr.bf16.mxu0 %v681
  %1014 = vmatpush1.bf16.msra.mxu0 %v680
  %1015 = vmatprep.subr.bf16.mxu0 %v685
  %1016 = vmatpush1.bf16.msra.mxu0 %v684
  %1017 = vmatprep.subr.bf16.mxu0 %v689
  %1018 = vmatpush1.bf16.msra.mxu0 %v688
  %1019 = vmatprep.subr.bf16.mxu0 %v693
  %1020 = vmatpush1.bf16.msra.mxu0 %v692
  %1021 = vmatprep.subr.bf16.mxu0 %v697
  %1022 = vmatpush1.bf16.msra.mxu0 %v696
  %1023 = vmatprep.subr.bf16.mxu0 %v701
  %1024 = vmatpush1.bf16.msra.mxu0 %v700
  %1025 = vmatprep.subr.bf16.mxu0 %v705
  %1026 = vmatpush1.bf16.msra.mxu0 %v704
  %1027 = vmatprep.mubr.bf16.mxu0 %v994
  %1028 = vmatmul.mubr.bf16.gmra.mrb[0].mxu0 %v993
  %v1029 = vpop.f32.mrb[0].mxu0
  %v1030 = vadd.f32 %v435, %v1029
  %v1031 = vpop.f32.mrb[0].mxu0
  %v1032 = vadd.f32 %v439, %v1031
  %v1033 = vpop.f32.mrb[0].mxu0
  %v1034 = vpop.f32.mrb[0].mxu0
  %1035 = vdwg.mxu0
  %1036 = vmatprep.subr.bf16.mxu0 %v647
  %1037 = vmatpush1.bf16.msra.mxu0 %v646
  %1038 = vmatprep.subr.bf16.mxu0 %v651
  %1039 = vmatpush1.bf16.msra.mxu0 %v650
  %1040 = vmatprep.subr.bf16.mxu0 %v655
  %1041 = vmatpush1.bf16.msra.mxu0 %v654
  %1042 = vmatprep.subr.bf16.mxu0 %v659
  %1043 = vmatpush1.bf16.msra.mxu0 %v658
  %1044 = vmatprep.subr.bf16.mxu0 %v663
  %1045 = vmatpush1.bf16.msra.mxu0 %v662
  %1046 = vmatprep.subr.bf16.mxu0 %v667
  %1047 = vmatpush1.bf16.msra.mxu0 %v666
  %1048 = vmatprep.subr.bf16.mxu0 %v671
  %1049 = vmatpush1.bf16.msra.mxu0 %v670
  %1050 = vmatprep.subr.bf16.mxu0 %v675
  %1051 = vmatpush1.bf16.msra.mxu0 %v674
  %1052 = vmatprep.subr.bf16.mxu0 %v679
  %1053 = vmatpush1.bf16.msra.mxu0 %v678
  %1054 = vmatprep.subr.bf16.mxu0 %v683
  %1055 = vmatpush1.bf16.msra.mxu0 %v682
  %1056 = vmatprep.subr.bf16.mxu0 %v687
  %1057 = vmatpush1.bf16.msra.mxu0 %v686
  %1058 = vmatprep.subr.bf16.mxu0 %v691
  %1059 = vmatpush1.bf16.msra.mxu0 %v690
  %1060 = vmatprep.subr.bf16.mxu0 %v695
  %1061 = vmatpush1.bf16.msra.mxu0 %v694
  %1062 = vmatprep.subr.bf16.mxu0 %v699
  %1063 = vmatpush1.bf16.msra.mxu0 %v698
  %1064 = vmatprep.subr.bf16.mxu0 %v703
  %1065 = vmatpush1.bf16.msra.mxu0 %v702
  %1066 = vmatprep.subr.bf16.mxu0 %v707
  %1067 = vmatpush1.bf16.msra.mxu0 %v706
  %1068 = vmatprep.mubr.bf16.mxu0 %v994
  %1069 = vmatmul.mubr.bf16.gmra.mrb[0].mxu0 %v993
  %v1070 = vpop.f32.mrb[0].mxu0
  %v1071 = vadd.f32 %v443, %v1070
  %v1072 = vpop.f32.mrb[0].mxu0
  %v1073 = vadd.f32 %v447, %v1072
  %v1074 = vpop.f32.mrb[0].mxu0
  %v1075 = vpop.f32.mrb[0].mxu0
  %1076 = vdwg.mxu0
  %v1077 = vxor.u32 %v1030, 2147483648
  %v1078 = vxor.u32 %v1032, 2147483648
  %v1079 = vxor.u32 %v1071, 2147483648
  %v1080 = vmul.f32 %v1077, 1.442695
  %v1081 = vpow.pop %v1080
  %v1082 = vmul.f32 %v1078, 1.442695
  %v1083 = vpow.pop %v1082
  %v1084 = vmul.f32 %v1079, 1.442695
  %v1085 = vpow.pop %v1084
  %v1086 = vadd.f32 %v1081, 1.0
  %v1087 = vadd.f32 %v1083, 1.0
  %v1088 = vadd.f32 %v1085, 1.0
  %v1089 = vrcp.pop %v1086
  %v1090 = vmul.f32 1.0, %v1089
  %v1091 = vrcp.pop %v1087
  %v1092 = vmul.f32 1.0, %v1091
  %v1093 = vrcp.pop %v1088
  %v1094 = vmul.f32 1.0, %v1093
  %v1095 = vtanh.pop %v1073
  %v1096 = vmul.f32 %v1092, %v875
  %v1097 = vmul.f32 %v1090, %v1095
  %v1098 = vadd.f32 %v1096, %v1097
  %v1099 = vtanh.pop %v1098
  %v1100 = vmul.f32 %v1094, %v1099
  %s1101 = scalar_lea.vmem %s0, 64
  %v1102 = vld [vmem:[%s1101] sm:$0xff]
  %v1103 = vld [vmem:[%s1101 + $0x8] sm:$0xff]
  %v1104 = vld [vmem:[%s1101 + $0x10] sm:$0xff]
  %v1105 = vld [vmem:[%s1101 + $0x18] sm:$0xff]
  %1106 = vmatprep.subr.bf16.mxu0 %v256
  %1107 = vmatpush1.bf16.msra.mxu0 %v255
  %1108 = vmatprep.subr.bf16.mxu0 %v260
  %1109 = vmatpush1.bf16.msra.mxu0 %v259
  %1110 = vmatprep.subr.bf16.mxu0 %v264
  %1111 = vmatpush1.bf16.msra.mxu0 %v263
  %1112 = vmatprep.subr.bf16.mxu0 %v268
  %1113 = vmatpush1.bf16.msra.mxu0 %v267
  %1114 = vmatprep.subr.bf16.mxu0 %v272
  %1115 = vmatpush1.bf16.msra.mxu0 %v271
  %1116 = vmatprep.subr.bf16.mxu0 %v276
  %1117 = vmatpush1.bf16.msra.mxu0 %v275
  %1118 = vmatprep.subr.bf16.mxu0 %v280
  %1119 = vmatpush1.bf16.msra.mxu0 %v279
  %1120 = vmatprep.subr.bf16.mxu0 %v284
  %1121 = vmatpush1.bf16.msra.mxu0 %v283
  %1122 = vmatprep.subr.bf16.mxu0 0
  %1123 = vmatpush1.bf16.msra.mxu0 0
  %1124 = vmatprep.subr.bf16.mxu0 0
  %1125 = vmatpush1.bf16.msra.mxu0 0
  %1126 = vmatprep.subr.bf16.mxu0 0
  %1127 = vmatpush1.bf16.msra.mxu0 0
  %1128 = vmatprep.subr.bf16.mxu0 0
  %1129 = vmatpush1.bf16.msra.mxu0 0
  %1130 = vmatprep.subr.bf16.mxu0 0
  %1131 = vmatpush1.bf16.msra.mxu0 0
  %1132 = vmatprep.subr.bf16.mxu0 0
  %1133 = vmatpush1.bf16.msra.mxu0 0
  %1134 = vmatprep.subr.bf16.mxu0 0
  %1135 = vmatpush1.bf16.msra.mxu0 0
  %1136 = vmatprep.subr.bf16.mxu0 0
  %1137 = vmatpush1.bf16.msra.mxu0 0
  %1138 = vmatprep.mubr.bf16.mxu0 0
  %1139 = vmatmul.mubr.bf16.gmra.mrb[0].mxu0 %v993
  %v1140 = vpop.f32.mrb[0].mxu0
  %v1141 = vadd.f32 0.0, %v1140
  %v1142 = vpop.f32.mrb[0].mxu0
  %v1143 = vadd.f32 0.0, %v1142
  %v1144 = vpop.f32.mrb[0].mxu0
  %v1145 = vpop.f32.mrb[0].mxu0
  %1146 = vdwg.mxu0
  %1147 = vmatprep.subr.bf16.mxu0 %v258
  %1148 = vmatpush1.bf16.msra.mxu0 %v257
  %1149 = vmatprep.subr.bf16.mxu0 %v262
  %1150 = vmatpush1.bf16.msra.mxu0 %v261
  %1151 = vmatprep.subr.bf16.mxu0 %v266
  %1152 = vmatpush1.bf16.msra.mxu0 %v265
  %1153 = vmatprep.subr.bf16.mxu0 %v270
  %1154 = vmatpush1.bf16.msra.mxu0 %v269
  %1155 = vmatprep.subr.bf16.mxu0 %v274
  %1156 = vmatpush1.bf16.msra.mxu0 %v273
  %1157 = vmatprep.subr.bf16.mxu0 %v278
  %1158 = vmatpush1.bf16.msra.mxu0 %v277
  %1159 = vmatprep.subr.bf16.mxu0 %v282
  %1160 = vmatpush1.bf16.msra.mxu0 %v281
  %1161 = vmatprep.subr.bf16.mxu0 %v286
  %1162 = vmatpush1.bf16.msra.mxu0 %v285
  %1163 = vmatprep.subr.bf16.mxu0 0
  %1164 = vmatpush1.bf16.msra.mxu0 0
  %1165 = vmatprep.subr.bf16.mxu0 0
  %1166 = vmatpush1.bf16.msra.mxu0 0
  %1167 = vmatprep.subr.bf16.mxu0 0
  %1168 = vmatpush1.bf16.msra.mxu0 0
  %1169 = vmatprep.subr.bf16.mxu0 0
  %1170 = vmatpush1.bf16.msra.mxu0 0
  %1171 = vmatprep.subr.bf16.mxu0 0
  %1172 = vmatpush1.bf16.msra.mxu0 0
  %1173 = vmatprep.subr.bf16.mxu0 0
  %1174 = vmatpush1.bf16.msra.mxu0 0
  %1175 = vmatprep.subr.bf16.mxu0 0
  %1176 = vmatpush1.bf16.msra.mxu0 0
  %1177 = vmatprep.subr.bf16.mxu0 0
  %1178 = vmatpush1.bf16.msra.mxu0 0
  %1179 = vmatprep.mubr.bf16.mxu0 0
  %1180 = vmatmul.mubr.bf16.gmra.mrb[0].mxu0 %v993
  %v1181 = vpop.f32.mrb[0].mxu0
  %v1182 = vadd.f32 0.0, %v1181
  %v1183 = vpop.f32.mrb[0].mxu0
  %v1184 = vadd.f32 0.0, %v1183
  %v1185 = vpop.f32.mrb[0].mxu0
  %v1186 = vpop.f32.mrb[0].mxu0
  %1187 = vdwg.mxu0
  %v1188 = vadd.f32 %v1102, %v1141
  %v1189 = vadd.f32 %v1103, %v1143
  %v1190 = vadd.f32 %v1104, %v1182
  %v1191 = vadd.f32 %v1105, %v1184
  %v1192 = vxor.u32 %v1188, 2147483648
  %v1193 = vxor.u32 %v1189, 2147483648
  %v1194 = vxor.u32 %v1190, 2147483648
  %v1195 = vmul.f32 %v1192, 1.442695
  %v1196 = vpow.pop %v1195
  %v1197 = vmul.f32 %v1193, 1.442695
  %v1198 = vpow.pop %v1197
  %v1199 = vmul.f32 %v1194, 1.442695
  %v1200 = vpow.pop %v1199
  %v1201 = vadd.f32 %v1196, 1.0
  %v1202 = vadd.f32 %v1198, 1.0
  %v1203 = vadd.f32 %v1200, 1.0
  %v1204 = vrcp.pop %v1201
  %v1205 = vmul.f32 1.0, %v1204
  %v1206 = vrcp.pop %v1202
  %v1207 = vmul.f32 1.0, %v1206
  %v1208 = vrcp.pop %v1203
  %v1209 = vmul.f32 1.0, %v1208
  %v1210 = vtanh.pop %v1191
  %v1211 = vmul.f32 %v1207, %v990
  %v1212 = vmul.f32 %v1205, %v1210
  %v1213 = vadd.f32 %v1211, %v1212
  %v1214 = vtanh.pop %v1213
  %v1215 = vmul.f32 %v1209, %v1214
  %v1216 = vpack.c.bf16 %v1215, %v1215
  %v1217 = vpack.c.bf16 %v1100, %v1100
  %1218 = vmatprep.subr.bf16.mxu0 %v645
  %1219 = vmatpush1.bf16.msra.mxu0 %v644
  %1220 = vmatprep.subr.bf16.mxu0 %v649
  %1221 = vmatpush1.bf16.msra.mxu0 %v648
  %1222 = vmatprep.subr.bf16.mxu0 %v653
  %1223 = vmatpush1.bf16.msra.mxu0 %v652
  %1224 = vmatprep.subr.bf16.mxu0 %v657
  %1225 = vmatpush1.bf16.msra.mxu0 %v656
  %1226 = vmatprep.subr.bf16.mxu0 %v661
  %1227 = vmatpush1.bf16.msra.mxu0 %v660
  %1228 = vmatprep.subr.bf16.mxu0 %v665
  %1229 = vmatpush1.bf16.msra.mxu0 %v664
  %1230 = vmatprep.subr.bf16.mxu0 %v669
  %1231 = vmatpush1.bf16.msra.mxu0 %v668
  %1232 = vmatprep.subr.bf16.mxu0 %v673
  %1233 = vmatpush1.bf16.msra.mxu0 %v672
  %1234 = vmatprep.subr.bf16.mxu0 %v677
  %1235 = vmatpush1.bf16.msra.mxu0 %v676
  %1236 = vmatprep.subr.bf16.mxu0 %v681
  %1237 = vmatpush1.bf16.msra.mxu0 %v680
  %1238 = vmatprep.subr.bf16.mxu0 %v685
  %1239 = vmatpush1.bf16.msra.mxu0 %v684
  %1240 = vmatprep.subr.bf16.mxu0 %v689
  %1241 = vmatpush1.bf16.msra.mxu0 %v688
  %1242 = vmatprep.subr.bf16.mxu0 %v693
  %1243 = vmatpush1.bf16.msra.mxu0 %v692
  %1244 = vmatprep.subr.bf16.mxu0 %v697
  %1245 = vmatpush1.bf16.msra.mxu0 %v696
  %1246 = vmatprep.subr.bf16.mxu0 %v701
  %1247 = vmatpush1.bf16.msra.mxu0 %v700
  %1248 = vmatprep.subr.bf16.mxu0 %v705
  %1249 = vmatpush1.bf16.msra.mxu0 %v704
  %1250 = vmatprep.mubr.bf16.mxu0 %v1217
  %1251 = vmatmul.mubr.bf16.gmra.mrb[0].mxu0 %v1216
  %v1252 = vpop.f32.mrb[0].mxu0
  %v1253 = vadd.f32 %v435, %v1252
  %v1254 = vpop.f32.mrb[0].mxu0
  %v1255 = vadd.f32 %v439, %v1254
  %v1256 = vpop.f32.mrb[0].mxu0
  %v1257 = vpop.f32.mrb[0].mxu0
  %1258 = vdwg.mxu0
  %1259 = vmatprep.subr.bf16.mxu0 %v647
  %1260 = vmatpush1.bf16.msra.mxu0 %v646
  %1261 = vmatprep.subr.bf16.mxu0 %v651
  %1262 = vmatpush1.bf16.msra.mxu0 %v650
  %1263 = vmatprep.subr.bf16.mxu0 %v655
  %1264 = vmatpush1.bf16.msra.mxu0 %v654
  %1265 = vmatprep.subr.bf16.mxu0 %v659
  %1266 = vmatpush1.bf16.msra.mxu0 %v658
  %1267 = vmatprep.subr.bf16.mxu0 %v663
  %1268 = vmatpush1.bf16.msra.mxu0 %v662
  %1269 = vmatprep.subr.bf16.mxu0 %v667
  %1270 = vmatpush1.bf16.msra.mxu0 %v666
  %1271 = vmatprep.subr.bf16.mxu0 %v671
  %1272 = vmatpush1.bf16.msra.mxu0 %v670
  %1273 = vmatprep.subr.bf16.mxu0 %v675
  %1274 = vmatpush1.bf16.msra.mxu0 %v674
  %1275 = vmatprep.subr.bf16.mxu0 %v679
  %1276 = vmatpush1.bf16.msra.mxu0 %v678
  %1277 = vmatprep.subr.bf16.mxu0 %v683
  %1278 = vmatpush1.bf16.msra.mxu0 %v682
  %1279 = vmatprep.subr.bf16.mxu0 %v687
  %1280 = vmatpush1.bf16.msra.mxu0 %v686
  %1281 = vmatprep.subr.bf16.mxu0 %v691
  %1282 = vmatpush1.bf16.msra.mxu0 %v690
  %1283 = vmatprep.subr.bf16.mxu0 %v695
  %1284 = vmatpush1.bf16.msra.mxu0 %v694
  %1285 = vmatprep.subr.bf16.mxu0 %v699
  %1286 = vmatpush1.bf16.msra.mxu0 %v698
  %1287 = vmatprep.subr.bf16.mxu0 %v703
  %1288 = vmatpush1.bf16.msra.mxu0 %v702
  %1289 = vmatprep.subr.bf16.mxu0 %v707
  %1290 = vmatpush1.bf16.msra.mxu0 %v706
  %1291 = vmatprep.mubr.bf16.mxu0 %v1217
  %1292 = vmatmul.mubr.bf16.gmra.mrb[0].mxu0 %v1216
  %v1293 = vpop.f32.mrb[0].mxu0
  %v1294 = vadd.f32 %v443, %v1293
  %v1295 = vpop.f32.mrb[0].mxu0
  %v1296 = vadd.f32 %v447, %v1295
  %v1297 = vpop.f32.mrb[0].mxu0
  %v1298 = vpop.f32.mrb[0].mxu0
  %1299 = vdwg.mxu0
  %v1300 = vxor.u32 %v1253, 2147483648
  %v1301 = vxor.u32 %v1255, 2147483648
  %v1302 = vxor.u32 %v1294, 2147483648
  %v1303 = vmul.f32 %v1300, 1.442695
  %v1304 = vpow.pop %v1303
  %v1305 = vmul.f32 %v1301, 1.442695
  %v1306 = vpow.pop %v1305
  %v1307 = vmul.f32 %v1302, 1.442695
  %v1308 = vpow.pop %v1307
  %v1309 = vadd.f32 %v1304, 1.0
  %v1310 = vadd.f32 %v1306, 1.0
  %v1311 = vadd.f32 %v1308, 1.0
  %v1312 = vrcp.pop %v1309
  %v1313 = vmul.f32 1.0, %v1312
  %v1314 = vrcp.pop %v1310
  %v1315 = vmul.f32 1.0, %v1314
  %v1316 = vrcp.pop %v1311
  %v1317 = vmul.f32 1.0, %v1316
  %v1318 = vtanh.pop %v1296
  %v1319 = vmul.f32 %v1315, %v1098
  %v1320 = vmul.f32 %v1313, %v1318
  %v1321 = vadd.f32 %v1319, %v1320
  %v1322 = vtanh.pop %v1321
  %v1323 = vmul.f32 %v1317, %v1322
  %s1324 = scalar_lea.vmem %s0, 96
  %v1325 = vld [vmem:[%s1324] sm:$0xff]
  %v1326 = vld [vmem:[%s1324 + $0x8] sm:$0xff]
  %v1327 = vld [vmem:[%s1324 + $0x10] sm:$0xff]
  %v1328 = vld [vmem:[%s1324 + $0x18] sm:$0xff]
  %1329 = vmatprep.subr.bf16.mxu0 %v256
  %1330 = vmatpush1.bf16.msra.mxu0 %v255
  %1331 = vmatprep.subr.bf16.mxu0 %v260
  %1332 = vmatpush1.bf16.msra.mxu0 %v259
  %1333 = vmatprep.subr.bf16.mxu0 %v264
  %1334 = vmatpush1.bf16.msra.mxu0 %v263
  %1335 = vmatprep.subr.bf16.mxu0 %v268
  %1336 = vmatpush1.bf16.msra.mxu0 %v267
  %1337 = vmatprep.subr.bf16.mxu0 %v272
  %1338 = vmatpush1.bf16.msra.mxu0 %v271
  %1339 = vmatprep.subr.bf16.mxu0 %v276
  %1340 = vmatpush1.bf16.msra.mxu0 %v275
  %1341 = vmatprep.subr.bf16.mxu0 %v280
  %1342 = vmatpush1.bf16.msra.mxu0 %v279
  %1343 = vmatprep.subr.bf16.mxu0 %v284
  %1344 = vmatpush1.bf16.msra.mxu0 %v283
  %1345 = vmatprep.subr.bf16.mxu0 0
  %1346 = vmatpush1.bf16.msra.mxu0 0
  %1347 = vmatprep.subr.bf16.mxu0 0
  %1348 = vmatpush1.bf16.msra.mxu0 0
  %1349 = vmatprep.subr.bf16.mxu0 0
  %1350 = vmatpush1.bf16.msra.mxu0 0
  %1351 = vmatprep.subr.bf16.mxu0 0
  %1352 = vmatpush1.bf16.msra.mxu0 0
  %1353 = vmatprep.subr.bf16.mxu0 0
  %1354 = vmatpush1.bf16.msra.mxu0 0
  %1355 = vmatprep.subr.bf16.mxu0 0
  %1356 = vmatpush1.bf16.msra.mxu0 0
  %1357 = vmatprep.subr.bf16.mxu0 0
  %1358 = vmatpush1.bf16.msra.mxu0 0
  %1359 = vmatprep.subr.bf16.mxu0 0
  %1360 = vmatpush1.bf16.msra.mxu0 0
  %1361 = vmatprep.mubr.bf16.mxu0 0
  %1362 = vmatmul.mubr.bf16.gmra.mrb[0].mxu0 %v1216
  %v1363 = vpop.f32.mrb[0].mxu0
  %v1364 = vadd.f32 0.0, %v1363
  %v1365 = vpop.f32.mrb[0].mxu0
  %v1366 = vadd.f32 0.0, %v1365
  %v1367 = vpop.f32.mrb[0].mxu0
  %v1368 = vpop.f32.mrb[0].mxu0
  %1369 = vdwg.mxu0
  %1370 = vmatprep.subr.bf16.mxu0 %v258
  %1371 = vmatpush1.bf16.msra.mxu0 %v257
  %1372 = vmatprep.subr.bf16.mxu0 %v262
  %1373 = vmatpush1.bf16.msra.mxu0 %v261
  %1374 = vmatprep.subr.bf16.mxu0 %v266
  %1375 = vmatpush1.bf16.msra.mxu0 %v265
  %1376 = vmatprep.subr.bf16.mxu0 %v270
  %1377 = vmatpush1.bf16.msra.mxu0 %v269
  %1378 = vmatprep.subr.bf16.mxu0 %v274
  %1379 = vmatpush1.bf16.msra.mxu0 %v273
  %1380 = vmatprep.subr.bf16.mxu0 %v278
  %1381 = vmatpush1.bf16.msra.mxu0 %v277
  %1382 = vmatprep.subr.bf16.mxu0 %v282
  %1383 = vmatpush1.bf16.msra.mxu0 %v281
  %1384 = vmatprep.subr.bf16.mxu0 %v286
  %1385 = vmatpush1.bf16.msra.mxu0 %v285
  %1386 = vmatprep.subr.bf16.mxu0 0
  %1387 = vmatpush1.bf16.msra.mxu0 0
  %1388 = vmatprep.subr.bf16.mxu0 0
  %1389 = vmatpush1.bf16.msra.mxu0 0
  %1390 = vmatprep.subr.bf16.mxu0 0
  %1391 = vmatpush1.bf16.msra.mxu0 0
  %1392 = vmatprep.subr.bf16.mxu0 0
  %1393 = vmatpush1.bf16.msra.mxu0 0
  %1394 = vmatprep.subr.bf16.mxu0 0
  %1395 = vmatpush1.bf16.msra.mxu0 0
  %1396 = vmatprep.subr.bf16.mxu0 0
  %1397 = vmatpush1.bf16.msra.mxu0 0
  %1398 = vmatprep.subr.bf16.mxu0 0
  %1399 = vmatpush1.bf16.msra.mxu0 0
  %1400 = vmatprep.subr.bf16.mxu0 0
  %1401 = vmatpush1.bf16.msra.mxu0 0
  %1402 = vmatprep.mubr.bf16.mxu0 0
  %1403 = vmatmul.mubr.bf16.gmra.mrb[0].mxu0 %v1216
  %v1404 = vpop.f32.mrb[0].mxu0
  %v1405 = vadd.f32 0.0, %v1404
  %v1406 = vpop.f32.mrb[0].mxu0
  %v1407 = vadd.f32 0.0, %v1406
  %v1408 = vpop.f32.mrb[0].mxu0
  %v1409 = vpop.f32.mrb[0].mxu0
  %1410 = vdwg.mxu0
  %v1411 = vadd.f32 %v1325, %v1364
  %v1412 = vadd.f32 %v1326, %v1366
  %v1413 = vadd.f32 %v1327, %v1405
  %v1414 = vadd.f32 %v1328, %v1407
  %v1415 = vxor.u32 %v1411, 2147483648
  %v1416 = vxor.u32 %v1412, 2147483648
  %v1417 = vxor.u32 %v1413, 2147483648
  %v1418 = vmul.f32 %v1415, 1.442695
  %v1419 = vpow.pop %v1418
  %v1420 = vmul.f32 %v1416, 1.442695
  %v1421 = vpow.pop %v1420
  %v1422 = vmul.f32 %v1417, 1.442695
  %v1423 = vpow.pop %v1422
  %v1424 = vadd.f32 %v1419, 1.0
  %v1425 = vadd.f32 %v1421, 1.0
  %v1426 = vadd.f32 %v1423, 1.0
  %v1427 = vrcp.pop %v1424
  %v1428 = vmul.f32 1.0, %v1427
  %v1429 = vrcp.pop %v1425
  %v1430 = vmul.f32 1.0, %v1429
  %v1431 = vrcp.pop %v1426
  %v1432 = vmul.f32 1.0, %v1431
  %v1433 = vtanh.pop %v1414
  %v1434 = vmul.f32 %v1430, %v1213
  %v1435 = vmul.f32 %v1428, %v1433
  %v1436 = vadd.f32 %v1434, %v1435
  %v1437 = vtanh.pop %v1436
  %v1438 = vmul.f32 %v1432, %v1437
  %v1439 = vpack.c.bf16 %v1438, %v1438
  %v1440 = vpack.c.bf16 %v1323, %v1323
  %1441 = vmatprep.subr.bf16.mxu0 %v645
  %1442 = vmatpush1.bf16.msra.mxu0 %v644
  %1443 = vmatprep.subr.bf16.mxu0 %v649
  %1444 = vmatpush1.bf16.msra.mxu0 %v648
  %1445 = vmatprep.subr.bf16.mxu0 %v653
  %1446 = vmatpush1.bf16.msra.mxu0 %v652
  %1447 = vmatprep.subr.bf16.mxu0 %v657
  %1448 = vmatpush1.bf16.msra.mxu0 %v656
  %1449 = vmatprep.subr.bf16.mxu0 %v661
  %1450 = vmatpush1.bf16.msra.mxu0 %v660
  %1451 = vmatprep.subr.bf16.mxu0 %v665
  %1452 = vmatpush1.bf16.msra.mxu0 %v664
  %1453 = vmatprep.subr.bf16.mxu0 %v669
  %1454 = vmatpush1.bf16.msra.mxu0 %v668
  %1455 = vmatprep.subr.bf16.mxu0 %v673
  %1456 = vmatpush1.bf16.msra.mxu0 %v672
  %1457 = vmatprep.subr.bf16.mxu0 %v677
  %1458 = vmatpush1.bf16.msra.mxu0 %v676
  %1459 = vmatprep.subr.bf16.mxu0 %v681
  %1460 = vmatpush1.bf16.msra.mxu0 %v680
  %1461 = vmatprep.subr.bf16.mxu0 %v685
  %1462 = vmatpush1.bf16.msra.mxu0 %v684
  %1463 = vmatprep.subr.bf16.mxu0 %v689
  %1464 = vmatpush1.bf16.msra.mxu0 %v688
  %1465 = vmatprep.subr.bf16.mxu0 %v693
  %1466 = vmatpush1.bf16.msra.mxu0 %v692
  %1467 = vmatprep.subr.bf16.mxu0 %v697
  %1468 = vmatpush1.bf16.msra.mxu0 %v696
  %1469 = vmatprep.subr.bf16.mxu0 %v701
  %1470 = vmatpush1.bf16.msra.mxu0 %v700
  %1471 = vmatprep.subr.bf16.mxu0 %v705
  %1472 = vmatpush1.bf16.msra.mxu0 %v704
  %1473 = vmatprep.mubr.bf16.mxu0 %v1440
  %1474 = vmatmul.mubr.bf16.gmra.mrb[0].mxu0 %v1439
  %v1475 = vpop.f32.mrb[0].mxu0
  %v1476 = vadd.f32 %v435, %v1475
  %v1477 = vpop.f32.mrb[0].mxu0
  %v1478 = vadd.f32 %v439, %v1477
  %v1479 = vpop.f32.mrb[0].mxu0
  %v1480 = vpop.f32.mrb[0].mxu0
  %1481 = vdwg.mxu0
  %1482 = vmatprep.subr.bf16.mxu0 %v647
  %1483 = vmatpush1.bf16.msra.mxu0 %v646
  %1484 = vmatprep.subr.bf16.mxu0 %v651
  %1485 = vmatpush1.bf16.msra.mxu0 %v650
  %1486 = vmatprep.subr.bf16.mxu0 %v655
  %1487 = vmatpush1.bf16.msra.mxu0 %v654
  %1488 = vmatprep.subr.bf16.mxu0 %v659
  %1489 = vmatpush1.bf16.msra.mxu0 %v658
  %1490 = vmatprep.subr.bf16.mxu0 %v663
  %1491 = vmatpush1.bf16.msra.mxu0 %v662
  %1492 = vmatprep.subr.bf16.mxu0 %v667
  %1493 = vmatpush1.bf16.msra.mxu0 %v666
  %1494 = vmatprep.subr.bf16.mxu0 %v671
  %1495 = vmatpush1.bf16.msra.mxu0 %v670
  %1496 = vmatprep.subr.bf16.mxu0 %v675
  %1497 = vmatpush1.bf16.msra.mxu0 %v674
  %1498 = vmatprep.subr.bf16.mxu0 %v679
  %1499 = vmatpush1.bf16.msra.mxu0 %v678
  %1500 = vmatprep.subr.bf16.mxu0 %v683
  %1501 = vmatpush1.bf16.msra.mxu0 %v682
  %1502 = vmatprep.subr.bf16.mxu0 %v687
  %1503 = vmatpush1.bf16.msra.mxu0 %v686
  %1504 = vmatprep.subr.bf16.mxu0 %v691
  %1505 = vmatpush1.bf16.msra.mxu0 %v690
  %1506 = vmatprep.subr.bf16.mxu0 %v695
  %1507 = vmatpush1.bf16.msra.mxu0 %v694
  %1508 = vmatprep.subr.bf16.mxu0 %v699
  %1509 = vmatpush1.bf16.msra.mxu0 %v698
  %1510 = vmatprep.subr.bf16.mxu0 %v703
  %1511 = vmatpush1.bf16.msra.mxu0 %v702
  %1512 = vmatprep.subr.bf16.mxu0 %v707
  %1513 = vmatpush1.bf16.msra.mxu0 %v706
  %1514 = vmatprep.mubr.bf16.mxu0 %v1440
  %1515 = vmatmul.mubr.bf16.gmra.mrb[0].mxu0 %v1439
  %v1516 = vpop.f32.mrb[0].mxu0
  %v1517 = vadd.f32 %v443, %v1516
  %v1518 = vpop.f32.mrb[0].mxu0
  %v1519 = vadd.f32 %v447, %v1518
  %v1520 = vpop.f32.mrb[0].mxu0
  %v1521 = vpop.f32.mrb[0].mxu0
  %1522 = vdwg.mxu0
  %v1523 = vxor.u32 %v1476, 2147483648
  %v1524 = vxor.u32 %v1478, 2147483648
  %v1525 = vxor.u32 %v1517, 2147483648
  %v1526 = vmul.f32 %v1523, 1.442695
  %v1527 = vpow.pop %v1526
  %v1528 = vmul.f32 %v1524, 1.442695
  %v1529 = vpow.pop %v1528
  %v1530 = vmul.f32 %v1525, 1.442695
  %v1531 = vpow.pop %v1530
  %v1532 = vadd.f32 %v1527, 1.0
  %v1533 = vadd.f32 %v1529, 1.0
  %v1534 = vadd.f32 %v1531, 1.0
  %v1535 = vrcp.pop %v1532
  %v1536 = vmul.f32 1.0, %v1535
  %v1537 = vrcp.pop %v1533
  %v1538 = vmul.f32 1.0, %v1537
  %v1539 = vrcp.pop %v1534
  %v1540 = vmul.f32 1.0, %v1539
  %v1541 = vtanh.pop %v1519
  %v1542 = vmul.f32 %v1538, %v1321
  %v1543 = vmul.f32 %v1536, %v1541
  %v1544 = vadd.f32 %v1542, %v1543
  %v1545 = vtanh.pop %v1544
  %v1546 = vmul.f32 %v1540, %v1545
  %s1547 = scalar_lea.vmem %s0, 128
  %v1548 = vld [vmem:[%s1547] sm:$0xff]
  %v1549 = vld [vmem:[%s1547 + $0x8] sm:$0xff]
  %v1550 = vld [vmem:[%s1547 + $0x10] sm:$0xff]
  %v1551 = vld [vmem:[%s1547 + $0x18] sm:$0xff]
  %1552 = vmatprep.subr.bf16.mxu0 %v256
  %1553 = vmatpush1.bf16.msra.mxu0 %v255
  %1554 = vmatprep.subr.bf16.mxu0 %v260
  %1555 = vmatpush1.bf16.msra.mxu0 %v259
  %1556 = vmatprep.subr.bf16.mxu0 %v264
  %1557 = vmatpush1.bf16.msra.mxu0 %v263
  %1558 = vmatprep.subr.bf16.mxu0 %v268
  %1559 = vmatpush1.bf16.msra.mxu0 %v267
  %1560 = vmatprep.subr.bf16.mxu0 %v272
  %1561 = vmatpush1.bf16.msra.mxu0 %v271
  %1562 = vmatprep.subr.bf16.mxu0 %v276
  %1563 = vmatpush1.bf16.msra.mxu0 %v275
  %1564 = vmatprep.subr.bf16.mxu0 %v280
  %1565 = vmatpush1.bf16.msra.mxu0 %v279
  %1566 = vmatprep.subr.bf16.mxu0 %v284
  %1567 = vmatpush1.bf16.msra.mxu0 %v283
  %1568 = vmatprep.subr.bf16.mxu0 0
  %1569 = vmatpush1.bf16.msra.mxu0 0
  %1570 = vmatprep.subr.bf16.mxu0 0
  %1571 = vmatpush1.bf16.msra.mxu0 0
  %1572 = vmatprep.subr.bf16.mxu0 0
  %1573 = vmatpush1.bf16.msra.mxu0 0
  %1574 = vmatprep.subr.bf16.mxu0 0
  %1575 = vmatpush1.bf16.msra.mxu0 0
  %1576 = vmatprep.subr.bf16.mxu0 0
  %1577 = vmatpush1.bf16.msra.mxu0 0
  %1578 = vmatprep.subr.bf16.mxu0 0
  %1579 = vmatpush1.bf16.msra.mxu0 0
  %1580 = vmatprep.subr.bf16.mxu0 0
  %1581 = vmatpush1.bf16.msra.mxu0 0
  %1582 = vmatprep.subr.bf16.mxu0 0
  %1583 = vmatpush1.bf16.msra.mxu0 0
  %1584 = vmatprep.mubr.bf16.mxu0 0
  %1585 = vmatmul.mubr.bf16.gmra.mrb[0].mxu0 %v1439
  %v1586 = vpop.f32.mrb[0].mxu0
  %v1587 = vadd.f32 0.0, %v1586
  %v1588 = vpop.f32.mrb[0].mxu0
  %v1589 = vadd.f32 0.0, %v1588
  %v1590 = vpop.f32.mrb[0].mxu0
  %v1591 = vpop.f32.mrb[0].mxu0
  %1592 = vdwg.mxu0
  %1593 = vmatprep.subr.bf16.mxu0 %v258
  %1594 = vmatpush1.bf16.msra.mxu0 %v257
  %1595 = vmatprep.subr.bf16.mxu0 %v262
  %1596 = vmatpush1.bf16.msra.mxu0 %v261
  %1597 = vmatprep.subr.bf16.mxu0 %v266
  %1598 = vmatpush1.bf16.msra.mxu0 %v265
  %1599 = vmatprep.subr.bf16.mxu0 %v270
  %1600 = vmatpush1.bf16.msra.mxu0 %v269
  %1601 = vmatprep.subr.bf16.mxu0 %v274
  %1602 = vmatpush1.bf16.msra.mxu0 %v273
  %1603 = vmatprep.subr.bf16.mxu0 %v278
  %1604 = vmatpush1.bf16.msra.mxu0 %v277
  %1605 = vmatprep.subr.bf16.mxu0 %v282
  %1606 = vmatpush1.bf16.msra.mxu0 %v281
  %1607 = vmatprep.subr.bf16.mxu0 %v286
  %1608 = vmatpush1.bf16.msra.mxu0 %v285
  %1609 = vmatprep.subr.bf16.mxu0 0
  %1610 = vmatpush1.bf16.msra.mxu0 0
  %1611 = vmatprep.subr.bf16.mxu0 0
  %1612 = vmatpush1.bf16.msra.mxu0 0
  %1613 = vmatprep.subr.bf16.mxu0 0
  %1614 = vmatpush1.bf16.msra.mxu0 0
  %1615 = vmatprep.subr.bf16.mxu0 0
  %1616 = vmatpush1.bf16.msra.mxu0 0
  %1617 = vmatprep.subr.bf16.mxu0 0
  %1618 = vmatpush1.bf16.msra.mxu0 0
  %1619 = vmatprep.subr.bf16.mxu0 0
  %1620 = vmatpush1.bf16.msra.mxu0 0
  %1621 = vmatprep.subr.bf16.mxu0 0
  %1622 = vmatpush1.bf16.msra.mxu0 0
  %1623 = vmatprep.subr.bf16.mxu0 0
  %1624 = vmatpush1.bf16.msra.mxu0 0
  %1625 = vmatprep.mubr.bf16.mxu0 0
  %1626 = vmatmul.mubr.bf16.gmra.mrb[0].mxu0 %v1439
  %v1627 = vpop.f32.mrb[0].mxu0
  %v1628 = vadd.f32 0.0, %v1627
  %v1629 = vpop.f32.mrb[0].mxu0
  %v1630 = vadd.f32 0.0, %v1629
  %v1631 = vpop.f32.mrb[0].mxu0
  %v1632 = vpop.f32.mrb[0].mxu0
  %1633 = vdwg.mxu0
  %v1634 = vadd.f32 %v1548, %v1587
  %v1635 = vadd.f32 %v1549, %v1589
  %v1636 = vadd.f32 %v1550, %v1628
  %v1637 = vadd.f32 %v1551, %v1630
  %v1638 = vxor.u32 %v1634, 2147483648
  %v1639 = vxor.u32 %v1635, 2147483648
  %v1640 = vxor.u32 %v1636, 2147483648
  %v1641 = vmul.f32 %v1638, 1.442695
  %v1642 = vpow.pop %v1641
  %v1643 = vmul.f32 %v1639, 1.442695
  %v1644 = vpow.pop %v1643
  %v1645 = vmul.f32 %v1640, 1.442695
  %v1646 = vpow.pop %v1645
  %v1647 = vadd.f32 %v1642, 1.0
  %v1648 = vadd.f32 %v1644, 1.0
  %v1649 = vadd.f32 %v1646, 1.0
  %v1650 = vrcp.pop %v1647
  %v1651 = vmul.f32 1.0, %v1650
  %v1652 = vrcp.pop %v1648
  %v1653 = vmul.f32 1.0, %v1652
  %v1654 = vrcp.pop %v1649
  %v1655 = vmul.f32 1.0, %v1654
  %v1656 = vtanh.pop %v1637
  %v1657 = vmul.f32 %v1653, %v1436
  %v1658 = vmul.f32 %v1651, %v1656
  %v1659 = vadd.f32 %v1657, %v1658
  %v1660 = vtanh.pop %v1659
  %v1661 = vmul.f32 %v1655, %v1660
  %v1662 = vpack.c.bf16 %v1661, %v1661
  %v1663 = vpack.c.bf16 %v1546, %v1546
  %1664 = vmatprep.subr.bf16.mxu0 %v645
  %1665 = vmatpush1.bf16.msra.mxu0 %v644
  %1666 = vmatprep.subr.bf16.mxu0 %v649
  %1667 = vmatpush1.bf16.msra.mxu0 %v648
  %1668 = vmatprep.subr.bf16.mxu0 %v653
  %1669 = vmatpush1.bf16.msra.mxu0 %v652
  %1670 = vmatprep.subr.bf16.mxu0 %v657
  %1671 = vmatpush1.bf16.msra.mxu0 %v656
  %1672 = vmatprep.subr.bf16.mxu0 %v661
  %1673 = vmatpush1.bf16.msra.mxu0 %v660
  %1674 = vmatprep.subr.bf16.mxu0 %v665
  %1675 = vmatpush1.bf16.msra.mxu0 %v664
  %1676 = vmatprep.subr.bf16.mxu0 %v669
  %1677 = vmatpush1.bf16.msra.mxu0 %v668
  %1678 = vmatprep.subr.bf16.mxu0 %v673
  %1679 = vmatpush1.bf16.msra.mxu0 %v672
  %1680 = vmatprep.subr.bf16.mxu0 %v677
  %1681 = vmatpush1.bf16.msra.mxu0 %v676
  %1682 = vmatprep.subr.bf16.mxu0 %v681
  %1683 = vmatpush1.bf16.msra.mxu0 %v680
  %1684 = vmatprep.subr.bf16.mxu0 %v685
  %1685 = vmatpush1.bf16.msra.mxu0 %v684
  %1686 = vmatprep.subr.bf16.mxu0 %v689
  %1687 = vmatpush1.bf16.msra.mxu0 %v688
  %1688 = vmatprep.subr.bf16.mxu0 %v693
  %1689 = vmatpush1.bf16.msra.mxu0 %v692
  %1690 = vmatprep.subr.bf16.mxu0 %v697
  %1691 = vmatpush1.bf16.msra.mxu0 %v696
  %1692 = vmatprep.subr.bf16.mxu0 %v701
  %1693 = vmatpush1.bf16.msra.mxu0 %v700
  %1694 = vmatprep.subr.bf16.mxu0 %v705
  %1695 = vmatpush1.bf16.msra.mxu0 %v704
  %1696 = vmatprep.mubr.bf16.mxu0 %v1663
  %1697 = vmatmul.mubr.bf16.gmra.mrb[0].mxu0 %v1662
  %v1698 = vpop.f32.mrb[0].mxu0
  %v1699 = vadd.f32 %v435, %v1698
  %v1700 = vpop.f32.mrb[0].mxu0
  %v1701 = vadd.f32 %v439, %v1700
  %v1702 = vpop.f32.mrb[0].mxu0
  %v1703 = vpop.f32.mrb[0].mxu0
  %1704 = vdwg.mxu0
  %1705 = vmatprep.subr.bf16.mxu0 %v647
  %1706 = vmatpush1.bf16.msra.mxu0 %v646
  %1707 = vmatprep.subr.bf16.mxu0 %v651
  %1708 = vmatpush1.bf16.msra.mxu0 %v650
  %1709 = vmatprep.subr.bf16.mxu0 %v655
  %1710 = vmatpush1.bf16.msra.mxu0 %v654
  %1711 = vmatprep.subr.bf16.mxu0 %v659
  %1712 = vmatpush1.bf16.msra.mxu0 %v658
  %1713 = vmatprep.subr.bf16.mxu0 %v663
  %1714 = vmatpush1.bf16.msra.mxu0 %v662
  %1715 = vmatprep.subr.bf16.mxu0 %v667
  %1716 = vmatpush1.bf16.msra.mxu0 %v666
  %1717 = vmatprep.subr.bf16.mxu0 %v671
  %1718 = vmatpush1.bf16.msra.mxu0 %v670
  %1719 = vmatprep.subr.bf16.mxu0 %v675
  %1720 = vmatpush1.bf16.msra.mxu0 %v674
  %1721 = vmatprep.subr.bf16.mxu0 %v679
  %1722 = vmatpush1.bf16.msra.mxu0 %v678
  %1723 = vmatprep.subr.bf16.mxu0 %v683
  %1724 = vmatpush1.bf16.msra.mxu0 %v682
  %1725 = vmatprep.subr.bf16.mxu0 %v687
  %1726 = vmatpush1.bf16.msra.mxu0 %v686
  %1727 = vmatprep.subr.bf16.mxu0 %v691
  %1728 = vmatpush1.bf16.msra.mxu0 %v690
  %1729 = vmatprep.subr.bf16.mxu0 %v695
  %1730 = vmatpush1.bf16.msra.mxu0 %v694
  %1731 = vmatprep.subr.bf16.mxu0 %v699
  %1732 = vmatpush1.bf16.msra.mxu0 %v698
  %1733 = vmatprep.subr.bf16.mxu0 %v703
  %1734 = vmatpush1.bf16.msra.mxu0 %v702
  %1735 = vmatprep.subr.bf16.mxu0 %v707
  %1736 = vmatpush1.bf16.msra.mxu0 %v706
  %1737 = vmatprep.mubr.bf16.mxu0 %v1663
  %1738 = vmatmul.mubr.bf16.gmra.mrb[0].mxu0 %v1662
  %v1739 = vpop.f32.mrb[0].mxu0
  %v1740 = vadd.f32 %v443, %v1739
  %v1741 = vpop.f32.mrb[0].mxu0
  %v1742 = vadd.f32 %v447, %v1741
  %v1743 = vpop.f32.mrb[0].mxu0
  %v1744 = vpop.f32.mrb[0].mxu0
  %1745 = vdwg.mxu0
  %v1746 = vxor.u32 %v1699, 2147483648
  %v1747 = vxor.u32 %v1701, 2147483648
  %v1748 = vxor.u32 %v1740, 2147483648
  %v1749 = vmul.f32 %v1746, 1.442695
  %v1750 = vpow.pop %v1749
  %v1751 = vmul.f32 %v1747, 1.442695
  %v1752 = vpow.pop %v1751
  %v1753 = vmul.f32 %v1748, 1.442695
  %v1754 = vpow.pop %v1753
  %v1755 = vadd.f32 %v1750, 1.0
  %v1756 = vadd.f32 %v1752, 1.0
  %v1757 = vadd.f32 %v1754, 1.0
  %v1758 = vrcp.pop %v1755
  %v1759 = vmul.f32 1.0, %v1758
  %v1760 = vrcp.pop %v1756
  %v1761 = vmul.f32 1.0, %v1760
  %v1762 = vrcp.pop %v1757
  %v1763 = vmul.f32 1.0, %v1762
  %v1764 = vtanh.pop %v1742
  %v1765 = vmul.f32 %v1761, %v1544
  %v1766 = vmul.f32 %v1759, %v1764
  %v1767 = vadd.f32 %v1765, %v1766
  %v1768 = vtanh.pop %v1767
  %v1769 = vmul.f32 %v1763, %v1768
  %s1770 = scalar_lea.vmem %s0, 160
  %v1771 = vld [vmem:[%s1770] sm:$0xff]
  %v1772 = vld [vmem:[%s1770 + $0x8] sm:$0xff]
  %v1773 = vld [vmem:[%s1770 + $0x10] sm:$0xff]
  %v1774 = vld [vmem:[%s1770 + $0x18] sm:$0xff]
  %1775 = vmatprep.subr.bf16.mxu0 %v256
  %1776 = vmatpush1.bf16.msra.mxu0 %v255
  %1777 = vmatprep.subr.bf16.mxu0 %v260
  %1778 = vmatpush1.bf16.msra.mxu0 %v259
  %1779 = vmatprep.subr.bf16.mxu0 %v264
  %1780 = vmatpush1.bf16.msra.mxu0 %v263
  %1781 = vmatprep.subr.bf16.mxu0 %v268
  %1782 = vmatpush1.bf16.msra.mxu0 %v267
  %1783 = vmatprep.subr.bf16.mxu0 %v272
  %1784 = vmatpush1.bf16.msra.mxu0 %v271
  %1785 = vmatprep.subr.bf16.mxu0 %v276
  %1786 = vmatpush1.bf16.msra.mxu0 %v275
  %1787 = vmatprep.subr.bf16.mxu0 %v280
  %1788 = vmatpush1.bf16.msra.mxu0 %v279
  %1789 = vmatprep.subr.bf16.mxu0 %v284
  %1790 = vmatpush1.bf16.msra.mxu0 %v283
  %1791 = vmatprep.subr.bf16.mxu0 0
  %1792 = vmatpush1.bf16.msra.mxu0 0
  %1793 = vmatprep.subr.bf16.mxu0 0
  %1794 = vmatpush1.bf16.msra.mxu0 0
  %1795 = vmatprep.subr.bf16.mxu0 0
  %1796 = vmatpush1.bf16.msra.mxu0 0
  %1797 = vmatprep.subr.bf16.mxu0 0
  %1798 = vmatpush1.bf16.msra.mxu0 0
  %1799 = vmatprep.subr.bf16.mxu0 0
  %1800 = vmatpush1.bf16.msra.mxu0 0
  %1801 = vmatprep.subr.bf16.mxu0 0
  %1802 = vmatpush1.bf16.msra.mxu0 0
  %1803 = vmatprep.subr.bf16.mxu0 0
  %1804 = vmatpush1.bf16.msra.mxu0 0
  %1805 = vmatprep.subr.bf16.mxu0 0
  %1806 = vmatpush1.bf16.msra.mxu0 0
  %1807 = vmatprep.mubr.bf16.mxu0 0
  %1808 = vmatmul.mubr.bf16.gmra.mrb[0].mxu0 %v1662
  %v1809 = vpop.f32.mrb[0].mxu0
  %v1810 = vadd.f32 0.0, %v1809
  %v1811 = vpop.f32.mrb[0].mxu0
  %v1812 = vadd.f32 0.0, %v1811
  %v1813 = vpop.f32.mrb[0].mxu0
  %v1814 = vpop.f32.mrb[0].mxu0
  %1815 = vdwg.mxu0
  %1816 = vmatprep.subr.bf16.mxu0 %v258
  %1817 = vmatpush1.bf16.msra.mxu0 %v257
  %1818 = vmatprep.subr.bf16.mxu0 %v262
  %1819 = vmatpush1.bf16.msra.mxu0 %v261
  %1820 = vmatprep.subr.bf16.mxu0 %v266
  %1821 = vmatpush1.bf16.msra.mxu0 %v265
  %1822 = vmatprep.subr.bf16.mxu0 %v270
  %1823 = vmatpush1.bf16.msra.mxu0 %v269
  %1824 = vmatprep.subr.bf16.mxu0 %v274
  %1825 = vmatpush1.bf16.msra.mxu0 %v273
  %1826 = vmatprep.subr.bf16.mxu0 %v278
  %1827 = vmatpush1.bf16.msra.mxu0 %v277
  %1828 = vmatprep.subr.bf16.mxu0 %v282
  %1829 = vmatpush1.bf16.msra.mxu0 %v281
  %1830 = vmatprep.subr.bf16.mxu0 %v286
  %1831 = vmatpush1.bf16.msra.mxu0 %v285
  %1832 = vmatprep.subr.bf16.mxu0 0
  %1833 = vmatpush1.bf16.msra.mxu0 0
  %1834 = vmatprep.subr.bf16.mxu0 0
  %1835 = vmatpush1.bf16.msra.mxu0 0
  %1836 = vmatprep.subr.bf16.mxu0 0
  %1837 = vmatpush1.bf16.msra.mxu0 0
  %1838 = vmatprep.subr.bf16.mxu0 0
  %1839 = vmatpush1.bf16.msra.mxu0 0
  %1840 = vmatprep.subr.bf16.mxu0 0
  %1841 = vmatpush1.bf16.msra.mxu0 0
  %1842 = vmatprep.subr.bf16.mxu0 0
  %1843 = vmatpush1.bf16.msra.mxu0 0
  %1844 = vmatprep.subr.bf16.mxu0 0
  %1845 = vmatpush1.bf16.msra.mxu0 0
  %1846 = vmatprep.subr.bf16.mxu0 0
  %1847 = vmatpush1.bf16.msra.mxu0 0
  %1848 = vmatprep.mubr.bf16.mxu0 0
  %1849 = vmatmul.mubr.bf16.gmra.mrb[0].mxu0 %v1662
  %v1850 = vpop.f32.mrb[0].mxu0
  %v1851 = vadd.f32 0.0, %v1850
  %v1852 = vpop.f32.mrb[0].mxu0
  %v1853 = vadd.f32 0.0, %v1852
  %v1854 = vpop.f32.mrb[0].mxu0
  %v1855 = vpop.f32.mrb[0].mxu0
  %1856 = vdwg.mxu0
  %v1857 = vadd.f32 %v1771, %v1810
  %v1858 = vadd.f32 %v1772, %v1812
  %v1859 = vadd.f32 %v1773, %v1851
  %v1860 = vadd.f32 %v1774, %v1853
  %v1861 = vxor.u32 %v1857, 2147483648
  %v1862 = vxor.u32 %v1858, 2147483648
  %v1863 = vxor.u32 %v1859, 2147483648
  %v1864 = vmul.f32 %v1861, 1.442695
  %v1865 = vpow.pop %v1864
  %v1866 = vmul.f32 %v1862, 1.442695
  %v1867 = vpow.pop %v1866
  %v1868 = vmul.f32 %v1863, 1.442695
  %v1869 = vpow.pop %v1868
  %v1870 = vadd.f32 %v1865, 1.0
  %v1871 = vadd.f32 %v1867, 1.0
  %v1872 = vadd.f32 %v1869, 1.0
  %v1873 = vrcp.pop %v1870
  %v1874 = vmul.f32 1.0, %v1873
  %v1875 = vrcp.pop %v1871
  %v1876 = vmul.f32 1.0, %v1875
  %v1877 = vrcp.pop %v1872
  %v1878 = vmul.f32 1.0, %v1877
  %v1879 = vtanh.pop %v1860
  %v1880 = vmul.f32 %v1876, %v1659
  %v1881 = vmul.f32 %v1874, %v1879
  %v1882 = vadd.f32 %v1880, %v1881
  %v1883 = vtanh.pop %v1882
  %v1884 = vmul.f32 %v1878, %v1883
  %v1885 = vpack.c.bf16 %v1884, %v1884
  %v1886 = vpack.c.bf16 %v1769, %v1769
  %1887 = vmatprep.subr.bf16.mxu0 %v645
  %1888 = vmatpush1.bf16.msra.mxu0 %v644
  %1889 = vmatprep.subr.bf16.mxu0 %v649
  %1890 = vmatpush1.bf16.msra.mxu0 %v648
  %1891 = vmatprep.subr.bf16.mxu0 %v653
  %1892 = vmatpush1.bf16.msra.mxu0 %v652
  %1893 = vmatprep.subr.bf16.mxu0 %v657
  %1894 = vmatpush1.bf16.msra.mxu0 %v656
  %1895 = vmatprep.subr.bf16.mxu0 %v661
  %1896 = vmatpush1.bf16.msra.mxu0 %v660
  %1897 = vmatprep.subr.bf16.mxu0 %v665
  %1898 = vmatpush1.bf16.msra.mxu0 %v664
  %1899 = vmatprep.subr.bf16.mxu0 %v669
  %1900 = vmatpush1.bf16.msra.mxu0 %v668
  %1901 = vmatprep.subr.bf16.mxu0 %v673
  %1902 = vmatpush1.bf16.msra.mxu0 %v672
  %1903 = vmatprep.subr.bf16.mxu0 %v677
  %1904 = vmatpush1.bf16.msra.mxu0 %v676
  %1905 = vmatprep.subr.bf16.mxu0 %v681
  %1906 = vmatpush1.bf16.msra.mxu0 %v680
  %1907 = vmatprep.subr.bf16.mxu0 %v685
  %1908 = vmatpush1.bf16.msra.mxu0 %v684
  %1909 = vmatprep.subr.bf16.mxu0 %v689
  %1910 = vmatpush1.bf16.msra.mxu0 %v688
  %1911 = vmatprep.subr.bf16.mxu0 %v693
  %1912 = vmatpush1.bf16.msra.mxu0 %v692
  %1913 = vmatprep.subr.bf16.mxu0 %v697
  %1914 = vmatpush1.bf16.msra.mxu0 %v696
  %1915 = vmatprep.subr.bf16.mxu0 %v701
  %1916 = vmatpush1.bf16.msra.mxu0 %v700
  %1917 = vmatprep.subr.bf16.mxu0 %v705
  %1918 = vmatpush1.bf16.msra.mxu0 %v704
  %1919 = vmatprep.mubr.bf16.mxu0 %v1886
  %1920 = vmatmul.mubr.bf16.gmra.mrb[0].mxu0 %v1885
  %v1921 = vpop.f32.mrb[0].mxu0
  %v1922 = vadd.f32 %v435, %v1921
  %v1923 = vpop.f32.mrb[0].mxu0
  %v1924 = vadd.f32 %v439, %v1923
  %v1925 = vpop.f32.mrb[0].mxu0
  %v1926 = vpop.f32.mrb[0].mxu0
  %1927 = vdwg.mxu0
  %1928 = vmatprep.subr.bf16.mxu0 %v647
  %1929 = vmatpush1.bf16.msra.mxu0 %v646
  %1930 = vmatprep.subr.bf16.mxu0 %v651
  %1931 = vmatpush1.bf16.msra.mxu0 %v650
  %1932 = vmatprep.subr.bf16.mxu0 %v655
  %1933 = vmatpush1.bf16.msra.mxu0 %v654
  %1934 = vmatprep.subr.bf16.mxu0 %v659
  %1935 = vmatpush1.bf16.msra.mxu0 %v658
  %1936 = vmatprep.subr.bf16.mxu0 %v663
  %1937 = vmatpush1.bf16.msra.mxu0 %v662
  %1938 = vmatprep.subr.bf16.mxu0 %v667
  %1939 = vmatpush1.bf16.msra.mxu0 %v666
  %1940 = vmatprep.subr.bf16.mxu0 %v671
  %1941 = vmatpush1.bf16.msra.mxu0 %v670
  %1942 = vmatprep.subr.bf16.mxu0 %v675
  %1943 = vmatpush1.bf16.msra.mxu0 %v674
  %1944 = vmatprep.subr.bf16.mxu0 %v679
  %1945 = vmatpush1.bf16.msra.mxu0 %v678
  %1946 = vmatprep.subr.bf16.mxu0 %v683
  %1947 = vmatpush1.bf16.msra.mxu0 %v682
  %1948 = vmatprep.subr.bf16.mxu0 %v687
  %1949 = vmatpush1.bf16.msra.mxu0 %v686
  %1950 = vmatprep.subr.bf16.mxu0 %v691
  %1951 = vmatpush1.bf16.msra.mxu0 %v690
  %1952 = vmatprep.subr.bf16.mxu0 %v695
  %1953 = vmatpush1.bf16.msra.mxu0 %v694
  %1954 = vmatprep.subr.bf16.mxu0 %v699
  %1955 = vmatpush1.bf16.msra.mxu0 %v698
  %1956 = vmatprep.subr.bf16.mxu0 %v703
  %1957 = vmatpush1.bf16.msra.mxu0 %v702
  %1958 = vmatprep.subr.bf16.mxu0 %v707
  %1959 = vmatpush1.bf16.msra.mxu0 %v706
  %1960 = vmatprep.mubr.bf16.mxu0 %v1886
  %1961 = vmatmul.mubr.bf16.gmra.mrb[0].mxu0 %v1885
  %v1962 = vpop.f32.mrb[0].mxu0
  %v1963 = vadd.f32 %v443, %v1962
  %v1964 = vpop.f32.mrb[0].mxu0
  %v1965 = vadd.f32 %v447, %v1964
  %v1966 = vpop.f32.mrb[0].mxu0
  %v1967 = vpop.f32.mrb[0].mxu0
  %1968 = vdwg.mxu0
  %v1969 = vxor.u32 %v1922, 2147483648
  %v1970 = vxor.u32 %v1924, 2147483648
  %v1971 = vxor.u32 %v1963, 2147483648
  %v1972 = vmul.f32 %v1969, 1.442695
  %v1973 = vpow.pop %v1972
  %v1974 = vmul.f32 %v1970, 1.442695
  %v1975 = vpow.pop %v1974
  %v1976 = vmul.f32 %v1971, 1.442695
  %v1977 = vpow.pop %v1976
  %v1978 = vadd.f32 %v1973, 1.0
  %v1979 = vadd.f32 %v1975, 1.0
  %v1980 = vadd.f32 %v1977, 1.0
  %v1981 = vrcp.pop %v1978
  %v1982 = vmul.f32 1.0, %v1981
  %v1983 = vrcp.pop %v1979
  %v1984 = vmul.f32 1.0, %v1983
  %v1985 = vrcp.pop %v1980
  %v1986 = vmul.f32 1.0, %v1985
  %v1987 = vtanh.pop %v1965
  %v1988 = vmul.f32 %v1984, %v1767
  %v1989 = vmul.f32 %v1982, %v1987
  %v1990 = vadd.f32 %v1988, %v1989
  %v1991 = vtanh.pop %v1990
  %v1992 = vmul.f32 %v1986, %v1991
  %s1993 = scalar_lea.vmem %s0, 192
  %v1994 = vld [vmem:[%s1993] sm:$0xff]
  %v1995 = vld [vmem:[%s1993 + $0x8] sm:$0xff]
  %v1996 = vld [vmem:[%s1993 + $0x10] sm:$0xff]
  %v1997 = vld [vmem:[%s1993 + $0x18] sm:$0xff]
  %1998 = vmatprep.subr.bf16.mxu0 %v256
  %1999 = vmatpush1.bf16.msra.mxu0 %v255
  %2000 = vmatprep.subr.bf16.mxu0 %v260
  %2001 = vmatpush1.bf16.msra.mxu0 %v259
  %2002 = vmatprep.subr.bf16.mxu0 %v264
  %2003 = vmatpush1.bf16.msra.mxu0 %v263
  %2004 = vmatprep.subr.bf16.mxu0 %v268
  %2005 = vmatpush1.bf16.msra.mxu0 %v267
  %2006 = vmatprep.subr.bf16.mxu0 %v272
  %2007 = vmatpush1.bf16.msra.mxu0 %v271
  %2008 = vmatprep.subr.bf16.mxu0 %v276
  %2009 = vmatpush1.bf16.msra.mxu0 %v275
  %2010 = vmatprep.subr.bf16.mxu0 %v280
  %2011 = vmatpush1.bf16.msra.mxu0 %v279
  %2012 = vmatprep.subr.bf16.mxu0 %v284
  %2013 = vmatpush1.bf16.msra.mxu0 %v283
  %2014 = vmatprep.subr.bf16.mxu0 0
  %2015 = vmatpush1.bf16.msra.mxu0 0
  %2016 = vmatprep.subr.bf16.mxu0 0
  %2017 = vmatpush1.bf16.msra.mxu0 0
  %2018 = vmatprep.subr.bf16.mxu0 0
  %2019 = vmatpush1.bf16.msra.mxu0 0
  %2020 = vmatprep.subr.bf16.mxu0 0
  %2021 = vmatpush1.bf16.msra.mxu0 0
  %2022 = vmatprep.subr.bf16.mxu0 0
  %2023 = vmatpush1.bf16.msra.mxu0 0
  %2024 = vmatprep.subr.bf16.mxu0 0
  %2025 = vmatpush1.bf16.msra.mxu0 0
  %2026 = vmatprep.subr.bf16.mxu0 0
  %2027 = vmatpush1.bf16.msra.mxu0 0
  %2028 = vmatprep.subr.bf16.mxu0 0
  %2029 = vmatpush1.bf16.msra.mxu0 0
  %2030 = vmatprep.mubr.bf16.mxu0 0
  %2031 = vmatmul.mubr.bf16.gmra.mrb[0].mxu0 %v1885
  %v2032 = vpop.f32.mrb[0].mxu0
  %v2033 = vadd.f32 0.0, %v2032
  %v2034 = vpop.f32.mrb[0].mxu0
  %v2035 = vadd.f32 0.0, %v2034
  %v2036 = vpop.f32.mrb[0].mxu0
  %v2037 = vpop.f32.mrb[0].mxu0
  %2038 = vdwg.mxu0
  %2039 = vmatprep.subr.bf16.mxu0 %v258
  %2040 = vmatpush1.bf16.msra.mxu0 %v257
  %2041 = vmatprep.subr.bf16.mxu0 %v262
  %2042 = vmatpush1.bf16.msra.mxu0 %v261
  %2043 = vmatprep.subr.bf16.mxu0 %v266
  %2044 = vmatpush1.bf16.msra.mxu0 %v265
  %2045 = vmatprep.subr.bf16.mxu0 %v270
  %2046 = vmatpush1.bf16.msra.mxu0 %v269
  %2047 = vmatprep.subr.bf16.mxu0 %v274
  %2048 = vmatpush1.bf16.msra.mxu0 %v273
  %2049 = vmatprep.subr.bf16.mxu0 %v278
  %2050 = vmatpush1.bf16.msra.mxu0 %v277
  %2051 = vmatprep.subr.bf16.mxu0 %v282
  %2052 = vmatpush1.bf16.msra.mxu0 %v281
  %2053 = vmatprep.subr.bf16.mxu0 %v286
  %2054 = vmatpush1.bf16.msra.mxu0 %v285
  %2055 = vmatprep.subr.bf16.mxu0 0
  %2056 = vmatpush1.bf16.msra.mxu0 0
  %2057 = vmatprep.subr.bf16.mxu0 0
  %2058 = vmatpush1.bf16.msra.mxu0 0
  %2059 = vmatprep.subr.bf16.mxu0 0
  %2060 = vmatpush1.bf16.msra.mxu0 0
  %2061 = vmatprep.subr.bf16.mxu0 0
  %2062 = vmatpush1.bf16.msra.mxu0 0
  %2063 = vmatprep.subr.bf16.mxu0 0
  %2064 = vmatpush1.bf16.msra.mxu0 0
  %2065 = vmatprep.subr.bf16.mxu0 0
  %2066 = vmatpush1.bf16.msra.mxu0 0
  %2067 = vmatprep.subr.bf16.mxu0 0
  %2068 = vmatpush1.bf16.msra.mxu0 0
  %2069 = vmatprep.subr.bf16.mxu0 0
  %2070 = vmatpush1.bf16.msra.mxu0 0
  %2071 = vmatprep.mubr.bf16.mxu0 0
  %2072 = vmatmul.mubr.bf16.gmra.mrb[0].mxu0 %v1885
  %v2073 = vpop.f32.mrb[0].mxu0
  %v2074 = vadd.f32 0.0, %v2073
  %v2075 = vpop.f32.mrb[0].mxu0
  %v2076 = vadd.f32 0.0, %v2075
  %v2077 = vpop.f32.mrb[0].mxu0
  %v2078 = vpop.f32.mrb[0].mxu0
  %2079 = vdwg.mxu0
  %v2080 = vadd.f32 %v1994, %v2033
  %v2081 = vadd.f32 %v1995, %v2035
  %v2082 = vadd.f32 %v1996, %v2074
  %v2083 = vadd.f32 %v1997, %v2076
  %v2084 = vxor.u32 %v2080, 2147483648
  %v2085 = vxor.u32 %v2081, 2147483648
  %v2086 = vxor.u32 %v2082, 2147483648
  %v2087 = vmul.f32 %v2084, 1.442695
  %v2088 = vpow.pop %v2087
  %v2089 = vmul.f32 %v2085, 1.442695
  %v2090 = vpow.pop %v2089
  %v2091 = vmul.f32 %v2086, 1.442695
  %v2092 = vpow.pop %v2091
  %v2093 = vadd.f32 %v2088, 1.0
  %v2094 = vadd.f32 %v2090, 1.0
  %v2095 = vadd.f32 %v2092, 1.0
  %v2096 = vrcp.pop %v2093
  %v2097 = vmul.f32 1.0, %v2096
  %v2098 = vrcp.pop %v2094
  %v2099 = vmul.f32 1.0, %v2098
  %v2100 = vrcp.pop %v2095
  %v2101 = vmul.f32 1.0, %v2100
  %v2102 = vtanh.pop %v2083
  %v2103 = vmul.f32 %v2099, %v1882
  %v2104 = vmul.f32 %v2097, %v2102
  %v2105 = vadd.f32 %v2103, %v2104
  %v2106 = vtanh.pop %v2105
  %v2107 = vmul.f32 %v2101, %v2106
  %v2108 = vpack.c.bf16 %v2107, %v2107
  %v2109 = vpack.c.bf16 %v1992, %v1992
  %2110 = vmatprep.subr.bf16.mxu0 %v645
  %2111 = vmatpush1.bf16.msra.mxu0 %v644
  %2112 = vmatprep.subr.bf16.mxu0 %v649
  %2113 = vmatpush1.bf16.msra.mxu0 %v648
  %2114 = vmatprep.subr.bf16.mxu0 %v653
  %2115 = vmatpush1.bf16.msra.mxu0 %v652
  %2116 = vmatprep.subr.bf16.mxu0 %v657
  %2117 = vmatpush1.bf16.msra.mxu0 %v656
  %2118 = vmatprep.subr.bf16.mxu0 %v661
  %2119 = vmatpush1.bf16.msra.mxu0 %v660
  %2120 = vmatprep.subr.bf16.mxu0 %v665
  %2121 = vmatpush1.bf16.msra.mxu0 %v664
  %2122 = vmatprep.subr.bf16.mxu0 %v669
  %2123 = vmatpush1.bf16.msra.mxu0 %v668
  %2124 = vmatprep.subr.bf16.mxu0 %v673
  %2125 = vmatpush1.bf16.msra.mxu0 %v672
  %2126 = vmatprep.subr.bf16.mxu0 %v677
  %2127 = vmatpush1.bf16.msra.mxu0 %v676
  %2128 = vmatprep.subr.bf16.mxu0 %v681
  %2129 = vmatpush1.bf16.msra.mxu0 %v680
  %2130 = vmatprep.subr.bf16.mxu0 %v685
  %2131 = vmatpush1.bf16.msra.mxu0 %v684
  %2132 = vmatprep.subr.bf16.mxu0 %v689
  %2133 = vmatpush1.bf16.msra.mxu0 %v688
  %2134 = vmatprep.subr.bf16.mxu0 %v693
  %2135 = vmatpush1.bf16.msra.mxu0 %v692
  %2136 = vmatprep.subr.bf16.mxu0 %v697
  %2137 = vmatpush1.bf16.msra.mxu0 %v696
  %2138 = vmatprep.subr.bf16.mxu0 %v701
  %2139 = vmatpush1.bf16.msra.mxu0 %v700
  %2140 = vmatprep.subr.bf16.mxu0 %v705
  %2141 = vmatpush1.bf16.msra.mxu0 %v704
  %2142 = vmatprep.mubr.bf16.mxu0 %v2109
  %2143 = vmatmul.mubr.bf16.gmra.mrb[0].mxu0 %v2108
  %v2144 = vpop.f32.mrb[0].mxu0
  %v2145 = vadd.f32 %v435, %v2144
  %v2146 = vpop.f32.mrb[0].mxu0
  %v2147 = vadd.f32 %v439, %v2146
  %v2148 = vpop.f32.mrb[0].mxu0
  %v2149 = vpop.f32.mrb[0].mxu0
  %2150 = vdwg.mxu0
  %2151 = vmatprep.subr.bf16.mxu0 %v647
  %2152 = vmatpush1.bf16.msra.mxu0 %v646
  %2153 = vmatprep.subr.bf16.mxu0 %v651
  %2154 = vmatpush1.bf16.msra.mxu0 %v650
  %2155 = vmatprep.subr.bf16.mxu0 %v655
  %2156 = vmatpush1.bf16.msra.mxu0 %v654
  %2157 = vmatprep.subr.bf16.mxu0 %v659
  %2158 = vmatpush1.bf16.msra.mxu0 %v658
  %2159 = vmatprep.subr.bf16.mxu0 %v663
  %2160 = vmatpush1.bf16.msra.mxu0 %v662
  %2161 = vmatprep.subr.bf16.mxu0 %v667
  %2162 = vmatpush1.bf16.msra.mxu0 %v666
  %2163 = vmatprep.subr.bf16.mxu0 %v671
  %2164 = vmatpush1.bf16.msra.mxu0 %v670
  %2165 = vmatprep.subr.bf16.mxu0 %v675
  %2166 = vmatpush1.bf16.msra.mxu0 %v674
  %2167 = vmatprep.subr.bf16.mxu0 %v679
  %2168 = vmatpush1.bf16.msra.mxu0 %v678
  %2169 = vmatprep.subr.bf16.mxu0 %v683
  %2170 = vmatpush1.bf16.msra.mxu0 %v682
  %2171 = vmatprep.subr.bf16.mxu0 %v687
  %2172 = vmatpush1.bf16.msra.mxu0 %v686
  %2173 = vmatprep.subr.bf16.mxu0 %v691
  %2174 = vmatpush1.bf16.msra.mxu0 %v690
  %2175 = vmatprep.subr.bf16.mxu0 %v695
  %2176 = vmatpush1.bf16.msra.mxu0 %v694
  %2177 = vmatprep.subr.bf16.mxu0 %v699
  %2178 = vmatpush1.bf16.msra.mxu0 %v698
  %2179 = vmatprep.subr.bf16.mxu0 %v703
  %2180 = vmatpush1.bf16.msra.mxu0 %v702
  %2181 = vmatprep.subr.bf16.mxu0 %v707
  %2182 = vmatpush1.bf16.msra.mxu0 %v706
  %2183 = vmatprep.mubr.bf16.mxu0 %v2109
  %2184 = vmatmul.mubr.bf16.gmra.mrb[0].mxu0 %v2108
  %v2185 = vpop.f32.mrb[0].mxu0
  %v2186 = vadd.f32 %v443, %v2185
  %v2187 = vpop.f32.mrb[0].mxu0
  %v2188 = vadd.f32 %v447, %v2187
  %v2189 = vpop.f32.mrb[0].mxu0
  %v2190 = vpop.f32.mrb[0].mxu0
  %2191 = vdwg.mxu0
  %v2192 = vxor.u32 %v2145, 2147483648
  %v2193 = vxor.u32 %v2147, 2147483648
  %v2194 = vxor.u32 %v2186, 2147483648
  %v2195 = vmul.f32 %v2192, 1.442695
  %v2196 = vpow.pop %v2195
  %v2197 = vmul.f32 %v2193, 1.442695
  %v2198 = vpow.pop %v2197
  %v2199 = vmul.f32 %v2194, 1.442695
  %v2200 = vpow.pop %v2199
  %v2201 = vadd.f32 %v2196, 1.0
  %v2202 = vadd.f32 %v2198, 1.0
  %v2203 = vadd.f32 %v2200, 1.0
  %v2204 = vrcp.pop %v2201
  %v2205 = vmul.f32 1.0, %v2204
  %v2206 = vrcp.pop %v2202
  %v2207 = vmul.f32 1.0, %v2206
  %v2208 = vrcp.pop %v2203
  %v2209 = vmul.f32 1.0, %v2208
  %v2210 = vtanh.pop %v2188
  %v2211 = vmul.f32 %v2207, %v1990
  %v2212 = vmul.f32 %v2205, %v2210
  %v2213 = vadd.f32 %v2211, %v2212
  %v2214 = vtanh.pop %v2213
  %v2215 = vmul.f32 %v2209, %v2214
  %s2216 = scalar_lea.vmem %s0, 224
  %v2217 = vld [vmem:[%s2216] sm:$0xff]
  %v2218 = vld [vmem:[%s2216 + $0x8] sm:$0xff]
  %v2219 = vld [vmem:[%s2216 + $0x10] sm:$0xff]
  %v2220 = vld [vmem:[%s2216 + $0x18] sm:$0xff]
  %2221 = vmatprep.subr.bf16.mxu0 %v256
  %2222 = vmatpush1.bf16.msra.mxu0 %v255
  %2223 = vmatprep.subr.bf16.mxu0 %v260
  %2224 = vmatpush1.bf16.msra.mxu0 %v259
  %2225 = vmatprep.subr.bf16.mxu0 %v264
  %2226 = vmatpush1.bf16.msra.mxu0 %v263
  %2227 = vmatprep.subr.bf16.mxu0 %v268
  %2228 = vmatpush1.bf16.msra.mxu0 %v267
  %2229 = vmatprep.subr.bf16.mxu0 %v272
  %2230 = vmatpush1.bf16.msra.mxu0 %v271
  %2231 = vmatprep.subr.bf16.mxu0 %v276
  %2232 = vmatpush1.bf16.msra.mxu0 %v275
  %2233 = vmatprep.subr.bf16.mxu0 %v280
  %2234 = vmatpush1.bf16.msra.mxu0 %v279
  %2235 = vmatprep.subr.bf16.mxu0 %v284
  %2236 = vmatpush1.bf16.msra.mxu0 %v283
  %2237 = vmatprep.subr.bf16.mxu0 0
  %2238 = vmatpush1.bf16.msra.mxu0 0
  %2239 = vmatprep.subr.bf16.mxu0 0
  %2240 = vmatpush1.bf16.msra.mxu0 0
  %2241 = vmatprep.subr.bf16.mxu0 0
  %2242 = vmatpush1.bf16.msra.mxu0 0
  %2243 = vmatprep.subr.bf16.mxu0 0
  %2244 = vmatpush1.bf16.msra.mxu0 0
  %2245 = vmatprep.subr.bf16.mxu0 0
  %2246 = vmatpush1.bf16.msra.mxu0 0
  %2247 = vmatprep.subr.bf16.mxu0 0
  %2248 = vmatpush1.bf16.msra.mxu0 0
  %2249 = vmatprep.subr.bf16.mxu0 0
  %2250 = vmatpush1.bf16.msra.mxu0 0
  %2251 = vmatprep.subr.bf16.mxu0 0
  %2252 = vmatpush1.bf16.msra.mxu0 0
  %2253 = vmatprep.mubr.bf16.mxu0 0
  %2254 = vmatmul.mubr.bf16.gmra.mrb[0].mxu0 %v2108
  %v2255 = vpop.f32.mrb[0].mxu0
  %v2256 = vadd.f32 0.0, %v2255
  %v2257 = vpop.f32.mrb[0].mxu0
  %v2258 = vadd.f32 0.0, %v2257
  %v2259 = vpop.f32.mrb[0].mxu0
  %v2260 = vpop.f32.mrb[0].mxu0
  %2261 = vdwg.mxu0
  %2262 = vmatprep.subr.bf16.mxu0 %v258
  %2263 = vmatpush1.bf16.msra.mxu0 %v257
  %2264 = vmatprep.subr.bf16.mxu0 %v262
  %2265 = vmatpush1.bf16.msra.mxu0 %v261
  %2266 = vmatprep.subr.bf16.mxu0 %v266
  %2267 = vmatpush1.bf16.msra.mxu0 %v265
  %2268 = vmatprep.subr.bf16.mxu0 %v270
  %2269 = vmatpush1.bf16.msra.mxu0 %v269
  %2270 = vmatprep.subr.bf16.mxu0 %v274
  %2271 = vmatpush1.bf16.msra.mxu0 %v273
  %2272 = vmatprep.subr.bf16.mxu0 %v278
  %2273 = vmatpush1.bf16.msra.mxu0 %v277
  %2274 = vmatprep.subr.bf16.mxu0 %v282
  %2275 = vmatpush1.bf16.msra.mxu0 %v281
  %2276 = vmatprep.subr.bf16.mxu0 %v286
  %2277 = vmatpush1.bf16.msra.mxu0 %v285
  %2278 = vmatprep.subr.bf16.mxu0 0
  %2279 = vmatpush1.bf16.msra.mxu0 0
  %2280 = vmatprep.subr.bf16.mxu0 0
  %2281 = vmatpush1.bf16.msra.mxu0 0
  %2282 = vmatprep.subr.bf16.mxu0 0
  %2283 = vmatpush1.bf16.msra.mxu0 0
  %2284 = vmatprep.subr.bf16.mxu0 0
  %2285 = vmatpush1.bf16.msra.mxu0 0
  %2286 = vmatprep.subr.bf16.mxu0 0
  %2287 = vmatpush1.bf16.msra.mxu0 0
  %2288 = vmatprep.subr.bf16.mxu0 0
  %2289 = vmatpush1.bf16.msra.mxu0 0
  %2290 = vmatprep.subr.bf16.mxu0 0
  %2291 = vmatpush1.bf16.msra.mxu0 0
  %2292 = vmatprep.subr.bf16.mxu0 0
  %2293 = vmatpush1.bf16.msra.mxu0 0
  %2294 = vmatprep.mubr.bf16.mxu0 0
  %2295 = vmatmul.mubr.bf16.gmra.mrb[0].mxu0 %v2108
  %v2296 = vpop.f32.mrb[0].mxu0
  %v2297 = vadd.f32 0.0, %v2296
  %v2298 = vpop.f32.mrb[0].mxu0
  %v2299 = vadd.f32 0.0, %v2298
  %v2300 = vpop.f32.mrb[0].mxu0
  %v2301 = vpop.f32.mrb[0].mxu0
  %2302 = vdwg.mxu0
  %v2303 = vadd.f32 %v2217, %v2256
  %v2304 = vadd.f32 %v2218, %v2258
  %v2305 = vadd.f32 %v2219, %v2297
  %v2306 = vadd.f32 %v2220, %v2299
  %v2307 = vxor.u32 %v2303, 2147483648
  %v2308 = vxor.u32 %v2304, 2147483648
  %v2309 = vxor.u32 %v2305, 2147483648
  %v2310 = vmul.f32 %v2307, 1.442695
  %v2311 = vpow.pop %v2310
  %v2312 = vmul.f32 %v2308, 1.442695
  %v2313 = vpow.pop %v2312
  %v2314 = vmul.f32 %v2309, 1.442695
  %v2315 = vpow.pop %v2314
  %v2316 = vadd.f32 %v2311, 1.0
  %v2317 = vadd.f32 %v2313, 1.0
  %v2318 = vadd.f32 %v2315, 1.0
  %v2319 = vrcp.pop %v2316
  %v2320 = vmul.f32 1.0, %v2319
  %v2321 = vrcp.pop %v2317
  %v2322 = vmul.f32 1.0, %v2321
  %v2323 = vrcp.pop %v2318
  %v2324 = vmul.f32 1.0, %v2323
  %v2325 = vtanh.pop %v2306
  %v2326 = vmul.f32 %v2322, %v2105
  %v2327 = vmul.f32 %v2320, %v2325
  %v2328 = vadd.f32 %v2326, %v2327
  %v2329 = vtanh.pop %v2328
  %v2330 = vmul.f32 %v2324, %v2329
  %v2331 = vpack.c.bf16 %v2330, %v2330
  %v2332 = vpack.c.bf16 %v2215, %v2215
  %2333 = vmatprep.subr.bf16.mxu0 %v645
  %2334 = vmatpush1.bf16.msra.mxu0 %v644
  %2335 = vmatprep.subr.bf16.mxu0 %v649
  %2336 = vmatpush1.bf16.msra.mxu0 %v648
  %2337 = vmatprep.subr.bf16.mxu0 %v653
  %2338 = vmatpush1.bf16.msra.mxu0 %v652
  %2339 = vmatprep.subr.bf16.mxu0 %v657
  %2340 = vmatpush1.bf16.msra.mxu0 %v656
  %2341 = vmatprep.subr.bf16.mxu0 %v661
  %2342 = vmatpush1.bf16.msra.mxu0 %v660
  %2343 = vmatprep.subr.bf16.mxu0 %v665
  %2344 = vmatpush1.bf16.msra.mxu0 %v664
  %2345 = vmatprep.subr.bf16.mxu0 %v669
  %2346 = vmatpush1.bf16.msra.mxu0 %v668
  %2347 = vmatprep.subr.bf16.mxu0 %v673
  %2348 = vmatpush1.bf16.msra.mxu0 %v672
  %2349 = vmatprep.subr.bf16.mxu0 %v677
  %2350 = vmatpush1.bf16.msra.mxu0 %v676
  %2351 = vmatprep.subr.bf16.mxu0 %v681
  %2352 = vmatpush1.bf16.msra.mxu0 %v680
  %2353 = vmatprep.subr.bf16.mxu0 %v685
  %2354 = vmatpush1.bf16.msra.mxu0 %v684
  %2355 = vmatprep.subr.bf16.mxu0 %v689
  %2356 = vmatpush1.bf16.msra.mxu0 %v688
  %2357 = vmatprep.subr.bf16.mxu0 %v693
  %2358 = vmatpush1.bf16.msra.mxu0 %v692
  %2359 = vmatprep.subr.bf16.mxu0 %v697
  %2360 = vmatpush1.bf16.msra.mxu0 %v696
  %2361 = vmatprep.subr.bf16.mxu0 %v701
  %2362 = vmatpush1.bf16.msra.mxu0 %v700
  %2363 = vmatprep.subr.bf16.mxu0 %v705
  %2364 = vmatpush1.bf16.msra.mxu0 %v704
  %2365 = vmatprep.mubr.bf16.mxu0 %v2332
  %2366 = vmatmul.mubr.bf16.gmra.mrb[0].mxu0 %v2331
  %v2367 = vpop.f32.mrb[0].mxu0
  %v2368 = vadd.f32 %v435, %v2367
  %v2369 = vpop.f32.mrb[0].mxu0
  %v2370 = vadd.f32 %v439, %v2369
  %v2371 = vpop.f32.mrb[0].mxu0
  %v2372 = vpop.f32.mrb[0].mxu0
  %2373 = vdwg.mxu0
  %2374 = vmatprep.subr.bf16.mxu0 %v647
  %2375 = vmatpush1.bf16.msra.mxu0 %v646
  %2376 = vmatprep.subr.bf16.mxu0 %v651
  %2377 = vmatpush1.bf16.msra.mxu0 %v650
  %2378 = vmatprep.subr.bf16.mxu0 %v655
  %2379 = vmatpush1.bf16.msra.mxu0 %v654
  %2380 = vmatprep.subr.bf16.mxu0 %v659
  %2381 = vmatpush1.bf16.msra.mxu0 %v658
  %2382 = vmatprep.subr.bf16.mxu0 %v663
  %2383 = vmatpush1.bf16.msra.mxu0 %v662
  %2384 = vmatprep.subr.bf16.mxu0 %v667
  %2385 = vmatpush1.bf16.msra.mxu0 %v666
  %2386 = vmatprep.subr.bf16.mxu0 %v671
  %2387 = vmatpush1.bf16.msra.mxu0 %v670
  %2388 = vmatprep.subr.bf16.mxu0 %v675
  %2389 = vmatpush1.bf16.msra.mxu0 %v674
  %2390 = vmatprep.subr.bf16.mxu0 %v679
  %2391 = vmatpush1.bf16.msra.mxu0 %v678
  %2392 = vmatprep.subr.bf16.mxu0 %v683
  %2393 = vmatpush1.bf16.msra.mxu0 %v682
  %2394 = vmatprep.subr.bf16.mxu0 %v687
  %2395 = vmatpush1.bf16.msra.mxu0 %v686
  %2396 = vmatprep.subr.bf16.mxu0 %v691
  %2397 = vmatpush1.bf16.msra.mxu0 %v690
  %2398 = vmatprep.subr.bf16.mxu0 %v695
  %2399 = vmatpush1.bf16.msra.mxu0 %v694
  %2400 = vmatprep.subr.bf16.mxu0 %v699
  %2401 = vmatpush1.bf16.msra.mxu0 %v698
  %2402 = vmatprep.subr.bf16.mxu0 %v703
  %2403 = vmatpush1.bf16.msra.mxu0 %v702
  %2404 = vmatprep.subr.bf16.mxu0 %v707
  %2405 = vmatpush1.bf16.msra.mxu0 %v706
  %2406 = vmatprep.mubr.bf16.mxu0 %v2332
  %2407 = vmatmul.mubr.bf16.gmra.mrb[0].mxu0 %v2331
  %v2408 = vpop.f32.mrb[0].mxu0
  %v2409 = vadd.f32 %v443, %v2408
  %v2410 = vpop.f32.mrb[0].mxu0
  %v2411 = vadd.f32 %v447, %v2410
  %v2412 = vpop.f32.mrb[0].mxu0
  %v2413 = vpop.f32.mrb[0].mxu0
  %2414 = vdwg.mxu0
  %v2415 = vxor.u32 %v2368, 2147483648
  %v2416 = vxor.u32 %v2370, 2147483648
  %v2417 = vxor.u32 %v2409, 2147483648
  %v2418 = vmul.f32 %v2415, 1.442695
  %v2419 = vpow.pop %v2418
  %v2420 = vmul.f32 %v2416, 1.442695
  %v2421 = vpow.pop %v2420
  %v2422 = vmul.f32 %v2417, 1.442695
  %v2423 = vpow.pop %v2422
  %v2424 = vadd.f32 %v2419, 1.0
  %v2425 = vadd.f32 %v2421, 1.0
  %v2426 = vadd.f32 %v2423, 1.0
  %v2427 = vrcp.pop %v2424
  %v2428 = vmul.f32 1.0, %v2427
  %v2429 = vrcp.pop %v2425
  %v2430 = vmul.f32 1.0, %v2429
  %v2431 = vrcp.pop %v2426
  %v2432 = vmul.f32 1.0, %v2431
  %v2433 = vtanh.pop %v2411
  %v2434 = vmul.f32 %v2430, %v2213
  %v2435 = vmul.f32 %v2428, %v2433
  %v2436 = vadd.f32 %v2434, %v2435
  %v2437 = vtanh.pop %v2436
  %v2438 = vmul.f32 %v2432, %v2437
  %2439 = vst [vmem:[#allocation2] sm:$0xff] %v2330
  %2440 = vst [vmem:[#allocation3] sm:$0xff] %v2328
  %2441 = vst [vmem:[#allocation4] sm:$0xff] %v2438
  %2442 = vst [vmem:[#allocation5] sm:$0xff] %v2436
  %2443 = vst [vmem:[%s10] sm:$0xff] %v2330
  %2444 = vst [vmem:[%s11] sm:$0xff] %v2328
  %2445 = vst [vmem:[%s12] sm:$0xff] %v2438
  %2446 = vst [vmem:[%s13] sm:$0xff] %v2436
  // Predicated region
  $region46: #{sentiment_rnn_forward.3} parent=0 // pred_check
    %p2447 = pneg %p41
  $region47: #{sentiment_rnn_forward.3} parent=0 // pred_check_branch
    %2449 = sbr.rel (%p2447) target = $region49
  $region48: #{sentiment_rnn_forward.3} parent=0 // pred_region
    %v2450 = vpack.c.bf16 %v2438, %v2438
    %v2451 = vld [vmem:[%s8] sm:$0xf]
    %v2452 = vld [vmem:[%s8 + $0x4] sm:$0xf]
    %v2453 = vld [vmem:[%s8 + $0x8] sm:$0xf]
    %v2454 = vld [vmem:[%s8 + $0xc] sm:$0xf]
    %v2455 = vld [vmem:[%s8 + $0x10] sm:$0xf]
    %v2456 = vld [vmem:[%s8 + $0x14] sm:$0xf]
    %v2457 = vld [vmem:[%s8 + $0x18] sm:$0xf]
    %v2458 = vld [vmem:[%s8 + $0x1c] sm:$0xf]
    %v2459 = vld [vmem:[%s8 + $0x20] sm:$0xf]
    %v2460 = vld [vmem:[%s8 + $0x24] sm:$0xf]
    %v2461 = vld [vmem:[%s8 + $0x28] sm:$0xf]
    %v2462 = vld [vmem:[%s8 + $0x2c] sm:$0xf]
    %v2463 = vld [vmem:[%s8 + $0x30] sm:$0xf]
    %v2464 = vld [vmem:[%s8 + $0x34] sm:$0xf]
    %v2465 = vld [vmem:[%s8 + $0x38] sm:$0xf]
    %v2466 = vld [vmem:[%s8 + $0x3c] sm:$0xf]
    %v2467 = vld [vmem:[%s9] sm:$0x1]
    %v2469 = vlaneseq
    %v2470 = vshrl.u32 %v2469, 7
    %v2471 = vsub.s32 0, %v2470
    %v2472 = vrot.slane %v2467, %v2471
    %v2490 = vunpack.c.l.b16 %v2451
    %v2491 = vunpack.c.l.b16 %v2452
    %v2492 = vunpack.c.l.b16 %v2453
    %v2493 = vunpack.c.l.b16 %v2454
    %v2494 = vunpack.c.l.b16 %v2455
    %v2495 = vunpack.c.l.b16 %v2456
    %v2496 = vunpack.c.l.b16 %v2457
    %v2497 = vunpack.c.l.b16 %v2458
    %v2498 = vunpack.c.l.b16 %v2459
    %v2499 = vunpack.c.l.b16 %v2460
    %v2500 = vunpack.c.l.b16 %v2461
    %v2501 = vunpack.c.l.b16 %v2462
    %v2502 = vunpack.c.l.b16 %v2463
    %v2503 = vunpack.c.l.b16 %v2464
    %v2504 = vunpack.c.l.b16 %v2465
    %v2505 = vunpack.c.l.b16 %v2466
    %v2506 = vpack.c.b16 %v2491, %v2490
    %v2507 = vpack.c.b16 %v2493, %v2492
    %v2508 = vpack.c.b16 %v2495, %v2494
    %v2509 = vpack.c.b16 %v2497, %v2496
    %v2510 = vpack.c.b16 %v2499, %v2498
    %v2511 = vpack.c.b16 %v2501, %v2500
    %v2512 = vpack.c.b16 %v2503, %v2502
    %v2513 = vpack.c.b16 %v2505, %v2504
    %2522 = vmatprep.subr.bf16.mxu0 0
    %2523 = vmatpush1.bf16.msra.mxu0 %v2506
    %2524 = vmatprep.subr.bf16.mxu0 0
    %2525 = vmatpush1.bf16.msra.mxu0 %v2507
    %2526 = vmatprep.subr.bf16.mxu0 0
    %2527 = vmatpush1.bf16.msra.mxu0 %v2508
    %2528 = vmatprep.subr.bf16.mxu0 0
    %2529 = vmatpush1.bf16.msra.mxu0 %v2509
    %2530 = vmatprep.subr.bf16.mxu0 0
    %2531 = vmatpush1.bf16.msra.mxu0 %v2510
    %2532 = vmatprep.subr.bf16.mxu0 0
    %2533 = vmatpush1.bf16.msra.mxu0 %v2511
    %2534 = vmatprep.subr.bf16.mxu0 0
    %2535 = vmatpush1.bf16.msra.mxu0 %v2512
    %2536 = vmatprep.subr.bf16.mxu0 0
    %2537 = vmatpush1.bf16.msra.mxu0 %v2513
    %2538 = vmatprep.subr.bf16.mxu0 0
    %2539 = vmatpush1.bf16.msra.mxu0 0
    %2540 = vmatprep.subr.bf16.mxu0 0
    %2541 = vmatpush1.bf16.msra.mxu0 0
    %2542 = vmatprep.subr.bf16.mxu0 0
    %2543 = vmatpush1.bf16.msra.mxu0 0
    %2544 = vmatprep.subr.bf16.mxu0 0
    %2545 = vmatpush1.bf16.msra.mxu0 0
    %2546 = vmatprep.subr.bf16.mxu0 0
    %2547 = vmatpush1.bf16.msra.mxu0 0
    %2548 = vmatprep.subr.bf16.mxu0 0
    %2549 = vmatpush1.bf16.msra.mxu0 0
    %2550 = vmatprep.subr.bf16.mxu0 0
    %2551 = vmatpush1.bf16.msra.mxu0 0
    %2552 = vmatprep.subr.bf16.mxu0 0
    %2553 = vmatpush1.bf16.msra.mxu0 0
    %2554 = vmatprep.mubr.bf16.mxu0 0
    %2555 = vmatmul.mubr.bf16.gmra.mrb[0].mxu0 %v2450
    %v2556 = vpop.f32.mrb[0].mxu0
    %v2557 = vadd.f32 %v2472, %v2556
    %v2558 = vpop.f32.mrb[0].mxu0
    %v2559 = vpop.f32.mrb[0].mxu0
    %v2560 = vpop.f32.mrb[0].mxu0
    %2561 = vdwg.mxu0
    %v2562 = vxor.u32 %v2557, 2147483648
    %v2563 = vmul.f32 %v2562, 1.442695
    %v2564 = vpow.pop %v2563
    %v2565 = vadd.f32 %v2564, 1.0
    %v2566 = vrcp.pop %v2565
    %v2567 = vmul.f32 1.0, %v2566
    %2568 = vst [vmem:[%s14] sm:$0xff] %v2567
  $region49: #{sentiment_rnn_forward.3} parent=0 // pred_fallthru
    _
  // Predicated region
  $region50: #{sentiment_rnn_forward.3} parent=0 // pred_check
    _
  $region51: #{sentiment_rnn_forward.3} parent=0 // pred_check_branch
    %2570 = sbr.rel (0) target = $region53
  $region52: #{sentiment_rnn_forward.3} parent=0 // pred_region
    _
  $region53: #{sentiment_rnn_forward.3} parent=0 // pred_fallthru
    _
  // Predicated region
  $region54: #{sentiment_rnn_forward.3} parent=0 // pred_check
    _
  $region55: #{sentiment_rnn_forward.3} parent=0 // pred_check_branch
    %2572 = sbr.rel (0) target = $region57
  $region56: #{sentiment_rnn_forward.3} parent=0 // pred_region
    _
  $region57: #{sentiment_rnn_forward.3} parent=0 // pred_fallthru
    _
  // Predicated region
  $region58: #{sentiment_rnn_forward.3} parent=0 // pred_check
    _
  $region59: #{sentiment_rnn_forward.3} parent=0 // pred_check_branch
    %2574 = sbr.rel (0) target = $region61
  $region60: #{sentiment_rnn_forward.3} parent=0 // pred_region
    _
  $region61: #{sentiment_rnn_forward.3} parent=0 // pred_fallthru
    _
  // Predicated region
  $region62: #{sentiment_rnn_forward.3} parent=0 // pred_check
    _
  $region63: #{sentiment_rnn_forward.3} parent=0 // pred_check_branch
    %2576 = sbr.rel (0) target = $region65
  $region64: #{sentiment_rnn_forward.3} parent=0 // pred_region
    _
  $region65: #{sentiment_rnn_forward.3} parent=0 // pred_fallthru
    _
  // Predicated region
  $region66: #{sentiment_rnn_forward.3} parent=0 // pred_check
    _
  $region67: #{sentiment_rnn_forward.3} parent=0 // pred_check_branch
    %2578 = sbr.rel (0) target = $region69
  $region68: #{sentiment_rnn_forward.3} parent=0 // pred_region
    _
  $region69: #{sentiment_rnn_forward.3} parent=0 // pred_fallthru
    _
  // Predicated region
  $region70: #{sentiment_rnn_forward.3} parent=0 // pred_check
    _
  $region71: #{sentiment_rnn_forward.3} parent=0 // pred_check_branch
    %2580 = sbr.rel (0) target = $region73
  $region72: #{sentiment_rnn_forward.3} parent=0 // pred_region
    _
  $region73: #{sentiment_rnn_forward.3} parent=0 // pred_fallthru
    _
  // Predicated region
  $region74: #{sentiment_rnn_forward.3} parent=0 // pred_check
    _
  $region75: #{sentiment_rnn_forward.3} parent=0 // pred_check_branch
    %2582 = sbr.rel (0) target = $region77
  $region76: #{sentiment_rnn_forward.3} parent=0 // pred_region
    _
  $region77: #{sentiment_rnn_forward.3} parent=0 // pred_fallthru
    _
  // Predicated region
  $region78: #{sentiment_rnn_forward.3} parent=0 // pred_check
    _
  $region79: #{sentiment_rnn_forward.3} parent=0 // pred_check_branch
    %2584 = sbr.rel (0) target = $region81
  $region80: #{sentiment_rnn_forward.3} parent=0 // pred_region
    _
  $region81: #{sentiment_rnn_forward.3} parent=0 // pred_fallthru
    _
  // Predicated region
  $region82: #{sentiment_rnn_forward.3} parent=0 // pred_check
    _
  $region83: #{sentiment_rnn_forward.3} parent=0 // pred_check_branch
    %2586 = sbr.rel (0) target = $region85
  $region84: #{sentiment_rnn_forward.3} parent=0 // pred_region
    _
  $region85: #{sentiment_rnn_forward.3} parent=0 // pred_fallthru
    _
  // Predicated region
  $region86: #{sentiment_rnn_forward.3} parent=0 // pred_check
    _
  $region87: #{sentiment_rnn_forward.3} parent=0 // pred_check_branch
    %2588 = sbr.rel (0) target = $region89
  $region88: #{sentiment_rnn_forward.3} parent=0 // pred_region
    _
  $region89: #{sentiment_rnn_forward.3} parent=0 // pred_fallthru
    _

</llo_original>
